<compile_context>
chip_gen: v7x
topology: tpu7x:2x2x1
jax: 0.10.0
libtpu: 0.0.40
codegen_flags: <defaults>
</compile_context>

<pallas_src>
import functools

import jax
import jax.numpy as jnp
from jax.experimental import pallas as pl
from jax.experimental.pallas import tpu as pltpu


def _attention_pool_kernel(x_ref, pos_g_ref, pos_s_ref, wqkv_ref, bqkv_ref,
                           wkv_ref, bkv_ref, wc_ref, bc_ref, hmap_ref,
                           hmapt_ref, o_ref, *, num_heads, matmul_dtype):
    TB, L, C = x_ref.shape
    hd = C // num_heads
    scale = float(hd) ** -0.5
    mm_dt = jnp.float32 if matmul_dtype is None else matmul_dtype

    def mm(a, w_ref):                               # MXU matmul, f32 accumulate
        return jnp.dot(a.astype(mm_dt), w_ref[...],
                       preferred_element_type=jnp.float32)

    x = x_ref[...]                                  # (TB, L, C) native dtype
    pos_g = pos_g_ref[...].astype(jnp.float32)      # (1, C)  global-token pos
    pos_s = pos_s_ref[...].astype(mm_dt)            # (L, C)  sequence pos

    # Global ("pooled") token = mean over the sequence (f32 for accuracy).
    # TODO(synk): attention_mask path (masked mean for the global token) not implemented.
    xg = (jnp.mean(x.astype(jnp.float32), axis=1) + pos_g).astype(mm_dt)  # (TB, C)
    xs = (x.astype(mm_dt) + pos_s[None, :, :]).reshape(TB * L, C)

    # --- projections --------------------------------------------------------
    # One fused Q|K|V matmul for the global token (the only query)...
    qkv_g = mm(xg, wqkv_ref) + bqkv_ref[...]        # (TB, 3C) f32
    q = qkv_g[:, :C] * scale                        # (TB, C)
    k_g = qkv_g[:, C:2 * C]
    v_g = qkv_g[:, 2 * C:]
    # ...and one fused K|V matmul for the L sequence tokens (dominant FLOPs).
    kv_s = mm(xs, wkv_ref) + bkv_ref[...]           # (TB*L, 2C) f32
    k_s = kv_s[:, :C].reshape(TB, L, C)
    v_s = kv_s[:, C:].reshape(TB, L, C)

    # --- all-heads attention (vectorized, no per-head loop) ------------------
    # hmap[c, h] = 1 iff channel c belongs to head h: contracting with it sums
    # per-head chunks; multiplying by its transpose repeats head weights back
    # out across that head's channels.
    hmap = hmap_ref[...]                            # (C, H) f32
    hmap_t = hmapt_ref[...]                         # (H, C) f32

    s_g = jnp.dot(q * k_g, hmap, preferred_element_type=jnp.float32)    # (TB, H)
    qk_s = (q[:, None, :] * k_s).reshape(TB * L, C)
    s_s = jnp.dot(qk_s, hmap,
                  preferred_element_type=jnp.float32).reshape(TB, L, num_heads)

    # numerically stable softmax over the L+1 tokens (global handled apart)
    m = jnp.maximum(jnp.max(s_s, axis=1), s_g)      # (TB, H)
    p_g = jnp.exp(s_g - m)                          # (TB, H)
    p_s = jnp.exp(s_s - m[:, None, :])              # (TB, L, H)
    inv = pl.reciprocal(p_g + jnp.sum(p_s, axis=1), approx=False)       # (TB, H)

    pg_full = jnp.dot(p_g * inv, hmap_t,
                      preferred_element_type=jnp.float32)               # (TB, C)
    ps_full = jnp.dot((p_s * inv[:, None, :]).reshape(TB * L, num_heads), hmap_t,
                      preferred_element_type=jnp.float32).reshape(TB, L, C)
    attn = pg_full * v_g + jnp.sum(ps_full * v_s, axis=1)               # (TB, C)

    # --- output projection ----------------------------------------------------
    out = mm(attn, wc_ref) + bc_ref[...]            # (TB, Dout)
    o_ref[...] = out.astype(o_ref.dtype)            # lane-dense slab store


def attention_pool(x, pos, wq, bq, wk, bk, wv, bv, wc, bc, *, num_heads,
                   block_b=64, matmul_dtype=None, single_buffer_consts=True,
                   vmem_limit_bytes=None):
    """AttentionPool forward. Weights are (in, out) = torch Linear weight.T.

    For production sizes pass matmul_dtype=jnp.bfloat16 (bf16 MXU operands,
    f32 accumulation) and pick block_b so block_b*L >= 256 while fitting the
    per-generation VMEM budget (halve it on v7x vs v6e, or pass an explicit
    vmem_limit_bytes).
    """
    B, L, C = x.shape
    Dout = wc.shape[-1]
    H = num_heads
    hd = C // H
    assert hd * H == C
    out_dtype = x.dtype

    # batch tile: multiple of 8 so the (TB, Dout) output slab is sublane-aligned;
    # pad the batch with zeros (padded rows are computed then discarded).
    tb = ((min(block_b, B) + 7) // 8) * 8
    nb = pl.cdiv(B, tb)
    Bp = nb * tb
    if Bp != B:
        x = jnp.pad(x, ((0, Bp - B), (0, 0), (0, 0)))

    # split positional embedding host-side: global row vs sequence rows
    pos_g = pos[:1]                                  # (1, C)
    pos_s = pos[1:]                                  # (L, C)

    # fused weights: Q|K|V (C,3C) for the global token, K|V (C,2C) for sequence
    wqkv = jnp.concatenate([wq, wk, wv], axis=1)     # (C, 3C)
    bqkv = jnp.concatenate([bq, bk, bv], axis=1)     # (1, 3C)
    wkv = jnp.concatenate([wk, wv], axis=1)          # (C, 2C)
    bkv = jnp.concatenate([bk, bv], axis=1)          # (1, 2C)

    # block-diagonal head map (channel -> head indicator), built host-side
    head_of = jnp.arange(C, dtype=jnp.int32) // hd
    hmap = (head_of[:, None] == jnp.arange(H, dtype=jnp.int32)[None, :]
            ).astype(jnp.float32)                    # (C, H)
    hmap_t = jnp.transpose(hmap)                     # (H, C)

    if matmul_dtype is not None:                     # bf16 MXU feed on v5e/v6e/v7x
        wqkv = wqkv.astype(matmul_dtype)
        wkv = wkv.astype(matmul_dtype)
        wc = wc.astype(matmul_dtype)

    # explicit VMEM budget (v5e scoped default is only 16 MiB; 64 MiB cap is
    # safe on every generation incl. v7x)
    if vmem_limit_bytes is None:
        w_isz = jnp.dtype(matmul_dtype).itemsize if matmul_dtype is not None else 4
        cbuf = 1 if single_buffer_consts else 2
        const_bytes = cbuf * ((L + 1) * C * 4
                              + (5 * C * C + C * Dout) * w_isz
                              + (5 * C + Dout) * 4
                              + 2 * C * H * 4)
        io_bytes = (2 * tb * L * C * x.dtype.itemsize
                    + 2 * tb * Dout * jnp.dtype(out_dtype).itemsize)
        tmp_bytes = 10 * tb * L * C * 4              # f32 temporaries, generous
        vmem_limit_bytes = min(max(2 * (const_bytes + io_bytes + tmp_bytes),
                                   32 * 1024 * 1024), 64 * 1024 * 1024)

    kern = functools.partial(_attention_pool_kernel, num_heads=H,
                             matmul_dtype=matmul_dtype)
    const2 = lambda b: (0, 0)
    args = (x, pos_g, pos_s, wqkv, bqkv, wkv, bkv, wc, bc, hmap, hmap_t)

    def build(single_buf):
        def cspec(shape):                            # constant-index operand spec
            if single_buf:
                return pl.BlockSpec(shape, const2, pipeline_mode=pl.Buffered(1))
            return pl.BlockSpec(shape, const2)
        return pl.pallas_call(
            kern,
            out_shape=jax.ShapeDtypeStruct((Bp, Dout), out_dtype),
            grid=(nb,),
            in_specs=[
                pl.BlockSpec((tb, L, C), lambda b: (b, 0, 0)),   # x (batch-blocked)
                cspec((1, C)),                                   # pos_g
                cspec((L, C)),                                   # pos_s
                cspec((C, 3 * C)),                               # Wq|Wk|Wv fused
                cspec((1, 3 * C)),                               # bq|bk|bv fused
                cspec((C, 2 * C)),                               # Wk|Wv fused
                cspec((1, 2 * C)),                               # bk|bv fused
                cspec((C, Dout)),                                # Wc
                cspec((1, Dout)),                                # bc
                cspec((C, H)),                                   # head map
                cspec((H, C)),                                   # head map transposed
            ],
            out_specs=pl.BlockSpec((tb, Dout), lambda b: (b, 0)),
            compiler_params=pltpu.CompilerParams(
                dimension_semantics=("parallel",),               # both TCs on v7x
                vmem_limit_bytes=vmem_limit_bytes),
        )

    if single_buffer_consts and hasattr(pl, "Buffered"):
        try:
            return build(True)(*args)[:B]
        except Exception:
            # Some jax versions reject single-buffered BlockSpecs; retry with
            # the default (double-buffered) pipelining so the kernel still runs.
            pass
    return build(False)(*args)[:B]                   # (B, Dout)


def attention_pool_ref(x, pos, wq, bq, wk, bk, wv, bv, wc, bc, *, num_heads):
    """Pure-JAX reference mirroring F.multi_head_attention_forward semantics."""
    B, L, C = x.shape
    xt = jnp.transpose(x, (1, 0, 2))                 # (L, B, C)
    g = jnp.mean(xt, axis=0, keepdims=True)          # (1, B, C)
    xc = jnp.concatenate([g, xt], axis=0)            # (L+1, B, C)
    xc = xc + pos[:, None, :]
    hd = C // num_heads
    scale = hd ** -0.5
    q = (xc[:1] @ wq + bq) * scale                   # (1, B, C)
    k = xc @ wk + bk                                 # (L+1, B, C)
    v = xc @ wv + bv
    qh = q.reshape(1, B, num_heads, hd)
    kh = k.reshape(L + 1, B, num_heads, hd)
    vh = v.reshape(L + 1, B, num_heads, hd)
    s = jnp.einsum('qbhd,kbhd->bhqk', qh, kh)
    p = jax.nn.softmax(s, axis=-1)
    o = jnp.einsum('bhqk,kbhd->qbhd', p, vh).reshape(1, B, C)
    return (o @ wc + bc)[0]                          # (B, Dout)


if __name__ == "__main__":
    B, L, C, H, Dout = 12, 8, 32, 4, 16              # spacial_dim=8, embed_dim=32

    key = jax.random.PRNGKey(0)
    ks = jax.random.split(key, 11)
    x = jax.random.normal(ks[0], (B, L, C), jnp.float32)
    pos = jax.random.normal(ks[1], (L + 1, C), jnp.float32) / (C ** 0.5)
    wq = jax.random.normal(ks[2], (C, C), jnp.float32) * 0.05
    bq = jax.random.normal(ks[3], (1, C), jnp.float32) * 0.05
    wk = jax.random.normal(ks[4], (C, C), jnp.float32) * 0.05
    bk = jax.random.normal(ks[5], (1, C), jnp.float32) * 0.05
    wv = jax.random.normal(ks[6], (C, C), jnp.float32) * 0.05
    bv = jax.random.normal(ks[7], (1, C), jnp.float32) * 0.05
    wc = jax.random.normal(ks[8], (C, Dout), jnp.float32) * 0.05
    bc = jax.random.normal(ks[9], (1, Dout), jnp.float32) * 0.05

    out = attention_pool(x, pos, wq, bq, wk, bk, wv, bv, wc, bc, num_heads=H)
    out = jax.block_until_ready(out)

    ref = attention_pool_ref(x, pos, wq, bq, wk, bk, wv, bv, wc, bc, num_heads=H)
    assert out.shape == (B, Dout), out.shape
    assert jnp.allclose(out, ref, rtol=1e-4, atol=1e-4), \
        f"max abs err {jnp.max(jnp.abs(out - ref))}"

    print("KERNEL_OK")
</pallas_src>

<mosaic_0001>
module attributes {stable_mosaic.version = 11 : i64} {
  func.func @_attention_pool_kernel(%arg0: i32, %arg1: memref<16x8x32xf32, #tpu.memory_space<vmem>>, %arg2: memref<1x32xf32, #tpu.memory_space<vmem>>, %arg3: memref<8x32xf32, #tpu.memory_space<vmem>>, %arg4: memref<32x96xf32, #tpu.memory_space<vmem>>, %arg5: memref<1x96xf32, #tpu.memory_space<vmem>>, %arg6: memref<32x64xf32, #tpu.memory_space<vmem>>, %arg7: memref<1x64xf32, #tpu.memory_space<vmem>>, %arg8: memref<32x16xf32, #tpu.memory_space<vmem>>, %arg9: memref<1x16xf32, #tpu.memory_space<vmem>>, %arg10: memref<32x4xf32, #tpu.memory_space<vmem>>, %arg11: memref<4x32xf32, #tpu.memory_space<vmem>>, %arg12: memref<16x16xf32, #tpu.memory_space<vmem>>) attributes {dimension_semantics = [#tpu.dimension_semantics<parallel>], iteration_bounds = array<i64: 1>, scalar_prefetch = 0 : i64, scratch_operands = 0 : i64, tpu.core_type = #tpu.core_type<tc>, window_params = [{transform_indices = @transform_0, window_bounds = array<i64: 16, 8, 32>}, {pipeline_mode = #tpu.pipeline_mode<synchronous>, transform_indices = @transform_1, window_bounds = array<i64: 1, 32>}, {pipeline_mode = #tpu.pipeline_mode<synchronous>, transform_indices = @transform_2, window_bounds = array<i64: 8, 32>}, {pipeline_mode = #tpu.pipeline_mode<synchronous>, transform_indices = @transform_3, window_bounds = array<i64: 32, 96>}, {pipeline_mode = #tpu.pipeline_mode<synchronous>, transform_indices = @transform_4, window_bounds = array<i64: 1, 96>}, {pipeline_mode = #tpu.pipeline_mode<synchronous>, transform_indices = @transform_5, window_bounds = array<i64: 32, 64>}, {pipeline_mode = #tpu.pipeline_mode<synchronous>, transform_indices = @transform_6, window_bounds = array<i64: 1, 64>}, {pipeline_mode = #tpu.pipeline_mode<synchronous>, transform_indices = @transform_7, window_bounds = array<i64: 32, 16>}, {pipeline_mode = #tpu.pipeline_mode<synchronous>, transform_indices = @transform_8, window_bounds = array<i64: 1, 16>}, {pipeline_mode = #tpu.pipeline_mode<synchronous>, transform_indices = @transform_9, window_bounds = array<i64: 32, 4>}, {pipeline_mode = #tpu.pipeline_mode<synchronous>, transform_indices = @transform_10, window_bounds = array<i64: 4, 32>}, {transform_indices = @transform_11, window_bounds = array<i64: 16, 16>}]} {
    %c0 = arith.constant 0 : index
    %c0_0 = arith.constant 0 : index
    %c0_1 = arith.constant 0 : index
    %0 = vector.load %arg1[%c0, %c0_0, %c0_1] : memref<16x8x32xf32, #tpu.memory_space<vmem>>, vector<16x8x32xf32>
    %c0_2 = arith.constant 0 : index
    %c0_3 = arith.constant 0 : index
    %1 = vector.load %arg2[%c0_2, %c0_3] : memref<1x32xf32, #tpu.memory_space<vmem>>, vector<1x32xf32>
    %c0_4 = arith.constant 0 : index
    %c0_5 = arith.constant 0 : index
    %2 = vector.load %arg3[%c0_4, %c0_5] : memref<8x32xf32, #tpu.memory_space<vmem>>, vector<8x32xf32>
    %cst = arith.constant dense<0.000000e+00> : vector<16x32xf32>
    %3 = vector.multi_reduction <add>, %0, %cst [1] : vector<16x8x32xf32> to vector<16x32xf32>
    %cst_6 = arith.constant 8.000000e+00 : f32
    %4 = vector.broadcast %cst_6 : f32 to vector<16x32xf32>
    %5 = arith.divf %3, %4 : vector<16x32xf32>
    %6 = vector.broadcast %1 : vector<1x32xf32> to vector<16x32xf32>
    %7 = arith.addf %5, %6 : vector<16x32xf32>
    %8 = vector.shape_cast %2 : vector<8x32xf32> to vector<1x8x32xf32>
    %9 = vector.broadcast %8 : vector<1x8x32xf32> to vector<16x8x32xf32>
    %10 = arith.addf %0, %9 : vector<16x8x32xf32>
    %11 = vector.shape_cast %10 : vector<16x8x32xf32> to vector<128x32xf32>
    %c0_7 = arith.constant 0 : index
    %c0_8 = arith.constant 0 : index
    %12 = vector.load %arg4[%c0_7, %c0_8] : memref<32x96xf32, #tpu.memory_space<vmem>>, vector<32x96xf32>
    %cst_9 = arith.constant dense<0.000000e+00> : vector<16x96xf32>
    %13 = tpu.matmul %7, %12, %cst_9 {dimension_numbers = #tpu.dot_dimension_numbers<[1], [0], [0], [1], [0, 0, 1, 1], [], []>} : vector<16x32xf32>, vector<32x96xf32>, vector<16x96xf32> -> vector<16x96xf32>
    %c0_10 = arith.constant 0 : index
    %c0_11 = arith.constant 0 : index
    %14 = vector.load %arg5[%c0_10, %c0_11] : memref<1x96xf32, #tpu.memory_space<vmem>>, vector<1x96xf32>
    %15 = vector.broadcast %14 : vector<1x96xf32> to vector<16x96xf32>
    %16 = arith.addf %13, %15 : vector<16x96xf32>
    %17 = vector.extract_strided_slice %16 {offsets = [0, 0], sizes = [16, 32], strides = [1, 1]} : vector<16x96xf32> to vector<16x32xf32>
    %cst_12 = arith.constant 0.353553385 : f32
    %18 = vector.broadcast %cst_12 : f32 to vector<16x32xf32>
    %19 = arith.mulf %17, %18 : vector<16x32xf32>
    %20 = vector.extract_strided_slice %16 {offsets = [0, 32], sizes = [16, 32], strides = [1, 1]} : vector<16x96xf32> to vector<16x32xf32>
    %21 = vector.extract_strided_slice %16 {offsets = [0, 64], sizes = [16, 32], strides = [1, 1]} : vector<16x96xf32> to vector<16x32xf32>
    %c0_13 = arith.constant 0 : index
    %c0_14 = arith.constant 0 : index
    %22 = vector.load %arg6[%c0_13, %c0_14] : memref<32x64xf32, #tpu.memory_space<vmem>>, vector<32x64xf32>
    %cst_15 = arith.constant dense<0.000000e+00> : vector<128x64xf32>
    %23 = tpu.matmul %11, %22, %cst_15 {dimension_numbers = #tpu.dot_dimension_numbers<[1], [0], [0], [1], [0, 0, 1, 1], [], []>} : vector<128x32xf32>, vector<32x64xf32>, vector<128x64xf32> -> vector<128x64xf32>
    %c0_16 = arith.constant 0 : index
    %c0_17 = arith.constant 0 : index
    %24 = vector.load %arg7[%c0_16, %c0_17] : memref<1x64xf32, #tpu.memory_space<vmem>>, vector<1x64xf32>
    %25 = vector.broadcast %24 : vector<1x64xf32> to vector<128x64xf32>
    %26 = arith.addf %23, %25 : vector<128x64xf32>
    %27 = vector.extract_strided_slice %26 {offsets = [0, 0], sizes = [128, 32], strides = [1, 1]} : vector<128x64xf32> to vector<128x32xf32>
    %28 = vector.shape_cast %27 : vector<128x32xf32> to vector<16x8x32xf32>
    %29 = vector.extract_strided_slice %26 {offsets = [0, 32], sizes = [128, 32], strides = [1, 1]} : vector<128x64xf32> to vector<128x32xf32>
    %30 = vector.shape_cast %29 : vector<128x32xf32> to vector<16x8x32xf32>
    %c0_18 = arith.constant 0 : index
    %c0_19 = arith.constant 0 : index
    %31 = vector.load %arg10[%c0_18, %c0_19] : memref<32x4xf32, #tpu.memory_space<vmem>>, vector<32x4xf32>
    %c0_20 = arith.constant 0 : index
    %c0_21 = arith.constant 0 : index
    %32 = vector.load %arg11[%c0_20, %c0_21] : memref<4x32xf32, #tpu.memory_space<vmem>>, vector<4x32xf32>
    %33 = arith.mulf %19, %20 : vector<16x32xf32>
    %cst_22 = arith.constant dense<0.000000e+00> : vector<16x4xf32>
    %34 = tpu.matmul %33, %31, %cst_22 {dimension_numbers = #tpu.dot_dimension_numbers<[1], [0], [0], [1], [0, 0, 1, 1], [], []>} : vector<16x32xf32>, vector<32x4xf32>, vector<16x4xf32> -> vector<16x4xf32>
    %35 = vector.shape_cast %19 : vector<16x32xf32> to vector<16x1x32xf32>
    %36 = vector.broadcast %35 : vector<16x1x32xf32> to vector<16x8x32xf32>
    %37 = arith.mulf %36, %28 : vector<16x8x32xf32>
    %38 = vector.shape_cast %37 : vector<16x8x32xf32> to vector<128x32xf32>
    %cst_23 = arith.constant dense<0.000000e+00> : vector<128x4xf32>
    %39 = tpu.matmul %38, %31, %cst_23 {dimension_numbers = #tpu.dot_dimension_numbers<[1], [0], [0], [1], [0, 0, 1, 1], [], []>} : vector<128x32xf32>, vector<32x4xf32>, vector<128x4xf32> -> vector<128x4xf32>
    %40 = vector.shape_cast %39 : vector<128x4xf32> to vector<16x8x4xf32>
    %cst_24 = arith.constant dense<0xFF800000> : vector<16x4xf32>
    %41 = vector.multi_reduction <maximumf>, %40, %cst_24 [1] : vector<16x8x4xf32> to vector<16x4xf32>
    %42 = arith.maximumf %41, %34 : vector<16x4xf32>
    %43 = arith.subf %34, %42 : vector<16x4xf32>
    %44 = math.exp %43 : vector<16x4xf32>
    %45 = vector.shape_cast %42 : vector<16x4xf32> to vector<16x1x4xf32>
    %46 = vector.broadcast %45 : vector<16x1x4xf32> to vector<16x8x4xf32>
    %47 = arith.subf %40, %46 : vector<16x8x4xf32>
    %48 = math.exp %47 : vector<16x8x4xf32>
    %cst_25 = arith.constant dense<0.000000e+00> : vector<16x4xf32>
    %49 = vector.multi_reduction <add>, %48, %cst_25 [1] : vector<16x8x4xf32> to vector<16x4xf32>
    %50 = arith.addf %44, %49 : vector<16x4xf32>
    %51 = tpu.reciprocal %50 : vector<16x4xf32> -> vector<16x4xf32>
    %52 = arith.mulf %44, %51 : vector<16x4xf32>
    %cst_26 = arith.constant dense<0.000000e+00> : vector<16x32xf32>
    %53 = tpu.matmul %52, %32, %cst_26 {dimension_numbers = #tpu.dot_dimension_numbers<[1], [0], [0], [1], [0, 0, 1, 1], [], []>} : vector<16x4xf32>, vector<4x32xf32>, vector<16x32xf32> -> vector<16x32xf32>
    %54 = vector.shape_cast %51 : vector<16x4xf32> to vector<16x1x4xf32>
    %55 = vector.broadcast %54 : vector<16x1x4xf32> to vector<16x8x4xf32>
    %56 = arith.mulf %48, %55 : vector<16x8x4xf32>
    %57 = vector.shape_cast %56 : vector<16x8x4xf32> to vector<128x4xf32>
    %cst_27 = arith.constant dense<0.000000e+00> : vector<128x32xf32>
    %58 = tpu.matmul %57, %32, %cst_27 {dimension_numbers = #tpu.dot_dimension_numbers<[1], [0], [0], [1], [0, 0, 1, 1], [], []>} : vector<128x4xf32>, vector<4x32xf32>, vector<128x32xf32> -> vector<128x32xf32>
    %59 = vector.shape_cast %58 : vector<128x32xf32> to vector<16x8x32xf32>
    %60 = arith.mulf %53, %21 : vector<16x32xf32>
    %61 = arith.mulf %59, %30 : vector<16x8x32xf32>
    %cst_28 = arith.constant dense<0.000000e+00> : vector<16x32xf32>
    %62 = vector.multi_reduction <add>, %61, %cst_28 [1] : vector<16x8x32xf32> to vector<16x32xf32>
    %63 = arith.addf %60, %62 : vector<16x32xf32>
    %c0_29 = arith.constant 0 : index
    %c0_30 = arith.constant 0 : index
    %64 = vector.load %arg8[%c0_29, %c0_30] : memref<32x16xf32, #tpu.memory_space<vmem>>, vector<32x16xf32>
    %cst_31 = arith.constant dense<0.000000e+00> : vector<16x16xf32>
    %65 = tpu.matmul %63, %64, %cst_31 {dimension_numbers = #tpu.dot_dimension_numbers<[1], [0], [0], [1], [0, 0, 1, 1], [], []>} : vector<16x32xf32>, vector<32x16xf32>, vector<16x16xf32> -> vector<16x16xf32>
    %c0_32 = arith.constant 0 : index
    %c0_33 = arith.constant 0 : index
    %66 = vector.load %arg9[%c0_32, %c0_33] : memref<1x16xf32, #tpu.memory_space<vmem>>, vector<1x16xf32>
    %67 = vector.broadcast %66 : vector<1x16xf32> to vector<16x16xf32>
    %68 = arith.addf %65, %67 : vector<16x16xf32>
    %c0_34 = arith.constant 0 : index
    %c0_35 = arith.constant 0 : index
    %69 = vector.load %arg12[%c0_34, %c0_35] : memref<16x16xf32, #tpu.memory_space<vmem>>, vector<16x16xf32>
    tpu.vector_store %arg12[%c0_34, %c0_35], %68 {strides = array<i32>} : memref<16x16xf32, #tpu.memory_space<vmem>>, vector<16x16xf32>,
    return
  }
  func.func @transform_0(%arg0: i32) -> (i32, i32, i32) {
    %c0_i32 = arith.constant 0 : i32
    %c0_i32_0 = arith.constant 0 : i32
    %c0_i32_1 = arith.constant 0 : i32
    return %arg0, %c0_i32, %c0_i32_0 : i32, i32, i32
  }
  func.func @transform_1(%arg0: i32) -> (i32, i32) {
    %c0_i32 = arith.constant 0 : i32
    %c0_i32_0 = arith.constant 0 : i32
    %c0_i32_1 = arith.constant 0 : i32
    return %c0_i32, %c0_i32_0 : i32, i32
  }
  func.func @transform_2(%arg0: i32) -> (i32, i32) {
    %c0_i32 = arith.constant 0 : i32
    %c0_i32_0 = arith.constant 0 : i32
    %c0_i32_1 = arith.constant 0 : i32
    return %c0_i32, %c0_i32_0 : i32, i32
  }
  func.func @transform_3(%arg0: i32) -> (i32, i32) {
    %c0_i32 = arith.constant 0 : i32
    %c0_i32_0 = arith.constant 0 : i32
    %c0_i32_1 = arith.constant 0 : i32
    return %c0_i32, %c0_i32_0 : i32, i32
  }
  func.func @transform_4(%arg0: i32) -> (i32, i32) {
    %c0_i32 = arith.constant 0 : i32
    %c0_i32_0 = arith.constant 0 : i32
    %c0_i32_1 = arith.constant 0 : i32
    return %c0_i32, %c0_i32_0 : i32, i32
  }
  func.func @transform_5(%arg0: i32) -> (i32, i32) {
    %c0_i32 = arith.constant 0 : i32
    %c0_i32_0 = arith.constant 0 : i32
    %c0_i32_1 = arith.constant 0 : i32
    return %c0_i32, %c0_i32_0 : i32, i32
  }
  func.func @transform_6(%arg0: i32) -> (i32, i32) {
    %c0_i32 = arith.constant 0 : i32
    %c0_i32_0 = arith.constant 0 : i32
    %c0_i32_1 = arith.constant 0 : i32
    return %c0_i32, %c0_i32_0 : i32, i32
  }
  func.func @transform_7(%arg0: i32) -> (i32, i32) {
    %c0_i32 = arith.constant 0 : i32
    %c0_i32_0 = arith.constant 0 : i32
    %c0_i32_1 = arith.constant 0 : i32
    return %c0_i32, %c0_i32_0 : i32, i32
  }
  func.func @transform_8(%arg0: i32) -> (i32, i32) {
    %c0_i32 = arith.constant 0 : i32
    %c0_i32_0 = arith.constant 0 : i32
    %c0_i32_1 = arith.constant 0 : i32
    return %c0_i32, %c0_i32_0 : i32, i32
  }
  func.func @transform_9(%arg0: i32) -> (i32, i32) {
    %c0_i32 = arith.constant 0 : i32
    %c0_i32_0 = arith.constant 0 : i32
    %c0_i32_1 = arith.constant 0 : i32
    return %c0_i32, %c0_i32_0 : i32, i32
  }
  func.func @transform_10(%arg0: i32) -> (i32, i32) {
    %c0_i32 = arith.constant 0 : i32
    %c0_i32_0 = arith.constant 0 : i32
    %c0_i32_1 = arith.constant 0 : i32
    return %c0_i32, %c0_i32_0 : i32, i32
  }
  func.func @transform_11(%arg0: i32) -> (i32, i32) {
    %c0_i32 = arith.constant 0 : i32
    %c0_i32_0 = arith.constant 0 : i32
    return %arg0, %c0_i32 : i32, i32
  }
}

module attributes {stable_mosaic.version = 11 : i64} {
  func.func @_attention_pool_kernel(%arg0: i32, %arg1: memref<16x8x32xf32, #tpu.memory_space<vmem>>, %arg2: memref<1x32xf32, #tpu.memory_space<vmem>>, %arg3: memref<8x32xf32, #tpu.memory_space<vmem>>, %arg4: memref<32x96xf32, #tpu.memory_space<vmem>>, %arg5: memref<1x96xf32, #tpu.memory_space<vmem>>, %arg6: memref<32x64xf32, #tpu.memory_space<vmem>>, %arg7: memref<1x64xf32, #tpu.memory_space<vmem>>, %arg8: memref<32x16xf32, #tpu.memory_space<vmem>>, %arg9: memref<1x16xf32, #tpu.memory_space<vmem>>, %arg10: memref<32x4xf32, #tpu.memory_space<vmem>>, %arg11: memref<4x32xf32, #tpu.memory_space<vmem>>, %arg12: memref<16x16xf32, #tpu.memory_space<vmem>>) attributes {dimension_semantics = [#tpu.dimension_semantics<parallel>], iteration_bounds = array<i64: 1>, scalar_prefetch = 0 : i64, scratch_operands = 0 : i64, tpu.core_type = #tpu.core_type<tc>, window_params = [{transform_indices = @transform_0, window_bounds = array<i64: 16, 8, 32>}, {pipeline_mode = #tpu.pipeline_mode<synchronous>, transform_indices = @transform_1, window_bounds = array<i64: 1, 32>}, {pipeline_mode = #tpu.pipeline_mode<synchronous>, transform_indices = @transform_2, window_bounds = array<i64: 8, 32>}, {pipeline_mode = #tpu.pipeline_mode<synchronous>, transform_indices = @transform_3, window_bounds = array<i64: 32, 96>}, {pipeline_mode = #tpu.pipeline_mode<synchronous>, transform_indices = @transform_4, window_bounds = array<i64: 1, 96>}, {pipeline_mode = #tpu.pipeline_mode<synchronous>, transform_indices = @transform_5, window_bounds = array<i64: 32, 64>}, {pipeline_mode = #tpu.pipeline_mode<synchronous>, transform_indices = @transform_6, window_bounds = array<i64: 1, 64>}, {pipeline_mode = #tpu.pipeline_mode<synchronous>, transform_indices = @transform_7, window_bounds = array<i64: 32, 16>}, {pipeline_mode = #tpu.pipeline_mode<synchronous>, transform_indices = @transform_8, window_bounds = array<i64: 1, 16>}, {pipeline_mode = #tpu.pipeline_mode<synchronous>, transform_indices = @transform_9, window_bounds = array<i64: 32, 4>}, {pipeline_mode = #tpu.pipeline_mode<synchronous>, transform_indices = @transform_10, window_bounds = array<i64: 4, 32>}, {transform_indices = @transform_11, window_bounds = array<i64: 16, 16>}]} {
    %c0 = arith.constant 0 : index
    %c0_0 = arith.constant 0 : index
    %c0_1 = arith.constant 0 : index
    %0 = vector.load %arg1[%c0, %c0_0, %c0_1] : memref<16x8x32xf32, #tpu.memory_space<vmem>>, vector<16x8x32xf32>
    %c0_2 = arith.constant 0 : index
    %c0_3 = arith.constant 0 : index
    %1 = vector.load %arg2[%c0_2, %c0_3] : memref<1x32xf32, #tpu.memory_space<vmem>>, vector<1x32xf32>
    %c0_4 = arith.constant 0 : index
    %c0_5 = arith.constant 0 : index
    %2 = vector.load %arg3[%c0_4, %c0_5] : memref<8x32xf32, #tpu.memory_space<vmem>>, vector<8x32xf32>
    %cst = arith.constant dense<0.000000e+00> : vector<16x32xf32>
    %3 = vector.multi_reduction <add>, %0, %cst [1] : vector<16x8x32xf32> to vector<16x32xf32>
    %cst_6 = arith.constant 8.000000e+00 : f32
    %4 = vector.broadcast %cst_6 : f32 to vector<16x32xf32>
    %5 = arith.divf %3, %4 : vector<16x32xf32>
    %6 = vector.broadcast %1 : vector<1x32xf32> to vector<16x32xf32>
    %7 = arith.addf %5, %6 : vector<16x32xf32>
    %8 = vector.shape_cast %2 : vector<8x32xf32> to vector<1x8x32xf32>
    %9 = vector.broadcast %8 : vector<1x8x32xf32> to vector<16x8x32xf32>
    %10 = arith.addf %0, %9 : vector<16x8x32xf32>
    %11 = vector.shape_cast %10 : vector<16x8x32xf32> to vector<128x32xf32>
    %c0_7 = arith.constant 0 : index
    %c0_8 = arith.constant 0 : index
    %12 = vector.load %arg4[%c0_7, %c0_8] : memref<32x96xf32, #tpu.memory_space<vmem>>, vector<32x96xf32>
    %cst_9 = arith.constant dense<0.000000e+00> : vector<16x96xf32>
    %13 = tpu.matmul %7, %12, %cst_9 {dimension_numbers = #tpu.dot_dimension_numbers<[1], [0], [0], [1], [0, 0, 1, 1], [], []>} : vector<16x32xf32>, vector<32x96xf32>, vector<16x96xf32> -> vector<16x96xf32>
    %c0_10 = arith.constant 0 : index
    %c0_11 = arith.constant 0 : index
    %14 = vector.load %arg5[%c0_10, %c0_11] : memref<1x96xf32, #tpu.memory_space<vmem>>, vector<1x96xf32>
    %15 = vector.broadcast %14 : vector<1x96xf32> to vector<16x96xf32>
    %16 = arith.addf %13, %15 : vector<16x96xf32>
    %17 = vector.extract_strided_slice %16 {offsets = [0, 0], sizes = [16, 32], strides = [1, 1]} : vector<16x96xf32> to vector<16x32xf32>
    %cst_12 = arith.constant 0.353553385 : f32
    %18 = vector.broadcast %cst_12 : f32 to vector<16x32xf32>
    %19 = arith.mulf %17, %18 : vector<16x32xf32>
    %20 = vector.extract_strided_slice %16 {offsets = [0, 32], sizes = [16, 32], strides = [1, 1]} : vector<16x96xf32> to vector<16x32xf32>
    %21 = vector.extract_strided_slice %16 {offsets = [0, 64], sizes = [16, 32], strides = [1, 1]} : vector<16x96xf32> to vector<16x32xf32>
    %c0_13 = arith.constant 0 : index
    %c0_14 = arith.constant 0 : index
    %22 = vector.load %arg6[%c0_13, %c0_14] : memref<32x64xf32, #tpu.memory_space<vmem>>, vector<32x64xf32>
    %cst_15 = arith.constant dense<0.000000e+00> : vector<128x64xf32>
    %23 = tpu.matmul %11, %22, %cst_15 {dimension_numbers = #tpu.dot_dimension_numbers<[1], [0], [0], [1], [0, 0, 1, 1], [], []>} : vector<128x32xf32>, vector<32x64xf32>, vector<128x64xf32> -> vector<128x64xf32>
    %c0_16 = arith.constant 0 : index
    %c0_17 = arith.constant 0 : index
    %24 = vector.load %arg7[%c0_16, %c0_17] : memref<1x64xf32, #tpu.memory_space<vmem>>, vector<1x64xf32>
    %25 = vector.broadcast %24 : vector<1x64xf32> to vector<128x64xf32>
    %26 = arith.addf %23, %25 : vector<128x64xf32>
    %27 = vector.extract_strided_slice %26 {offsets = [0, 0], sizes = [128, 32], strides = [1, 1]} : vector<128x64xf32> to vector<128x32xf32>
    %28 = vector.shape_cast %27 : vector<128x32xf32> to vector<16x8x32xf32>
    %29 = vector.extract_strided_slice %26 {offsets = [0, 32], sizes = [128, 32], strides = [1, 1]} : vector<128x64xf32> to vector<128x32xf32>
    %30 = vector.shape_cast %29 : vector<128x32xf32> to vector<16x8x32xf32>
    %c0_18 = arith.constant 0 : index
    %c0_19 = arith.constant 0 : index
    %31 = vector.load %arg10[%c0_18, %c0_19] : memref<32x4xf32, #tpu.memory_space<vmem>>, vector<32x4xf32>
    %c0_20 = arith.constant 0 : index
    %c0_21 = arith.constant 0 : index
    %32 = vector.load %arg11[%c0_20, %c0_21] : memref<4x32xf32, #tpu.memory_space<vmem>>, vector<4x32xf32>
    %33 = arith.mulf %19, %20 : vector<16x32xf32>
    %cst_22 = arith.constant dense<0.000000e+00> : vector<16x4xf32>
    %34 = tpu.matmul %33, %31, %cst_22 {dimension_numbers = #tpu.dot_dimension_numbers<[1], [0], [0], [1], [0, 0, 1, 1], [], []>} : vector<16x32xf32>, vector<32x4xf32>, vector<16x4xf32> -> vector<16x4xf32>
    %35 = vector.shape_cast %19 : vector<16x32xf32> to vector<16x1x32xf32>
    %36 = vector.broadcast %35 : vector<16x1x32xf32> to vector<16x8x32xf32>
    %37 = arith.mulf %36, %28 : vector<16x8x32xf32>
    %38 = vector.shape_cast %37 : vector<16x8x32xf32> to vector<128x32xf32>
    %cst_23 = arith.constant dense<0.000000e+00> : vector<128x4xf32>
    %39 = tpu.matmul %38, %31, %cst_23 {dimension_numbers = #tpu.dot_dimension_numbers<[1], [0], [0], [1], [0, 0, 1, 1], [], []>} : vector<128x32xf32>, vector<32x4xf32>, vector<128x4xf32> -> vector<128x4xf32>
    %40 = vector.shape_cast %39 : vector<128x4xf32> to vector<16x8x4xf32>
    %cst_24 = arith.constant dense<0xFF800000> : vector<16x4xf32>
    %41 = vector.multi_reduction <maximumf>, %40, %cst_24 [1] : vector<16x8x4xf32> to vector<16x4xf32>
    %42 = arith.maximumf %41, %34 : vector<16x4xf32>
    %43 = arith.subf %34, %42 : vector<16x4xf32>
    %44 = math.exp %43 : vector<16x4xf32>
    %45 = vector.shape_cast %42 : vector<16x4xf32> to vector<16x1x4xf32>
    %46 = vector.broadcast %45 : vector<16x1x4xf32> to vector<16x8x4xf32>
    %47 = arith.subf %40, %46 : vector<16x8x4xf32>
    %48 = math.exp %47 : vector<16x8x4xf32>
    %cst_25 = arith.constant dense<0.000000e+00> : vector<16x4xf32>
    %49 = vector.multi_reduction <add>, %48, %cst_25 [1] : vector<16x8x4xf32> to vector<16x4xf32>
    %50 = arith.addf %44, %49 : vector<16x4xf32>
    %51 = tpu.reciprocal %50 : vector<16x4xf32> -> vector<16x4xf32>
    %52 = arith.mulf %44, %51 : vector<16x4xf32>
    %cst_26 = arith.constant dense<0.000000e+00> : vector<16x32xf32>
    %53 = tpu.matmul %52, %32, %cst_26 {dimension_numbers = #tpu.dot_dimension_numbers<[1], [0], [0], [1], [0, 0, 1, 1], [], []>} : vector<16x4xf32>, vector<4x32xf32>, vector<16x32xf32> -> vector<16x32xf32>
    %54 = vector.shape_cast %51 : vector<16x4xf32> to vector<16x1x4xf32>
    %55 = vector.broadcast %54 : vector<16x1x4xf32> to vector<16x8x4xf32>
    %56 = arith.mulf %48, %55 : vector<16x8x4xf32>
    %57 = vector.shape_cast %56 : vector<16x8x4xf32> to vector<128x4xf32>
    %cst_27 = arith.constant dense<0.000000e+00> : vector<128x32xf32>
    %58 = tpu.matmul %57, %32, %cst_27 {dimension_numbers = #tpu.dot_dimension_numbers<[1], [0], [0], [1], [0, 0, 1, 1], [], []>} : vector<128x4xf32>, vector<4x32xf32>, vector<128x32xf32> -> vector<128x32xf32>
    %59 = vector.shape_cast %58 : vector<128x32xf32> to vector<16x8x32xf32>
    %60 = arith.mulf %53, %21 : vector<16x32xf32>
    %61 = arith.mulf %59, %30 : vector<16x8x32xf32>
    %cst_28 = arith.constant dense<0.000000e+00> : vector<16x32xf32>
    %62 = vector.multi_reduction <add>, %61, %cst_28 [1] : vector<16x8x32xf32> to vector<16x32xf32>
    %63 = arith.addf %60, %62 : vector<16x32xf32>
    %c0_29 = arith.constant 0 : index
    %c0_30 = arith.constant 0 : index
    %64 = vector.load %arg8[%c0_29, %c0_30] : memref<32x16xf32, #tpu.memory_space<vmem>>, vector<32x16xf32>
    %cst_31 = arith.constant dense<0.000000e+00> : vector<16x16xf32>
    %65 = tpu.matmul %63, %64, %cst_31 {dimension_numbers = #tpu.dot_dimension_numbers<[1], [0], [0], [1], [0, 0, 1, 1], [], []>} : vector<16x32xf32>, vector<32x16xf32>, vector<16x16xf32> -> vector<16x16xf32>
    %c0_32 = arith.constant 0 : index
    %c0_33 = arith.constant 0 : index
    %66 = vector.load %arg9[%c0_32, %c0_33] : memref<1x16xf32, #tpu.memory_space<vmem>>, vector<1x16xf32>
    %67 = vector.broadcast %66 : vector<1x16xf32> to vector<16x16xf32>
    %68 = arith.addf %65, %67 : vector<16x16xf32>
    %c0_34 = arith.constant 0 : index
    %c0_35 = arith.constant 0 : index
    %69 = vector.load %arg12[%c0_34, %c0_35] : memref<16x16xf32, #tpu.memory_space<vmem>>, vector<16x16xf32>
    tpu.vector_store %arg12[%c0_34, %c0_35], %68 {strides = array<i32>} : memref<16x16xf32, #tpu.memory_space<vmem>>, vector<16x16xf32>,
    return
  }
  func.func @transform_0(%arg0: i32) -> (i32, i32, i32) {
    %c0_i32 = arith.constant 0 : i32
    %c0_i32_0 = arith.constant 0 : i32
    %c0_i32_1 = arith.constant 0 : i32
    return %arg0, %c0_i32, %c0_i32_0 : i32, i32, i32
  }
  func.func @transform_1(%arg0: i32) -> (i32, i32) {
    %c0_i32 = arith.constant 0 : i32
    %c0_i32_0 = arith.constant 0 : i32
    %c0_i32_1 = arith.constant 0 : i32
    return %c0_i32, %c0_i32_0 : i32, i32
  }
  func.func @transform_2(%arg0: i32) -> (i32, i32) {
    %c0_i32 = arith.constant 0 : i32
    %c0_i32_0 = arith.constant 0 : i32
    %c0_i32_1 = arith.constant 0 : i32
    return %c0_i32, %c0_i32_0 : i32, i32
  }
  func.func @transform_3(%arg0: i32) -> (i32, i32) {
    %c0_i32 = arith.constant 0 : i32
    %c0_i32_0 = arith.constant 0 : i32
    %c0_i32_1 = arith.constant 0 : i32
    return %c0_i32, %c0_i32_0 : i32, i32
  }
  func.func @transform_4(%arg0: i32) -> (i32, i32) {
    %c0_i32 = arith.constant 0 : i32
    %c0_i32_0 = arith.constant 0 : i32
    %c0_i32_1 = arith.constant 0 : i32
    return %c0_i32, %c0_i32_0 : i32, i32
  }
  func.func @transform_5(%arg0: i32) -> (i32, i32) {
    %c0_i32 = arith.constant 0 : i32
    %c0_i32_0 = arith.constant 0 : i32
    %c0_i32_1 = arith.constant 0 : i32
    return %c0_i32, %c0_i32_0 : i32, i32
  }
  func.func @transform_6(%arg0: i32) -> (i32, i32) {
    %c0_i32 = arith.constant 0 : i32
    %c0_i32_0 = arith.constant 0 : i32
    %c0_i32_1 = arith.constant 0 : i32
    return %c0_i32, %c0_i32_0 : i32, i32
  }
  func.func @transform_7(%arg0: i32) -> (i32, i32) {
    %c0_i32 = arith.constant 0 : i32
    %c0_i32_0 = arith.constant 0 : i32
    %c0_i32_1 = arith.constant 0 : i32
    return %c0_i32, %c0_i32_0 : i32, i32
  }
  func.func @transform_8(%arg0: i32) -> (i32, i32) {
    %c0_i32 = arith.constant 0 : i32
    %c0_i32_0 = arith.constant 0 : i32
    %c0_i32_1 = arith.constant 0 : i32
    return %c0_i32, %c0_i32_0 : i32, i32
  }
  func.func @transform_9(%arg0: i32) -> (i32, i32) {
    %c0_i32 = arith.constant 0 : i32
    %c0_i32_0 = arith.constant 0 : i32
    %c0_i32_1 = arith.constant 0 : i32
    return %c0_i32, %c0_i32_0 : i32, i32
  }
  func.func @transform_10(%arg0: i32) -> (i32, i32) {
    %c0_i32 = arith.constant 0 : i32
    %c0_i32_0 = arith.constant 0 : i32
    %c0_i32_1 = arith.constant 0 : i32
    return %c0_i32, %c0_i32_0 : i32, i32
  }
  func.func @transform_11(%arg0: i32) -> (i32, i32) {
    %c0_i32 = arith.constant 0 : i32
    %c0_i32_0 = arith.constant 0 : i32
    return %arg0, %c0_i32 : i32, i32
  }
}

</mosaic_0001>

<llo_original>
// kernel: tpu_custom_call.1
$region0: #{tpu_custom_call.1}
  #allocation0 [shape = 'u32[]', space=smem, size = 0x4, offset = 0x4, fixed_abs, tag = 'smem constant byte address 0x4 - core index']
  #allocation1 [shape = 'u32[144,128]{1,0:T(1,128)}', space=vmem, size = 0x12000, scoped, tag = 'internal scratch']
  %s0 = inlined_call_operand.hbm [shape: f32[16,8,32], index: 0, kind: input, shape index: {}]
  %s1 = inlined_call_operand.vmem [shape: f32[1,32], index: 1, kind: input, shape index: {}]
  %s2 = inlined_call_operand.vmem [shape: f32[8,32], index: 2, kind: input, shape index: {}]
  %s3 = inlined_call_operand.vmem [shape: f32[32,96], index: 3, kind: input, shape index: {}]
  %s4 = inlined_call_operand.vmem [shape: f32[1,96], index: 4, kind: input, shape index: {}]
  %s5 = inlined_call_operand.vmem [shape: f32[32,64], index: 5, kind: input, shape index: {}]
  %s6 = inlined_call_operand.vmem [shape: f32[1,64], index: 6, kind: input, shape index: {}]
  %s7 = inlined_call_operand.vmem [shape: f32[32,16], index: 7, kind: input, shape index: {}]
  %s8 = inlined_call_operand.vmem [shape: f32[1,16], index: 8, kind: input, shape index: {}]
  %s9 = inlined_call_operand.vmem [shape: f32[32,4], index: 9, kind: input, shape index: {}]
  %s10 = inlined_call_operand.vmem [shape: f32[4,32], index: 10, kind: input, shape index: {}]
  %s11 = inlined_call_operand.hbm [shape: f32[16,16], index: 11, kind: output, shape index: {}]
  %s12 = sld [smem:[#allocation0]]
  $region58: #{tpu_custom_call.1} parent=0
    _
  %s14 = ssub.s32 1, %s12
  %s15 = scalar_select 0, %s14, %s12
  $region1: #{tpu_custom_call.1} parent=0
    #allocation2 [shape = 'u8[65536]{0}', space=vmem, size = 0x10000, scoped, tag = 'input window, operand 0, single buffered']
    #allocation3 [shape = 's32[1]{0}', space=sflag, size = 0x4, scoped, tag = 'scoped memory for tpu_custom_call.1']
    #allocation4 [shape = 's32[1]{0}', space=sflag, size = 0x4, scoped, tag = 'scoped memory for tpu_custom_call.1']
    #allocation5 [shape = 'u8[8192]{0}', space=vmem, size = 0x2000, scoped, tag = 'output window, operand 0, single buffered']
    %16 = vsyncpa [#allocation3], 0
    %17 = vsyncpa [#allocation4], 0
    // Predicated region
    $region2: #{tpu_custom_call.1} parent=1 // pred_check
      _
    $region3: #{tpu_custom_call.1} parent=1 // pred_check_branch
      %19 = sbr.rel (0) target = $region5
    $region4: #{tpu_custom_call.1} parent=1 // pred_region
      %s21 = ssub.s32 2048, 2048
      %22 = vsyncadd [#allocation3], %s21
      %s23 = sshll.u32 [#allocation2], 4
      %s24 = int_to_ptr.vmem [resolvable:$true] %s23
      %29 = dma.hbm_to_vmem [thread:$0]  %s0, 2048, %s24, [#allocation3], 128, 128, 8
    $region5: #{tpu_custom_call.1} parent=1 // pred_fallthru
      _
    // Predicated region
    $region6: #{tpu_custom_call.1} parent=1 // pred_check
      _
    $region7: #{tpu_custom_call.1} parent=1 // pred_check_branch
      %31 = sbr.rel (0) target = $region9
    $region8: #{tpu_custom_call.1} parent=1 // pred_region
      _
    $region9: #{tpu_custom_call.1} parent=1 // pred_fallthru
      _
    // Predicated region
    $region10: #{tpu_custom_call.1} parent=1 // pred_check
      _
    $region11: #{tpu_custom_call.1} parent=1 // pred_check_branch
      %33 = sbr.rel (0) target = $region13
    $region12: #{tpu_custom_call.1} parent=1 // pred_region
      _
    $region13: #{tpu_custom_call.1} parent=1 // pred_fallthru
      _
    // Predicated region
    $region14: #{tpu_custom_call.1} parent=1 // pred_check
      _
    $region15: #{tpu_custom_call.1} parent=1 // pred_check_branch
      %35 = sbr.rel (0) target = $region17
    $region16: #{tpu_custom_call.1} parent=1 // pred_region
      _
    $region17: #{tpu_custom_call.1} parent=1 // pred_fallthru
      _
    // Predicated region
    $region18: #{tpu_custom_call.1} parent=1 // pred_check
      _
    $region19: #{tpu_custom_call.1} parent=1 // pred_check_branch
      %37 = sbr.rel (0) target = $region21
    $region20: #{tpu_custom_call.1} parent=1 // pred_region
      _
    $region21: #{tpu_custom_call.1} parent=1 // pred_fallthru
      _
    // Predicated region
    $region22: #{tpu_custom_call.1} parent=1 // pred_check
      _
    $region23: #{tpu_custom_call.1} parent=1 // pred_check_branch
      %39 = sbr.rel (0) target = $region25
    $region24: #{tpu_custom_call.1} parent=1 // pred_region
      _
    $region25: #{tpu_custom_call.1} parent=1 // pred_fallthru
      _
    // Predicated region
    $region26: #{tpu_custom_call.1} parent=1 // pred_check
      _
    $region27: #{tpu_custom_call.1} parent=1 // pred_check_branch
      %41 = sbr.rel (0) target = $region29
    $region28: #{tpu_custom_call.1} parent=1 // pred_region
      _
    $region29: #{tpu_custom_call.1} parent=1 // pred_fallthru
      _
    // Predicated region
    $region30: #{tpu_custom_call.1} parent=1 // pred_check
      _
    $region31: #{tpu_custom_call.1} parent=1 // pred_check_branch
      %43 = sbr.rel (0) target = $region33
    $region32: #{tpu_custom_call.1} parent=1 // pred_region
      _
    $region33: #{tpu_custom_call.1} parent=1 // pred_fallthru
      _
    // Predicated region
    $region34: #{tpu_custom_call.1} parent=1 // pred_check
      _
    $region35: #{tpu_custom_call.1} parent=1 // pred_check_branch
      %45 = sbr.rel (0) target = $region37
    $region36: #{tpu_custom_call.1} parent=1 // pred_region
      _
    $region37: #{tpu_custom_call.1} parent=1 // pred_fallthru
      _
    // Predicated region
    $region38: #{tpu_custom_call.1} parent=1 // pred_check
      _
    $region39: #{tpu_custom_call.1} parent=1 // pred_check_branch
      %47 = sbr.rel (0) target = $region41
    $region40: #{tpu_custom_call.1} parent=1 // pred_region
      _
    $region41: #{tpu_custom_call.1} parent=1 // pred_fallthru
      _
    // Predicated region
    $region42: #{tpu_custom_call.1} parent=1 // pred_check
      _
    $region43: #{tpu_custom_call.1} parent=1 // pred_check_branch
      %49 = sbr.rel (0) target = $region45
    $region44: #{tpu_custom_call.1} parent=1 // pred_region
      _
    $region45: #{tpu_custom_call.1} parent=1 // pred_fallthru
      _
    // Predicated region
    $region46: #{tpu_custom_call.1} parent=1 // pred_check
      _
    $region47: #{tpu_custom_call.1} parent=1 // pred_check_branch
      %51 = sbr.rel (0) target = $region49
    $region48: #{tpu_custom_call.1} parent=1 // pred_region
      %52 = dma.done [#allocation3], 2048
    $region49: #{tpu_custom_call.1} parent=1 // pred_fallthru
      _
    %v53 = vld [vmem:[#allocation2] sm:$0xff]
    %v54 = vld [vmem:[#allocation2 + $0x8] sm:$0xff]
    %v55 = vld [vmem:[#allocation2 + $0x10] sm:$0xff]
    %v56 = vld [vmem:[#allocation2 + $0x18] sm:$0xff]
    %v57 = vld [vmem:[#allocation2 + $0x20] sm:$0xff]
    %v58 = vld [vmem:[#allocation2 + $0x28] sm:$0xff]
    %v59 = vld [vmem:[#allocation2 + $0x30] sm:$0xff]
    %v60 = vld [vmem:[#allocation2 + $0x38] sm:$0xff]
    %v61 = vld [vmem:[#allocation2 + $0x40] sm:$0xff]
    %v62 = vld [vmem:[#allocation2 + $0x48] sm:$0xff]
    %v63 = vld [vmem:[#allocation2 + $0x50] sm:$0xff]
    %v64 = vld [vmem:[#allocation2 + $0x58] sm:$0xff]
    %v65 = vld [vmem:[#allocation2 + $0x60] sm:$0xff]
    %v66 = vld [vmem:[#allocation2 + $0x68] sm:$0xff]
    %v67 = vld [vmem:[#allocation2 + $0x70] sm:$0xff]
    %v68 = vld [vmem:[#allocation2 + $0x78] sm:$0xff]
    %v69 = vld [vmem:[%s1] sm:$0x1]
    %v70 = vld [vmem:[%s2] sm:$0xff]
    %vm71 = vcmask 261120
    %v72 = vsel %vm71, %v53, 0.0
    %v73 = vrot.slane %v72, 4
    %v74 = vadd.f32 %v72, %v73
    %v75 = vrot.slane %v74, 2
    %v76 = vadd.f32 %v74, %v75
    %v77 = vrot.slane %v76, 1
    %v78 = vadd.f32 %v76, %v77
    %v79 = vsel %vm71, %v54, 0.0
    %v80 = vrot.slane %v79, 4
    %v81 = vadd.f32 %v79, %v80
    %v82 = vrot.slane %v81, 2
    %v83 = vadd.f32 %v81, %v82
    %v84 = vrot.slane %v83, 1
    %v85 = vadd.f32 %v83, %v84
    %v86 = vsel %vm71, %v55, 0.0
    %v87 = vrot.slane %v86, 4
    %v88 = vadd.f32 %v86, %v87
    %v89 = vrot.slane %v88, 2
    %v90 = vadd.f32 %v88, %v89
    %v91 = vrot.slane %v90, 1
    %v92 = vadd.f32 %v90, %v91
    %v93 = vsel %vm71, %v56, 0.0
    %v94 = vrot.slane %v93, 4
    %v95 = vadd.f32 %v93, %v94
    %v96 = vrot.slane %v95, 2
    %v97 = vadd.f32 %v95, %v96
    %v98 = vrot.slane %v97, 1
    %v99 = vadd.f32 %v97, %v98
    %v100 = vsel %vm71, %v57, 0.0
    %v101 = vrot.slane %v100, 4
    %v102 = vadd.f32 %v100, %v101
    %v103 = vrot.slane %v102, 2
    %v104 = vadd.f32 %v102, %v103
    %v105 = vrot.slane %v104, 1
    %v106 = vadd.f32 %v104, %v105
    %v107 = vsel %vm71, %v58, 0.0
    %v108 = vrot.slane %v107, 4
    %v109 = vadd.f32 %v107, %v108
    %v110 = vrot.slane %v109, 2
    %v111 = vadd.f32 %v109, %v110
    %v112 = vrot.slane %v111, 1
    %v113 = vadd.f32 %v111, %v112
    %v114 = vsel %vm71, %v59, 0.0
    %v115 = vrot.slane %v114, 4
    %v116 = vadd.f32 %v114, %v115
    %v117 = vrot.slane %v116, 2
    %v118 = vadd.f32 %v116, %v117
    %v119 = vrot.slane %v118, 1
    %v120 = vadd.f32 %v118, %v119
    %v121 = vsel %vm71, %v60, 0.0
    %v122 = vrot.slane %v121, 4
    %v123 = vadd.f32 %v121, %v122
    %v124 = vrot.slane %v123, 2
    %v125 = vadd.f32 %v123, %v124
    %v126 = vrot.slane %v125, 1
    %v127 = vadd.f32 %v125, %v126
    %v128 = vsel %vm71, %v61, 0.0
    %v129 = vrot.slane %v128, 4
    %v130 = vadd.f32 %v128, %v129
    %v131 = vrot.slane %v130, 2
    %v132 = vadd.f32 %v130, %v131
    %v133 = vrot.slane %v132, 1
    %v134 = vadd.f32 %v132, %v133
    %v135 = vsel %vm71, %v62, 0.0
    %v136 = vrot.slane %v135, 4
    %v137 = vadd.f32 %v135, %v136
    %v138 = vrot.slane %v137, 2
    %v139 = vadd.f32 %v137, %v138
    %v140 = vrot.slane %v139, 1
    %v141 = vadd.f32 %v139, %v140
    %v142 = vsel %vm71, %v63, 0.0
    %v143 = vrot.slane %v142, 4
    %v144 = vadd.f32 %v142, %v143
    %v145 = vrot.slane %v144, 2
    %v146 = vadd.f32 %v144, %v145
    %v147 = vrot.slane %v146, 1
    %v148 = vadd.f32 %v146, %v147
    %v149 = vsel %vm71, %v64, 0.0
    %v150 = vrot.slane %v149, 4
    %v151 = vadd.f32 %v149, %v150
    %v152 = vrot.slane %v151, 2
    %v153 = vadd.f32 %v151, %v152
    %v154 = vrot.slane %v153, 1
    %v155 = vadd.f32 %v153, %v154
    %v156 = vsel %vm71, %v65, 0.0
    %v157 = vrot.slane %v156, 4
    %v158 = vadd.f32 %v156, %v157
    %v159 = vrot.slane %v158, 2
    %v160 = vadd.f32 %v158, %v159
    %v161 = vrot.slane %v160, 1
    %v162 = vadd.f32 %v160, %v161
    %v163 = vsel %vm71, %v66, 0.0
    %v164 = vrot.slane %v163, 4
    %v165 = vadd.f32 %v163, %v164
    %v166 = vrot.slane %v165, 2
    %v167 = vadd.f32 %v165, %v166
    %v168 = vrot.slane %v167, 1
    %v169 = vadd.f32 %v167, %v168
    %v170 = vsel %vm71, %v67, 0.0
    %v171 = vrot.slane %v170, 4
    %v172 = vadd.f32 %v170, %v171
    %v173 = vrot.slane %v172, 2
    %v174 = vadd.f32 %v172, %v173
    %v175 = vrot.slane %v174, 1
    %v176 = vadd.f32 %v174, %v175
    %v177 = vsel %vm71, %v68, 0.0
    %v178 = vrot.slane %v177, 4
    %v179 = vadd.f32 %v177, %v178
    %v180 = vrot.slane %v179, 2
    %v181 = vadd.f32 %v179, %v180
    %v182 = vrot.slane %v181, 1
    %v183 = vadd.f32 %v181, %v182
    %v184 = vrcp.pop 8.0
    %v185 = vmul.f32 %v78, %v184
    %v186 = vmul.f32 %v85, %v184
    %v187 = vmul.f32 %v92, %v184
    %v188 = vmul.f32 %v99, %v184
    %v189 = vmul.f32 %v106, %v184
    %v190 = vmul.f32 %v113, %v184
    %v191 = vmul.f32 %v120, %v184
    %v192 = vmul.f32 %v127, %v184
    %v193 = vmul.f32 %v134, %v184
    %v194 = vmul.f32 %v141, %v184
    %v195 = vmul.f32 %v148, %v184
    %v196 = vmul.f32 %v155, %v184
    %v197 = vmul.f32 %v162, %v184
    %v198 = vmul.f32 %v169, %v184
    %v199 = vmul.f32 %v176, %v184
    %v200 = vmul.f32 %v183, %v184
    %v202 = vlaneseq
    %v203 = vshrl.u32 %v202, 7
    %v204 = vsub.s32 0, %v203
    %v205 = vrot.slane %v69, %v204
    %v207 = vadd.f32 %v185, %v205
    %v208 = vadd.f32 %v186, %v205
    %v209 = vadd.f32 %v187, %v205
    %v210 = vadd.f32 %v188, %v205
    %v211 = vadd.f32 %v189, %v205
    %v212 = vadd.f32 %v190, %v205
    %v213 = vadd.f32 %v191, %v205
    %v214 = vadd.f32 %v192, %v205
    %v215 = vadd.f32 %v193, %v205
    %v216 = vadd.f32 %v194, %v205
    %v217 = vadd.f32 %v195, %v205
    %v218 = vadd.f32 %v196, %v205
    %v219 = vadd.f32 %v197, %v205
    %v220 = vadd.f32 %v198, %v205
    %v221 = vadd.f32 %v199, %v205
    %v222 = vadd.f32 %v200, %v205
    %v223 = vadd.f32 %v53, %v70
    %v224 = vadd.f32 %v54, %v70
    %v225 = vadd.f32 %v55, %v70
    %v226 = vadd.f32 %v56, %v70
    %v227 = vadd.f32 %v57, %v70
    %v228 = vadd.f32 %v58, %v70
    %v229 = vadd.f32 %v59, %v70
    %v230 = vadd.f32 %v60, %v70
    %v231 = vadd.f32 %v61, %v70
    %v232 = vadd.f32 %v62, %v70
    %v233 = vadd.f32 %v63, %v70
    %v234 = vadd.f32 %v64, %v70
    %v235 = vadd.f32 %v65, %v70
    %v236 = vadd.f32 %v66, %v70
    %v237 = vadd.f32 %v67, %v70
    %v238 = vadd.f32 %v68, %v70
    %v239 = vld [vmem:[%s3] sm:$0xff]
    %v240 = vld [vmem:[%s3 + $0x8] sm:$0xff]
    %v241 = vld [vmem:[%s3 + $0x10] sm:$0xff]
    %v242 = vld [vmem:[%s3 + $0x18] sm:$0xff]
    %v243 = vld [vmem:[%s4] sm:$0x1]
    %v245 = vlaneseq
    %v246 = vshrl.u32 %v245, 7
    %v247 = vsub.s32 0, %v246
    %v248 = vrot.slane %v243, %v247
    %v266 = vrot.slane %v208, 7
    %vm267 = vcmask 1041409
    %v268 = vsel %vm267, %v266, %v207
    %v269 = vrot.slane %v209, 6
    %vm270 = vcmask 1042434
    %v271 = vsel %vm270, %v269, %v268
    %v272 = vrot.slane %v210, 5
    %vm273 = vcmask 1043459
    %v274 = vsel %vm273, %v272, %v271
    %v275 = vrot.slane %v211, 4
    %vm276 = vcmask 1044484
    %v277 = vsel %vm276, %v275, %v274
    %v278 = vrot.slane %v212, 3
    %vm279 = vcmask 1045509
    %v280 = vsel %vm279, %v278, %v277
    %v281 = vrot.slane %v213, 2
    %vm282 = vcmask 1046534
    %v283 = vsel %vm282, %v281, %v280
    %v284 = vrot.slane %v214, 1
    %vm285 = vcmask 1047559
    %v286 = vsel %vm285, %v284, %v283
    %v287 = vrot.slane %v216, 7
    %v288 = vsel %vm267, %v287, %v215
    %v289 = vrot.slane %v217, 6
    %v290 = vsel %vm270, %v289, %v288
    %v291 = vrot.slane %v218, 5
    %v292 = vsel %vm273, %v291, %v290
    %v293 = vrot.slane %v219, 4
    %v294 = vsel %vm276, %v293, %v292
    %v295 = vrot.slane %v220, 3
    %v296 = vsel %vm279, %v295, %v294
    %v297 = vrot.slane %v221, 2
    %v298 = vsel %vm282, %v297, %v296
    %v299 = vrot.slane %v222, 1
    %v300 = vsel %vm285, %v299, %v298
    %v301 = vsel %vm71, %v286, 0
    %v303 = vsel %vm71, %v300, 0
    %305 = vmatprep.subr.mxu0 0.0
    %306 = vmatpush1.msra.mxu0 %v239
    %307 = vmatprep.subr.mxu0 0.0
    %308 = vmatpush1.msra.mxu0 %v240
    %309 = vmatprep.subr.mxu0 0.0
    %310 = vmatpush1.msra.mxu0 %v241
    %311 = vmatprep.subr.mxu0 0.0
    %312 = vmatpush1.msra.mxu0 %v242
    %313 = vmatprep.subr.mxu0 0.0
    %314 = vmatpush1.msra.mxu0 0.0
    %315 = vmatprep.subr.mxu0 0.0
    %316 = vmatpush1.msra.mxu0 0.0
    %317 = vmatprep.subr.mxu0 0.0
    %318 = vmatpush1.msra.mxu0 0.0
    %319 = vmatprep.subr.mxu0 0.0
    %320 = vmatpush1.msra.mxu0 0.0
    %321 = vmatprep.subr.mxu0 0.0
    %322 = vmatpush1.msra.mxu0 0.0
    %323 = vmatprep.subr.mxu0 0.0
    %324 = vmatpush1.msra.mxu0 0.0
    %325 = vmatprep.subr.mxu0 0.0
    %326 = vmatpush1.msra.mxu0 0.0
    %327 = vmatprep.subr.mxu0 0.0
    %328 = vmatpush1.msra.mxu0 0.0
    %329 = vmatprep.subr.mxu0 0.0
    %330 = vmatpush1.msra.mxu0 0.0
    %331 = vmatprep.subr.mxu0 0.0
    %332 = vmatpush1.msra.mxu0 0.0
    %333 = vmatprep.subr.mxu0 0.0
    %334 = vmatpush1.msra.mxu0 0.0
    %335 = vmatprep.subr.mxu0 0.0
    %336 = vmatpush1.msra.mxu0 0.0
    %337 = vmatprep.subr.mxu0 0.0
    %338 = vmatpush1.msra.mxu0 0.0
    %339 = vmatprep.subr.mxu0 0.0
    %340 = vmatpush1.msra.mxu0 0.0
    %341 = vmatprep.subr.mxu0 0.0
    %342 = vmatpush1.msra.mxu0 0.0
    %343 = vmatprep.subr.mxu0 0.0
    %344 = vmatpush1.msra.mxu0 0.0
    %345 = vmatprep.subr.mxu0 0.0
    %346 = vmatpush1.msra.mxu0 0.0
    %347 = vmatprep.subr.mxu0 0.0
    %348 = vmatpush1.msra.mxu0 0.0
    %349 = vmatprep.subr.mxu0 0.0
    %350 = vmatpush1.msra.mxu0 0.0
    %351 = vmatprep.subr.mxu0 0.0
    %352 = vmatpush1.msra.mxu0 0.0
    %353 = vmatprep.subr.mxu0 0.0
    %354 = vmatpush1.msra.mxu0 0.0
    %355 = vmatprep.subr.mxu0 0.0
    %356 = vmatpush1.msra.mxu0 0.0
    %357 = vmatprep.subr.mxu0 0.0
    %358 = vmatpush1.msra.mxu0 0.0
    %359 = vmatprep.subr.mxu0 0.0
    %360 = vmatpush1.msra.mxu0 0.0
    %361 = vmatprep.subr.mxu0 0.0
    %362 = vmatpush1.msra.mxu0 0.0
    %363 = vmatprep.subr.mxu0 0.0
    %364 = vmatpush1.msra.mxu0 0.0
    %365 = vmatprep.subr.mxu0 0.0
    %366 = vmatpush1.msra.mxu0 0.0
    %367 = vmatprep.subr.mxu0 0.0
    %368 = vmatpush1.msra.mxu0 0.0
    %369 = vmatprep.mubr.f32.mxu0 0.0
    %370 = vmatmul.mubr.f32.gmra.mrb[0].mxu0 %v301
    %v371 = vpop.f32.mrb[0].mxu0
    %v372 = vadd.f32 %v248, %v371
    %v373 = vpop.f32.mrb[0].mxu0
    %374 = vmatprep.mubr.f32.mxu0 0.0
    %375 = vmatmul.mubr.f32.gmra.mrb[0].mxu0 %v303
    %v376 = vpop.f32.mrb[0].mxu0
    %v377 = vadd.f32 %v248, %v376
    %v378 = vpop.f32.mrb[0].mxu0
    %379 = vdwg.mxu0
    %v380 = vmul.f32 %v372, 0.35355338
    %v381 = vmul.f32 %v377, 0.35355338
    %v382 = vld [vmem:[%s5] sm:$0xff]
    %v383 = vld [vmem:[%s5 + $0x8] sm:$0xff]
    %v384 = vld [vmem:[%s5 + $0x10] sm:$0xff]
    %v385 = vld [vmem:[%s5 + $0x18] sm:$0xff]
    %v386 = vld [vmem:[%s6] sm:$0x1]
    %v388 = vlaneseq
    %v389 = vshrl.u32 %v388, 7
    %v390 = vsub.s32 0, %v389
    %v391 = vrot.slane %v386, %v390
    %v394 = vsel %vm71, %v223, 0
    %v397 = vsel %vm71, %v224, 0
    %v400 = vsel %vm71, %v225, 0
    %v403 = vsel %vm71, %v226, 0
    %v406 = vsel %vm71, %v227, 0
    %v409 = vsel %vm71, %v228, 0
    %v412 = vsel %vm71, %v229, 0
    %v415 = vsel %vm71, %v230, 0
    %v418 = vsel %vm71, %v231, 0
    %v421 = vsel %vm71, %v232, 0
    %v424 = vsel %vm71, %v233, 0
    %v427 = vsel %vm71, %v234, 0
    %v430 = vsel %vm71, %v235, 0
    %v433 = vsel %vm71, %v236, 0
    %v436 = vsel %vm71, %v237, 0
    %v439 = vsel %vm71, %v238, 0
    %441 = vmatprep.subr.mxu0 0.0
    %442 = vmatpush1.msra.mxu0 %v382
    %443 = vmatprep.subr.mxu0 0.0
    %444 = vmatpush1.msra.mxu0 %v383
    %445 = vmatprep.subr.mxu0 0.0
    %446 = vmatpush1.msra.mxu0 %v384
    %447 = vmatprep.subr.mxu0 0.0
    %448 = vmatpush1.msra.mxu0 %v385
    %449 = vmatprep.subr.mxu0 0.0
    %450 = vmatpush1.msra.mxu0 0.0
    %451 = vmatprep.subr.mxu0 0.0
    %452 = vmatpush1.msra.mxu0 0.0
    %453 = vmatprep.subr.mxu0 0.0
    %454 = vmatpush1.msra.mxu0 0.0
    %455 = vmatprep.subr.mxu0 0.0
    %456 = vmatpush1.msra.mxu0 0.0
    %457 = vmatprep.subr.mxu0 0.0
    %458 = vmatpush1.msra.mxu0 0.0
    %459 = vmatprep.subr.mxu0 0.0
    %460 = vmatpush1.msra.mxu0 0.0
    %461 = vmatprep.subr.mxu0 0.0
    %462 = vmatpush1.msra.mxu0 0.0
    %463 = vmatprep.subr.mxu0 0.0
    %464 = vmatpush1.msra.mxu0 0.0
    %465 = vmatprep.subr.mxu0 0.0
    %466 = vmatpush1.msra.mxu0 0.0
    %467 = vmatprep.subr.mxu0 0.0
    %468 = vmatpush1.msra.mxu0 0.0
    %469 = vmatprep.subr.mxu0 0.0
    %470 = vmatpush1.msra.mxu0 0.0
    %471 = vmatprep.subr.mxu0 0.0
    %472 = vmatpush1.msra.mxu0 0.0
    %473 = vmatprep.subr.mxu0 0.0
    %474 = vmatpush1.msra.mxu0 0.0
    %475 = vmatprep.subr.mxu0 0.0
    %476 = vmatpush1.msra.mxu0 0.0
    %477 = vmatprep.subr.mxu0 0.0
    %478 = vmatpush1.msra.mxu0 0.0
    %479 = vmatprep.subr.mxu0 0.0
    %480 = vmatpush1.msra.mxu0 0.0
    %481 = vmatprep.subr.mxu0 0.0
    %482 = vmatpush1.msra.mxu0 0.0
    %483 = vmatprep.subr.mxu0 0.0
    %484 = vmatpush1.msra.mxu0 0.0
    %485 = vmatprep.subr.mxu0 0.0
    %486 = vmatpush1.msra.mxu0 0.0
    %487 = vmatprep.subr.mxu0 0.0
    %488 = vmatpush1.msra.mxu0 0.0
    %489 = vmatprep.subr.mxu0 0.0
    %490 = vmatpush1.msra.mxu0 0.0
    %491 = vmatprep.subr.mxu0 0.0
    %492 = vmatpush1.msra.mxu0 0.0
    %493 = vmatprep.subr.mxu0 0.0
    %494 = vmatpush1.msra.mxu0 0.0
    %495 = vmatprep.subr.mxu0 0.0
    %496 = vmatpush1.msra.mxu0 0.0
    %497 = vmatprep.subr.mxu0 0.0
    %498 = vmatpush1.msra.mxu0 0.0
    %499 = vmatprep.subr.mxu0 0.0
    %500 = vmatpush1.msra.mxu0 0.0
    %501 = vmatprep.subr.mxu0 0.0
    %502 = vmatpush1.msra.mxu0 0.0
    %503 = vmatprep.subr.mxu0 0.0
    %504 = vmatpush1.msra.mxu0 0.0
    %505 = vmatprep.mubr.f32.mxu0 0.0
    %506 = vmatmul.mubr.f32.gmra.mrb[0].mxu0 %v394
    %v507 = vpop.f32.mrb[0].mxu0
    %v508 = vadd.f32 %v391, %v507
    %v509 = vpop.f32.mrb[0].mxu0
    %510 = vmatprep.mubr.f32.mxu0 0.0
    %511 = vmatmul.mubr.f32.gmra.mrb[0].mxu0 %v397
    %v512 = vpop.f32.mrb[0].mxu0
    %v513 = vadd.f32 %v391, %v512
    %v514 = vpop.f32.mrb[0].mxu0
    %515 = vmatprep.mubr.f32.mxu0 0.0
    %516 = vmatmul.mubr.f32.gmra.mrb[0].mxu0 %v400
    %v517 = vpop.f32.mrb[0].mxu0
    %v518 = vadd.f32 %v391, %v517
    %v519 = vpop.f32.mrb[0].mxu0
    %520 = vmatprep.mubr.f32.mxu0 0.0
    %521 = vmatmul.mubr.f32.gmra.mrb[0].mxu0 %v403
    %v522 = vpop.f32.mrb[0].mxu0
    %v523 = vadd.f32 %v391, %v522
    %v524 = vpop.f32.mrb[0].mxu0
    %525 = vmatprep.mubr.f32.mxu0 0.0
    %526 = vmatmul.mubr.f32.gmra.mrb[0].mxu0 %v406
    %v527 = vpop.f32.mrb[0].mxu0
    %v528 = vadd.f32 %v391, %v527
    %v529 = vpop.f32.mrb[0].mxu0
    %530 = vmatprep.mubr.f32.mxu0 0.0
    %531 = vmatmul.mubr.f32.gmra.mrb[0].mxu0 %v409
    %v532 = vpop.f32.mrb[0].mxu0
    %v533 = vadd.f32 %v391, %v532
    %v534 = vpop.f32.mrb[0].mxu0
    %535 = vmatprep.mubr.f32.mxu0 0.0
    %536 = vmatmul.mubr.f32.gmra.mrb[0].mxu0 %v412
    %v537 = vpop.f32.mrb[0].mxu0
    %v538 = vadd.f32 %v391, %v537
    %v539 = vpop.f32.mrb[0].mxu0
    %540 = vmatprep.mubr.f32.mxu0 0.0
    %541 = vmatmul.mubr.f32.gmra.mrb[0].mxu0 %v415
    %v542 = vpop.f32.mrb[0].mxu0
    %v543 = vadd.f32 %v391, %v542
    %v544 = vpop.f32.mrb[0].mxu0
    %545 = vmatprep.mubr.f32.mxu0 0.0
    %546 = vmatmul.mubr.f32.gmra.mrb[0].mxu0 %v418
    %v547 = vpop.f32.mrb[0].mxu0
    %v548 = vadd.f32 %v391, %v547
    %v549 = vpop.f32.mrb[0].mxu0
    %550 = vmatprep.mubr.f32.mxu0 0.0
    %551 = vmatmul.mubr.f32.gmra.mrb[0].mxu0 %v421
    %v552 = vpop.f32.mrb[0].mxu0
    %v553 = vadd.f32 %v391, %v552
    %v554 = vpop.f32.mrb[0].mxu0
    %555 = vmatprep.mubr.f32.mxu0 0.0
    %556 = vmatmul.mubr.f32.gmra.mrb[0].mxu0 %v424
    %v557 = vpop.f32.mrb[0].mxu0
    %v558 = vadd.f32 %v391, %v557
    %v559 = vpop.f32.mrb[0].mxu0
    %560 = vmatprep.mubr.f32.mxu0 0.0
    %561 = vmatmul.mubr.f32.gmra.mrb[0].mxu0 %v427
    %v562 = vpop.f32.mrb[0].mxu0
    %v563 = vadd.f32 %v391, %v562
    %v564 = vpop.f32.mrb[0].mxu0
    %565 = vmatprep.mubr.f32.mxu0 0.0
    %566 = vmatmul.mubr.f32.gmra.mrb[0].mxu0 %v430
    %v567 = vpop.f32.mrb[0].mxu0
    %v568 = vadd.f32 %v391, %v567
    %v569 = vpop.f32.mrb[0].mxu0
    %570 = vmatprep.mubr.f32.mxu0 0.0
    %571 = vmatmul.mubr.f32.gmra.mrb[0].mxu0 %v433
    %v572 = vpop.f32.mrb[0].mxu0
    %v573 = vadd.f32 %v391, %v572
    %v574 = vpop.f32.mrb[0].mxu0
    %575 = vmatprep.mubr.f32.mxu0 0.0
    %576 = vmatmul.mubr.f32.gmra.mrb[0].mxu0 %v436
    %v577 = vpop.f32.mrb[0].mxu0
    %v578 = vadd.f32 %v391, %v577
    %v579 = vpop.f32.mrb[0].mxu0
    %580 = vmatprep.mubr.f32.mxu0 0.0
    %581 = vmatmul.mubr.f32.gmra.mrb[0].mxu0 %v439
    %v582 = vpop.f32.mrb[0].mxu0
    %v583 = vadd.f32 %v391, %v582
    %v584 = vpop.f32.mrb[0].mxu0
    %585 = vdwg.mxu0
    %v586 = vld [vmem:[%s9] sm:$0xff]
    %v587 = vld [vmem:[%s9 + $0x8] sm:$0xff]
    %v588 = vld [vmem:[%s9 + $0x10] sm:$0xff]
    %v589 = vld [vmem:[%s9 + $0x18] sm:$0xff]
    %v590 = vld [vmem:[%s10] sm:$0xf]
    %593 = vrot.lane.b32.xlu0 %v372, 96
    %v594 = vpop.permute.xlu0 %593
    %595 = vrot.lane.b32.xlu0 %v377, 96
    %v596 = vpop.permute.xlu0 %595
    %v599 = vmul.f32 %v380, %v594
    %v600 = vmul.f32 %v381, %v596
    %v602 = vsel %vm71, %v599, 0
    %v605 = vsel %vm71, %v600, 0
    %607 = vmatprep.subr.mxu0 0.0
    %608 = vmatpush1.msra.mxu0 %v586
    %609 = vmatprep.subr.mxu0 0.0
    %610 = vmatpush1.msra.mxu0 %v587
    %611 = vmatprep.subr.mxu0 0.0
    %612 = vmatpush1.msra.mxu0 %v588
    %613 = vmatprep.subr.mxu0 0.0
    %614 = vmatpush1.msra.mxu0 %v589
    %615 = vmatprep.subr.mxu0 0.0
    %616 = vmatpush1.msra.mxu0 0.0
    %617 = vmatprep.subr.mxu0 0.0
    %618 = vmatpush1.msra.mxu0 0.0
    %619 = vmatprep.subr.mxu0 0.0
    %620 = vmatpush1.msra.mxu0 0.0
    %621 = vmatprep.subr.mxu0 0.0
    %622 = vmatpush1.msra.mxu0 0.0
    %623 = vmatprep.subr.mxu0 0.0
    %624 = vmatpush1.msra.mxu0 0.0
    %625 = vmatprep.subr.mxu0 0.0
    %626 = vmatpush1.msra.mxu0 0.0
    %627 = vmatprep.subr.mxu0 0.0
    %628 = vmatpush1.msra.mxu0 0.0
    %629 = vmatprep.subr.mxu0 0.0
    %630 = vmatpush1.msra.mxu0 0.0
    %631 = vmatprep.subr.mxu0 0.0
    %632 = vmatpush1.msra.mxu0 0.0
    %633 = vmatprep.subr.mxu0 0.0
    %634 = vmatpush1.msra.mxu0 0.0
    %635 = vmatprep.subr.mxu0 0.0
    %636 = vmatpush1.msra.mxu0 0.0
    %637 = vmatprep.subr.mxu0 0.0
    %638 = vmatpush1.msra.mxu0 0.0
    %639 = vmatprep.subr.mxu0 0.0
    %640 = vmatpush1.msra.mxu0 0.0
    %641 = vmatprep.subr.mxu0 0.0
    %642 = vmatpush1.msra.mxu0 0.0
    %643 = vmatprep.subr.mxu0 0.0
    %644 = vmatpush1.msra.mxu0 0.0
    %645 = vmatprep.subr.mxu0 0.0
    %646 = vmatpush1.msra.mxu0 0.0
    %647 = vmatprep.subr.mxu0 0.0
    %648 = vmatpush1.msra.mxu0 0.0
    %649 = vmatprep.subr.mxu0 0.0
    %650 = vmatpush1.msra.mxu0 0.0
    %651 = vmatprep.subr.mxu0 0.0
    %652 = vmatpush1.msra.mxu0 0.0
    %653 = vmatprep.subr.mxu0 0.0
    %654 = vmatpush1.msra.mxu0 0.0
    %655 = vmatprep.subr.mxu0 0.0
    %656 = vmatpush1.msra.mxu0 0.0
    %657 = vmatprep.subr.mxu0 0.0
    %658 = vmatpush1.msra.mxu0 0.0
    %659 = vmatprep.subr.mxu0 0.0
    %660 = vmatpush1.msra.mxu0 0.0
    %661 = vmatprep.subr.mxu0 0.0
    %662 = vmatpush1.msra.mxu0 0.0
    %663 = vmatprep.subr.mxu0 0.0
    %664 = vmatpush1.msra.mxu0 0.0
    %665 = vmatprep.subr.mxu0 0.0
    %666 = vmatpush1.msra.mxu0 0.0
    %667 = vmatprep.subr.mxu0 0.0
    %668 = vmatpush1.msra.mxu0 0.0
    %669 = vmatprep.subr.mxu0 0.0
    %670 = vmatpush1.msra.mxu0 0.0
    %671 = vmatprep.mubr.f32.mxu0 0.0
    %672 = vmatmul.mubr.f32.gmra.mrb[0].mxu0 %v602
    %v673 = vpop.f32.mrb[0].mxu0
    %v674 = vadd.f32 0.0, %v673
    %v675 = vpop.f32.mrb[0].mxu0
    %676 = vmatprep.mubr.f32.mxu0 0.0
    %677 = vmatmul.mubr.f32.gmra.mrb[0].mxu0 %v605
    %v678 = vpop.f32.mrb[0].mxu0
    %v679 = vadd.f32 0.0, %v678
    %v680 = vpop.f32.mrb[0].mxu0
    %681 = vdwg.mxu0
    %v684 = vcombine.high %v380, %v380
    %v686 = vunpack.c.l.s4 1966171168
    %v687 = vunpack.c.0.s8 %v686
    %v688 = vlaneseq
    %v689 = vshrl.u32 %v688, 7
    %v690 = vsub.s32 %v687, %v689
    %v691 = vrot.slane %v380, %v690
    %v693 = vunpack.c.l.s4 1966171168
    %v694 = vunpack.c.0.s8 %v693
    %v695 = vlaneseq
    %v696 = vshrl.u32 %v695, 7
    %v697 = vsub.s32 %v694, %v696
    %v698 = vrot.slane %v684, %v697
    %v699 = vcombine.high %v691, %v691
    %v700 = vcombine.high %v698, %v698
    %v702 = vunpack.c.l.s4 1966171168
    %v703 = vunpack.c.0.s8 %v702
    %v704 = vlaneseq
    %v705 = vshrl.u32 %v704, 7
    %v706 = vsub.s32 %v703, %v705
    %v707 = vrot.slane %v691, %v706
    %v709 = vunpack.c.l.s4 1966171168
    %v710 = vunpack.c.0.s8 %v709
    %v711 = vlaneseq
    %v712 = vshrl.u32 %v711, 7
    %v713 = vsub.s32 %v710, %v712
    %v714 = vrot.slane %v698, %v713
    %v716 = vunpack.c.l.s4 1966171168
    %v717 = vunpack.c.0.s8 %v716
    %v718 = vlaneseq
    %v719 = vshrl.u32 %v718, 7
    %v720 = vsub.s32 %v717, %v719
    %v721 = vrot.slane %v699, %v720
    %v723 = vunpack.c.l.s4 1966171168
    %v724 = vunpack.c.0.s8 %v723
    %v725 = vlaneseq
    %v726 = vshrl.u32 %v725, 7
    %v727 = vsub.s32 %v724, %v726
    %v728 = vrot.slane %v700, %v727
    %v729 = vcombine.high %v707, %v707
    %v730 = vcombine.high %v714, %v714
    %v731 = vcombine.high %v721, %v721
    %v732 = vcombine.high %v728, %v728
    %v733 = vcombine.high %v381, %v381
    %v735 = vunpack.c.l.s4 1966171168
    %v736 = vunpack.c.0.s8 %v735
    %v737 = vlaneseq
    %v738 = vshrl.u32 %v737, 7
    %v739 = vsub.s32 %v736, %v738
    %v740 = vrot.slane %v381, %v739
    %v742 = vunpack.c.l.s4 1966171168
    %v743 = vunpack.c.0.s8 %v742
    %v744 = vlaneseq
    %v745 = vshrl.u32 %v744, 7
    %v746 = vsub.s32 %v743, %v745
    %v747 = vrot.slane %v733, %v746
    %v748 = vcombine.high %v740, %v740
    %v749 = vcombine.high %v747, %v747
    %v751 = vunpack.c.l.s4 1966171168
    %v752 = vunpack.c.0.s8 %v751
    %v753 = vlaneseq
    %v754 = vshrl.u32 %v753, 7
    %v755 = vsub.s32 %v752, %v754
    %v756 = vrot.slane %v740, %v755
    %v758 = vunpack.c.l.s4 1966171168
    %v759 = vunpack.c.0.s8 %v758
    %v760 = vlaneseq
    %v761 = vshrl.u32 %v760, 7
    %v762 = vsub.s32 %v759, %v761
    %v763 = vrot.slane %v747, %v762
    %v765 = vunpack.c.l.s4 1966171168
    %v766 = vunpack.c.0.s8 %v765
    %v767 = vlaneseq
    %v768 = vshrl.u32 %v767, 7
    %v769 = vsub.s32 %v766, %v768
    %v770 = vrot.slane %v748, %v769
    %v772 = vunpack.c.l.s4 1966171168
    %v773 = vunpack.c.0.s8 %v772
    %v774 = vlaneseq
    %v775 = vshrl.u32 %v774, 7
    %v776 = vsub.s32 %v773, %v775
    %v777 = vrot.slane %v749, %v776
    %v778 = vcombine.high %v756, %v756
    %v779 = vcombine.high %v763, %v763
    %v780 = vcombine.high %v770, %v770
    %v781 = vcombine.high %v777, %v777
    %v782 = vlaneseq
    %v783 = vshrl.u32 %v782, 7
    %v784 = vsub.s32 0, %v783
    %v785 = vrot.slane %v707, %v784
    %v786 = vlaneseq
    %v787 = vshrl.u32 %v786, 7
    %v788 = vsub.s32 0, %v787
    %v789 = vrot.slane %v721, %v788
    %v790 = vlaneseq
    %v791 = vshrl.u32 %v790, 7
    %v792 = vsub.s32 0, %v791
    %v793 = vrot.slane %v729, %v792
    %v794 = vlaneseq
    %v795 = vshrl.u32 %v794, 7
    %v796 = vsub.s32 0, %v795
    %v797 = vrot.slane %v731, %v796
    %v798 = vlaneseq
    %v799 = vshrl.u32 %v798, 7
    %v800 = vsub.s32 0, %v799
    %v801 = vrot.slane %v714, %v800
    %v802 = vlaneseq
    %v803 = vshrl.u32 %v802, 7
    %v804 = vsub.s32 0, %v803
    %v805 = vrot.slane %v728, %v804
    %v806 = vlaneseq
    %v807 = vshrl.u32 %v806, 7
    %v808 = vsub.s32 0, %v807
    %v809 = vrot.slane %v730, %v808
    %v810 = vlaneseq
    %v811 = vshrl.u32 %v810, 7
    %v812 = vsub.s32 0, %v811
    %v813 = vrot.slane %v732, %v812
    %v814 = vlaneseq
    %v815 = vshrl.u32 %v814, 7
    %v816 = vsub.s32 0, %v815
    %v817 = vrot.slane %v756, %v816
    %v818 = vlaneseq
    %v819 = vshrl.u32 %v818, 7
    %v820 = vsub.s32 0, %v819
    %v821 = vrot.slane %v770, %v820
    %v822 = vlaneseq
    %v823 = vshrl.u32 %v822, 7
    %v824 = vsub.s32 0, %v823
    %v825 = vrot.slane %v778, %v824
    %v826 = vlaneseq
    %v827 = vshrl.u32 %v826, 7
    %v828 = vsub.s32 0, %v827
    %v829 = vrot.slane %v780, %v828
    %v830 = vlaneseq
    %v831 = vshrl.u32 %v830, 7
    %v832 = vsub.s32 0, %v831
    %v833 = vrot.slane %v763, %v832
    %v834 = vlaneseq
    %v835 = vshrl.u32 %v834, 7
    %v836 = vsub.s32 0, %v835
    %v837 = vrot.slane %v777, %v836
    %v838 = vlaneseq
    %v839 = vshrl.u32 %v838, 7
    %v840 = vsub.s32 0, %v839
    %v841 = vrot.slane %v779, %v840
    %v842 = vlaneseq
    %v843 = vshrl.u32 %v842, 7
    %v844 = vsub.s32 0, %v843
    %v845 = vrot.slane %v781, %v844
    %v862 = vmul.f32 %v785, %v508
    %v863 = vmul.f32 %v789, %v513
    %v864 = vmul.f32 %v793, %v518
    %v865 = vmul.f32 %v797, %v523
    %v866 = vmul.f32 %v801, %v528
    %v867 = vmul.f32 %v805, %v533
    %v868 = vmul.f32 %v809, %v538
    %v869 = vmul.f32 %v813, %v543
    %v870 = vmul.f32 %v817, %v548
    %v871 = vmul.f32 %v821, %v553
    %v872 = vmul.f32 %v825, %v558
    %v873 = vmul.f32 %v829, %v563
    %v874 = vmul.f32 %v833, %v568
    %v875 = vmul.f32 %v837, %v573
    %v876 = vmul.f32 %v841, %v578
    %v877 = vmul.f32 %v845, %v583
    %v879 = vsel %vm71, %v862, 0
    %v882 = vsel %vm71, %v863, 0
    %v885 = vsel %vm71, %v864, 0
    %v888 = vsel %vm71, %v865, 0
    %v891 = vsel %vm71, %v866, 0
    %v894 = vsel %vm71, %v867, 0
    %v897 = vsel %vm71, %v868, 0
    %v900 = vsel %vm71, %v869, 0
    %v903 = vsel %vm71, %v870, 0
    %v906 = vsel %vm71, %v871, 0
    %v909 = vsel %vm71, %v872, 0
    %v912 = vsel %vm71, %v873, 0
    %v915 = vsel %vm71, %v874, 0
    %v918 = vsel %vm71, %v875, 0
    %v921 = vsel %vm71, %v876, 0
    %v924 = vsel %vm71, %v877, 0
    %926 = vmatprep.subr.mxu0 0.0
    %927 = vmatpush1.msra.mxu0 %v586
    %928 = vmatprep.subr.mxu0 0.0
    %929 = vmatpush1.msra.mxu0 %v587
    %930 = vmatprep.subr.mxu0 0.0
    %931 = vmatpush1.msra.mxu0 %v588
    %932 = vmatprep.subr.mxu0 0.0
    %933 = vmatpush1.msra.mxu0 %v589
    %934 = vmatprep.subr.mxu0 0.0
    %935 = vmatpush1.msra.mxu0 0.0
    %936 = vmatprep.subr.mxu0 0.0
    %937 = vmatpush1.msra.mxu0 0.0
    %938 = vmatprep.subr.mxu0 0.0
    %939 = vmatpush1.msra.mxu0 0.0
    %940 = vmatprep.subr.mxu0 0.0
    %941 = vmatpush1.msra.mxu0 0.0
    %942 = vmatprep.subr.mxu0 0.0
    %943 = vmatpush1.msra.mxu0 0.0
    %944 = vmatprep.subr.mxu0 0.0
    %945 = vmatpush1.msra.mxu0 0.0
    %946 = vmatprep.subr.mxu0 0.0
    %947 = vmatpush1.msra.mxu0 0.0
    %948 = vmatprep.subr.mxu0 0.0
    %949 = vmatpush1.msra.mxu0 0.0
    %950 = vmatprep.subr.mxu0 0.0
    %951 = vmatpush1.msra.mxu0 0.0
    %952 = vmatprep.subr.mxu0 0.0
    %953 = vmatpush1.msra.mxu0 0.0
    %954 = vmatprep.subr.mxu0 0.0
    %955 = vmatpush1.msra.mxu0 0.0
    %956 = vmatprep.subr.mxu0 0.0
    %957 = vmatpush1.msra.mxu0 0.0
    %958 = vmatprep.subr.mxu0 0.0
    %959 = vmatpush1.msra.mxu0 0.0
    %960 = vmatprep.subr.mxu0 0.0
    %961 = vmatpush1.msra.mxu0 0.0
    %962 = vmatprep.subr.mxu0 0.0
    %963 = vmatpush1.msra.mxu0 0.0
    %964 = vmatprep.subr.mxu0 0.0
    %965 = vmatpush1.msra.mxu0 0.0
    %966 = vmatprep.subr.mxu0 0.0
    %967 = vmatpush1.msra.mxu0 0.0
    %968 = vmatprep.subr.mxu0 0.0
    %969 = vmatpush1.msra.mxu0 0.0
    %970 = vmatprep.subr.mxu0 0.0
    %971 = vmatpush1.msra.mxu0 0.0
    %972 = vmatprep.subr.mxu0 0.0
    %973 = vmatpush1.msra.mxu0 0.0
    %974 = vmatprep.subr.mxu0 0.0
    %975 = vmatpush1.msra.mxu0 0.0
    %976 = vmatprep.subr.mxu0 0.0
    %977 = vmatpush1.msra.mxu0 0.0
    %978 = vmatprep.subr.mxu0 0.0
    %979 = vmatpush1.msra.mxu0 0.0
    %980 = vmatprep.subr.mxu0 0.0
    %981 = vmatpush1.msra.mxu0 0.0
    %982 = vmatprep.subr.mxu0 0.0
    %983 = vmatpush1.msra.mxu0 0.0
    %984 = vmatprep.subr.mxu0 0.0
    %985 = vmatpush1.msra.mxu0 0.0
    %986 = vmatprep.subr.mxu0 0.0
    %987 = vmatpush1.msra.mxu0 0.0
    %988 = vmatprep.subr.mxu0 0.0
    %989 = vmatpush1.msra.mxu0 0.0
    %990 = vmatprep.mubr.f32.mxu0 0.0
    %991 = vmatmul.mubr.f32.gmra.mrb[0].mxu0 %v879
    %v992 = vpop.f32.mrb[0].mxu0
    %v993 = vadd.f32 0.0, %v992
    %v994 = vpop.f32.mrb[0].mxu0
    %995 = vmatprep.mubr.f32.mxu0 0.0
    %996 = vmatmul.mubr.f32.gmra.mrb[0].mxu0 %v882
    %v997 = vpop.f32.mrb[0].mxu0
    %v998 = vadd.f32 0.0, %v997
    %v999 = vpop.f32.mrb[0].mxu0
    %1000 = vmatprep.mubr.f32.mxu0 0.0
    %1001 = vmatmul.mubr.f32.gmra.mrb[0].mxu0 %v885
    %v1002 = vpop.f32.mrb[0].mxu0
    %v1003 = vadd.f32 0.0, %v1002
    %v1004 = vpop.f32.mrb[0].mxu0
    %1005 = vmatprep.mubr.f32.mxu0 0.0
    %1006 = vmatmul.mubr.f32.gmra.mrb[0].mxu0 %v888
    %v1007 = vpop.f32.mrb[0].mxu0
    %v1008 = vadd.f32 0.0, %v1007
    %v1009 = vpop.f32.mrb[0].mxu0
    %1010 = vmatprep.mubr.f32.mxu0 0.0
    %1011 = vmatmul.mubr.f32.gmra.mrb[0].mxu0 %v891
    %v1012 = vpop.f32.mrb[0].mxu0
    %v1013 = vadd.f32 0.0, %v1012
    %v1014 = vpop.f32.mrb[0].mxu0
    %1015 = vmatprep.mubr.f32.mxu0 0.0
    %1016 = vmatmul.mubr.f32.gmra.mrb[0].mxu0 %v894
    %v1017 = vpop.f32.mrb[0].mxu0
    %v1018 = vadd.f32 0.0, %v1017
    %v1019 = vpop.f32.mrb[0].mxu0
    %1020 = vmatprep.mubr.f32.mxu0 0.0
    %1021 = vmatmul.mubr.f32.gmra.mrb[0].mxu0 %v897
    %v1022 = vpop.f32.mrb[0].mxu0
    %v1023 = vadd.f32 0.0, %v1022
    %v1024 = vpop.f32.mrb[0].mxu0
    %1025 = vmatprep.mubr.f32.mxu0 0.0
    %1026 = vmatmul.mubr.f32.gmra.mrb[0].mxu0 %v900
    %v1027 = vpop.f32.mrb[0].mxu0
    %v1028 = vadd.f32 0.0, %v1027
    %v1029 = vpop.f32.mrb[0].mxu0
    %1030 = vmatprep.mubr.f32.mxu0 0.0
    %1031 = vmatmul.mubr.f32.gmra.mrb[0].mxu0 %v903
    %v1032 = vpop.f32.mrb[0].mxu0
    %v1033 = vadd.f32 0.0, %v1032
    %v1034 = vpop.f32.mrb[0].mxu0
    %1035 = vmatprep.mubr.f32.mxu0 0.0
    %1036 = vmatmul.mubr.f32.gmra.mrb[0].mxu0 %v906
    %v1037 = vpop.f32.mrb[0].mxu0
    %v1038 = vadd.f32 0.0, %v1037
    %v1039 = vpop.f32.mrb[0].mxu0
    %1040 = vmatprep.mubr.f32.mxu0 0.0
    %1041 = vmatmul.mubr.f32.gmra.mrb[0].mxu0 %v909
    %v1042 = vpop.f32.mrb[0].mxu0
    %v1043 = vadd.f32 0.0, %v1042
    %v1044 = vpop.f32.mrb[0].mxu0
    %1045 = vmatprep.mubr.f32.mxu0 0.0
    %1046 = vmatmul.mubr.f32.gmra.mrb[0].mxu0 %v912
    %v1047 = vpop.f32.mrb[0].mxu0
    %v1048 = vadd.f32 0.0, %v1047
    %v1049 = vpop.f32.mrb[0].mxu0
    %1050 = vmatprep.mubr.f32.mxu0 0.0
    %1051 = vmatmul.mubr.f32.gmra.mrb[0].mxu0 %v915
    %v1052 = vpop.f32.mrb[0].mxu0
    %v1053 = vadd.f32 0.0, %v1052
    %v1054 = vpop.f32.mrb[0].mxu0
    %1055 = vmatprep.mubr.f32.mxu0 0.0
    %1056 = vmatmul.mubr.f32.gmra.mrb[0].mxu0 %v918
    %v1057 = vpop.f32.mrb[0].mxu0
    %v1058 = vadd.f32 0.0, %v1057
    %v1059 = vpop.f32.mrb[0].mxu0
    %1060 = vmatprep.mubr.f32.mxu0 0.0
    %1061 = vmatmul.mubr.f32.gmra.mrb[0].mxu0 %v921
    %v1062 = vpop.f32.mrb[0].mxu0
    %v1063 = vadd.f32 0.0, %v1062
    %v1064 = vpop.f32.mrb[0].mxu0
    %1065 = vmatprep.mubr.f32.mxu0 0.0
    %1066 = vmatmul.mubr.f32.gmra.mrb[0].mxu0 %v924
    %v1067 = vpop.f32.mrb[0].mxu0
    %v1068 = vadd.f32 0.0, %v1067
    %v1069 = vpop.f32.mrb[0].mxu0
    %1070 = vdwg.mxu0
    %vm1071 = vcmask 31744
    %v1072 = vsel %vm1071, %v993, -inf
    %v1073 = vrot.slane %v1072, 4
    %v1074 = vmax.f32 %v1072, %v1073
    %v1075 = vrot.slane %v1074, 2
    %v1076 = vmax.f32 %v1074, %v1075
    %v1077 = vrot.slane %v1076, 1
    %v1078 = vmax.f32 %v1076, %v1077
    %v1079 = vsel %vm1071, %v998, -inf
    %v1080 = vrot.slane %v1079, 4
    %v1081 = vmax.f32 %v1079, %v1080
    %v1082 = vrot.slane %v1081, 2
    %v1083 = vmax.f32 %v1081, %v1082
    %v1084 = vrot.slane %v1083, 1
    %v1085 = vmax.f32 %v1083, %v1084
    %v1086 = vsel %vm1071, %v1003, -inf
    %v1087 = vrot.slane %v1086, 4
    %v1088 = vmax.f32 %v1086, %v1087
    %v1089 = vrot.slane %v1088, 2
    %v1090 = vmax.f32 %v1088, %v1089
    %v1091 = vrot.slane %v1090, 1
    %v1092 = vmax.f32 %v1090, %v1091
    %v1093 = vsel %vm1071, %v1008, -inf
    %v1094 = vrot.slane %v1093, 4
    %v1095 = vmax.f32 %v1093, %v1094
    %v1096 = vrot.slane %v1095, 2
    %v1097 = vmax.f32 %v1095, %v1096
    %v1098 = vrot.slane %v1097, 1
    %v1099 = vmax.f32 %v1097, %v1098
    %v1100 = vsel %vm1071, %v1013, -inf
    %v1101 = vrot.slane %v1100, 4
    %v1102 = vmax.f32 %v1100, %v1101
    %v1103 = vrot.slane %v1102, 2
    %v1104 = vmax.f32 %v1102, %v1103
    %v1105 = vrot.slane %v1104, 1
    %v1106 = vmax.f32 %v1104, %v1105
    %v1107 = vsel %vm1071, %v1018, -inf
    %v1108 = vrot.slane %v1107, 4
    %v1109 = vmax.f32 %v1107, %v1108
    %v1110 = vrot.slane %v1109, 2
    %v1111 = vmax.f32 %v1109, %v1110
    %v1112 = vrot.slane %v1111, 1
    %v1113 = vmax.f32 %v1111, %v1112
    %v1114 = vsel %vm1071, %v1023, -inf
    %v1115 = vrot.slane %v1114, 4
    %v1116 = vmax.f32 %v1114, %v1115
    %v1117 = vrot.slane %v1116, 2
    %v1118 = vmax.f32 %v1116, %v1117
    %v1119 = vrot.slane %v1118, 1
    %v1120 = vmax.f32 %v1118, %v1119
    %v1121 = vsel %vm1071, %v1028, -inf
    %v1122 = vrot.slane %v1121, 4
    %v1123 = vmax.f32 %v1121, %v1122
    %v1124 = vrot.slane %v1123, 2
    %v1125 = vmax.f32 %v1123, %v1124
    %v1126 = vrot.slane %v1125, 1
    %v1127 = vmax.f32 %v1125, %v1126
    %v1128 = vsel %vm1071, %v1033, -inf
    %v1129 = vrot.slane %v1128, 4
    %v1130 = vmax.f32 %v1128, %v1129
    %v1131 = vrot.slane %v1130, 2
    %v1132 = vmax.f32 %v1130, %v1131
    %v1133 = vrot.slane %v1132, 1
    %v1134 = vmax.f32 %v1132, %v1133
    %v1135 = vsel %vm1071, %v1038, -inf
    %v1136 = vrot.slane %v1135, 4
    %v1137 = vmax.f32 %v1135, %v1136
    %v1138 = vrot.slane %v1137, 2
    %v1139 = vmax.f32 %v1137, %v1138
    %v1140 = vrot.slane %v1139, 1
    %v1141 = vmax.f32 %v1139, %v1140
    %v1142 = vsel %vm1071, %v1043, -inf
    %v1143 = vrot.slane %v1142, 4
    %v1144 = vmax.f32 %v1142, %v1143
    %v1145 = vrot.slane %v1144, 2
    %v1146 = vmax.f32 %v1144, %v1145
    %v1147 = vrot.slane %v1146, 1
    %v1148 = vmax.f32 %v1146, %v1147
    %v1149 = vsel %vm1071, %v1048, -inf
    %v1150 = vrot.slane %v1149, 4
    %v1151 = vmax.f32 %v1149, %v1150
    %v1152 = vrot.slane %v1151, 2
    %v1153 = vmax.f32 %v1151, %v1152
    %v1154 = vrot.slane %v1153, 1
    %v1155 = vmax.f32 %v1153, %v1154
    %v1156 = vsel %vm1071, %v1053, -inf
    %v1157 = vrot.slane %v1156, 4
    %v1158 = vmax.f32 %v1156, %v1157
    %v1159 = vrot.slane %v1158, 2
    %v1160 = vmax.f32 %v1158, %v1159
    %v1161 = vrot.slane %v1160, 1
    %v1162 = vmax.f32 %v1160, %v1161
    %v1163 = vsel %vm1071, %v1058, -inf
    %v1164 = vrot.slane %v1163, 4
    %v1165 = vmax.f32 %v1163, %v1164
    %v1166 = vrot.slane %v1165, 2
    %v1167 = vmax.f32 %v1165, %v1166
    %v1168 = vrot.slane %v1167, 1
    %v1169 = vmax.f32 %v1167, %v1168
    %v1170 = vsel %vm1071, %v1063, -inf
    %v1171 = vrot.slane %v1170, 4
    %v1172 = vmax.f32 %v1170, %v1171
    %v1173 = vrot.slane %v1172, 2
    %v1174 = vmax.f32 %v1172, %v1173
    %v1175 = vrot.slane %v1174, 1
    %v1176 = vmax.f32 %v1174, %v1175
    %v1177 = vsel %vm1071, %v1068, -inf
    %v1178 = vrot.slane %v1177, 4
    %v1179 = vmax.f32 %v1177, %v1178
    %v1180 = vrot.slane %v1179, 2
    %v1181 = vmax.f32 %v1179, %v1180
    %v1182 = vrot.slane %v1181, 1
    %v1183 = vmax.f32 %v1181, %v1182
    %v1186 = vrot.slane %v674, 1
    %v1187 = vrot.slane %v674, 2
    %v1188 = vrot.slane %v674, 3
    %v1189 = vrot.slane %v674, 4
    %v1190 = vrot.slane %v674, 5
    %v1191 = vrot.slane %v674, 6
    %v1192 = vrot.slane %v674, 7
    %v1193 = vrot.slane %v679, 1
    %v1194 = vrot.slane %v679, 2
    %v1195 = vrot.slane %v679, 3
    %v1196 = vrot.slane %v679, 4
    %v1197 = vrot.slane %v679, 5
    %v1198 = vrot.slane %v679, 6
    %v1199 = vrot.slane %v679, 7
    %v1216 = vmax.f32 %v1078, %v674
    %v1217 = vmax.f32 %v1085, %v1186
    %v1218 = vmax.f32 %v1092, %v1187
    %v1219 = vmax.f32 %v1099, %v1188
    %v1220 = vmax.f32 %v1106, %v1189
    %v1221 = vmax.f32 %v1113, %v1190
    %v1222 = vmax.f32 %v1120, %v1191
    %v1223 = vmax.f32 %v1127, %v1192
    %v1224 = vmax.f32 %v1134, %v679
    %v1225 = vmax.f32 %v1141, %v1193
    %v1226 = vmax.f32 %v1148, %v1194
    %v1227 = vmax.f32 %v1155, %v1195
    %v1228 = vmax.f32 %v1162, %v1196
    %v1229 = vmax.f32 %v1169, %v1197
    %v1230 = vmax.f32 %v1176, %v1198
    %v1231 = vmax.f32 %v1183, %v1199
    %v1248 = vrot.slane %v1217, 7
    %v1249 = vsel %vm267, %v1248, %v1216
    %v1250 = vrot.slane %v1218, 6
    %v1251 = vsel %vm270, %v1250, %v1249
    %v1252 = vrot.slane %v1219, 5
    %v1253 = vsel %vm273, %v1252, %v1251
    %v1254 = vrot.slane %v1220, 4
    %v1255 = vsel %vm276, %v1254, %v1253
    %v1256 = vrot.slane %v1221, 3
    %v1257 = vsel %vm279, %v1256, %v1255
    %v1258 = vrot.slane %v1222, 2
    %v1259 = vsel %vm282, %v1258, %v1257
    %v1260 = vrot.slane %v1223, 1
    %v1261 = vsel %vm285, %v1260, %v1259
    %v1262 = vrot.slane %v1225, 7
    %v1263 = vsel %vm267, %v1262, %v1224
    %v1264 = vrot.slane %v1226, 6
    %v1265 = vsel %vm270, %v1264, %v1263
    %v1266 = vrot.slane %v1227, 5
    %v1267 = vsel %vm273, %v1266, %v1265
    %v1268 = vrot.slane %v1228, 4
    %v1269 = vsel %vm276, %v1268, %v1267
    %v1270 = vrot.slane %v1229, 3
    %v1271 = vsel %vm279, %v1270, %v1269
    %v1272 = vrot.slane %v1230, 2
    %v1273 = vsel %vm282, %v1272, %v1271
    %v1274 = vrot.slane %v1231, 1
    %v1275 = vsel %vm285, %v1274, %v1273
    %v1278 = vsub.f32 %v674, %v1261
    %v1279 = vsub.f32 %v679, %v1275
    %v1280 = vmul.f32 %v1278, 1.442695
    %v1281 = vpow.pop %v1280
    %v1282 = vmul.f32 %v1279, 1.442695
    %v1283 = vpow.pop %v1282
    %v1284 = vlaneseq
    %v1285 = vshrl.u32 %v1284, 7
    %v1286 = vsub.s32 0, %v1285
    %v1287 = vrot.slane %v1216, %v1286
    %v1288 = vlaneseq
    %v1289 = vshrl.u32 %v1288, 7
    %v1290 = vsub.s32 0, %v1289
    %v1291 = vrot.slane %v1217, %v1290
    %v1292 = vlaneseq
    %v1293 = vshrl.u32 %v1292, 7
    %v1294 = vsub.s32 0, %v1293
    %v1295 = vrot.slane %v1218, %v1294
    %v1296 = vlaneseq
    %v1297 = vshrl.u32 %v1296, 7
    %v1298 = vsub.s32 0, %v1297
    %v1299 = vrot.slane %v1219, %v1298
    %v1300 = vlaneseq
    %v1301 = vshrl.u32 %v1300, 7
    %v1302 = vsub.s32 0, %v1301
    %v1303 = vrot.slane %v1220, %v1302
    %v1304 = vlaneseq
    %v1305 = vshrl.u32 %v1304, 7
    %v1306 = vsub.s32 0, %v1305
    %v1307 = vrot.slane %v1221, %v1306
    %v1308 = vlaneseq
    %v1309 = vshrl.u32 %v1308, 7
    %v1310 = vsub.s32 0, %v1309
    %v1311 = vrot.slane %v1222, %v1310
    %v1312 = vlaneseq
    %v1313 = vshrl.u32 %v1312, 7
    %v1314 = vsub.s32 0, %v1313
    %v1315 = vrot.slane %v1223, %v1314
    %v1316 = vlaneseq
    %v1317 = vshrl.u32 %v1316, 7
    %v1318 = vsub.s32 0, %v1317
    %v1319 = vrot.slane %v1224, %v1318
    %v1320 = vlaneseq
    %v1321 = vshrl.u32 %v1320, 7
    %v1322 = vsub.s32 0, %v1321
    %v1323 = vrot.slane %v1225, %v1322
    %v1324 = vlaneseq
    %v1325 = vshrl.u32 %v1324, 7
    %v1326 = vsub.s32 0, %v1325
    %v1327 = vrot.slane %v1226, %v1326
    %v1328 = vlaneseq
    %v1329 = vshrl.u32 %v1328, 7
    %v1330 = vsub.s32 0, %v1329
    %v1331 = vrot.slane %v1227, %v1330
    %v1332 = vlaneseq
    %v1333 = vshrl.u32 %v1332, 7
    %v1334 = vsub.s32 0, %v1333
    %v1335 = vrot.slane %v1228, %v1334
    %v1336 = vlaneseq
    %v1337 = vshrl.u32 %v1336, 7
    %v1338 = vsub.s32 0, %v1337
    %v1339 = vrot.slane %v1229, %v1338
    %v1340 = vlaneseq
    %v1341 = vshrl.u32 %v1340, 7
    %v1342 = vsub.s32 0, %v1341
    %v1343 = vrot.slane %v1230, %v1342
    %v1344 = vlaneseq
    %v1345 = vshrl.u32 %v1344, 7
    %v1346 = vsub.s32 0, %v1345
    %v1347 = vrot.slane %v1231, %v1346
    %v1348 = vsub.f32 %v993, %v1287
    %v1349 = vsub.f32 %v998, %v1291
    %v1350 = vsub.f32 %v1003, %v1295
    %v1351 = vsub.f32 %v1008, %v1299
    %v1352 = vsub.f32 %v1013, %v1303
    %v1353 = vsub.f32 %v1018, %v1307
    %v1354 = vsub.f32 %v1023, %v1311
    %v1355 = vsub.f32 %v1028, %v1315
    %v1356 = vsub.f32 %v1033, %v1319
    %v1357 = vsub.f32 %v1038, %v1323
    %v1358 = vsub.f32 %v1043, %v1327
    %v1359 = vsub.f32 %v1048, %v1331
    %v1360 = vsub.f32 %v1053, %v1335
    %v1361 = vsub.f32 %v1058, %v1339
    %v1362 = vsub.f32 %v1063, %v1343
    %v1363 = vsub.f32 %v1068, %v1347
    %v1364 = vmul.f32 %v1348, 1.442695
    %v1365 = vpow.pop %v1364
    %v1366 = vmul.f32 %v1349, 1.442695
    %v1367 = vpow.pop %v1366
    %v1368 = vmul.f32 %v1350, 1.442695
    %v1369 = vpow.pop %v1368
    %v1370 = vmul.f32 %v1351, 1.442695
    %v1371 = vpow.pop %v1370
    %v1372 = vmul.f32 %v1352, 1.442695
    %v1373 = vpow.pop %v1372
    %v1374 = vmul.f32 %v1353, 1.442695
    %v1375 = vpow.pop %v1374
    %v1376 = vmul.f32 %v1354, 1.442695
    %v1377 = vpow.pop %v1376
    %v1378 = vmul.f32 %v1355, 1.442695
    %v1379 = vpow.pop %v1378
    %v1380 = vmul.f32 %v1356, 1.442695
    %v1381 = vpow.pop %v1380
    %v1382 = vmul.f32 %v1357, 1.442695
    %v1383 = vpow.pop %v1382
    %v1384 = vmul.f32 %v1358, 1.442695
    %v1385 = vpow.pop %v1384
    %v1386 = vmul.f32 %v1359, 1.442695
    %v1387 = vpow.pop %v1386
    %v1388 = vmul.f32 %v1360, 1.442695
    %v1389 = vpow.pop %v1388
    %v1390 = vmul.f32 %v1361, 1.442695
    %v1391 = vpow.pop %v1390
    %v1392 = vmul.f32 %v1362, 1.442695
    %v1393 = vpow.pop %v1392
    %v1394 = vmul.f32 %v1363, 1.442695
    %v1395 = vpow.pop %v1394
    %v1396 = vsel %vm1071, %v1365, 0.0
    %v1397 = vrot.slane %v1396, 4
    %v1398 = vadd.f32 %v1396, %v1397
    %v1399 = vrot.slane %v1398, 2
    %v1400 = vadd.f32 %v1398, %v1399
    %v1401 = vrot.slane %v1400, 1
    %v1402 = vadd.f32 %v1400, %v1401
    %v1403 = vsel %vm1071, %v1367, 0.0
    %v1404 = vrot.slane %v1403, 4
    %v1405 = vadd.f32 %v1403, %v1404
    %v1406 = vrot.slane %v1405, 2
    %v1407 = vadd.f32 %v1405, %v1406
    %v1408 = vrot.slane %v1407, 1
    %v1409 = vadd.f32 %v1407, %v1408
    %v1410 = vsel %vm1071, %v1369, 0.0
    %v1411 = vrot.slane %v1410, 4
    %v1412 = vadd.f32 %v1410, %v1411
    %v1413 = vrot.slane %v1412, 2
    %v1414 = vadd.f32 %v1412, %v1413
    %v1415 = vrot.slane %v1414, 1
    %v1416 = vadd.f32 %v1414, %v1415
    %v1417 = vsel %vm1071, %v1371, 0.0
    %v1418 = vrot.slane %v1417, 4
    %v1419 = vadd.f32 %v1417, %v1418
    %v1420 = vrot.slane %v1419, 2
    %v1421 = vadd.f32 %v1419, %v1420
    %v1422 = vrot.slane %v1421, 1
    %v1423 = vadd.f32 %v1421, %v1422
    %v1424 = vsel %vm1071, %v1373, 0.0
    %v1425 = vrot.slane %v1424, 4
    %v1426 = vadd.f32 %v1424, %v1425
    %v1427 = vrot.slane %v1426, 2
    %v1428 = vadd.f32 %v1426, %v1427
    %v1429 = vrot.slane %v1428, 1
    %v1430 = vadd.f32 %v1428, %v1429
    %v1431 = vsel %vm1071, %v1375, 0.0
    %v1432 = vrot.slane %v1431, 4
    %v1433 = vadd.f32 %v1431, %v1432
    %v1434 = vrot.slane %v1433, 2
    %v1435 = vadd.f32 %v1433, %v1434
    %v1436 = vrot.slane %v1435, 1
    %v1437 = vadd.f32 %v1435, %v1436
    %v1438 = vsel %vm1071, %v1377, 0.0
    %v1439 = vrot.slane %v1438, 4
    %v1440 = vadd.f32 %v1438, %v1439
    %v1441 = vrot.slane %v1440, 2
    %v1442 = vadd.f32 %v1440, %v1441
    %v1443 = vrot.slane %v1442, 1
    %v1444 = vadd.f32 %v1442, %v1443
    %v1445 = vsel %vm1071, %v1379, 0.0
    %v1446 = vrot.slane %v1445, 4
    %v1447 = vadd.f32 %v1445, %v1446
    %v1448 = vrot.slane %v1447, 2
    %v1449 = vadd.f32 %v1447, %v1448
    %v1450 = vrot.slane %v1449, 1
    %v1451 = vadd.f32 %v1449, %v1450
    %v1452 = vsel %vm1071, %v1381, 0.0
    %v1453 = vrot.slane %v1452, 4
    %v1454 = vadd.f32 %v1452, %v1453
    %v1455 = vrot.slane %v1454, 2
    %v1456 = vadd.f32 %v1454, %v1455
    %v1457 = vrot.slane %v1456, 1
    %v1458 = vadd.f32 %v1456, %v1457
    %v1459 = vsel %vm1071, %v1383, 0.0
    %v1460 = vrot.slane %v1459, 4
    %v1461 = vadd.f32 %v1459, %v1460
    %v1462 = vrot.slane %v1461, 2
    %v1463 = vadd.f32 %v1461, %v1462
    %v1464 = vrot.slane %v1463, 1
    %v1465 = vadd.f32 %v1463, %v1464
    %v1466 = vsel %vm1071, %v1385, 0.0
    %v1467 = vrot.slane %v1466, 4
    %v1468 = vadd.f32 %v1466, %v1467
    %v1469 = vrot.slane %v1468, 2
    %v1470 = vadd.f32 %v1468, %v1469
    %v1471 = vrot.slane %v1470, 1
    %v1472 = vadd.f32 %v1470, %v1471
    %v1473 = vsel %vm1071, %v1387, 0.0
    %v1474 = vrot.slane %v1473, 4
    %v1475 = vadd.f32 %v1473, %v1474
    %v1476 = vrot.slane %v1475, 2
    %v1477 = vadd.f32 %v1475, %v1476
    %v1478 = vrot.slane %v1477, 1
    %v1479 = vadd.f32 %v1477, %v1478
    %v1480 = vsel %vm1071, %v1389, 0.0
    %v1481 = vrot.slane %v1480, 4
    %v1482 = vadd.f32 %v1480, %v1481
    %v1483 = vrot.slane %v1482, 2
    %v1484 = vadd.f32 %v1482, %v1483
    %v1485 = vrot.slane %v1484, 1
    %v1486 = vadd.f32 %v1484, %v1485
    %v1487 = vsel %vm1071, %v1391, 0.0
    %v1488 = vrot.slane %v1487, 4
    %v1489 = vadd.f32 %v1487, %v1488
    %v1490 = vrot.slane %v1489, 2
    %v1491 = vadd.f32 %v1489, %v1490
    %v1492 = vrot.slane %v1491, 1
    %v1493 = vadd.f32 %v1491, %v1492
    %v1494 = vsel %vm1071, %v1393, 0.0
    %v1495 = vrot.slane %v1494, 4
    %v1496 = vadd.f32 %v1494, %v1495
    %v1497 = vrot.slane %v1496, 2
    %v1498 = vadd.f32 %v1496, %v1497
    %v1499 = vrot.slane %v1498, 1
    %v1500 = vadd.f32 %v1498, %v1499
    %v1501 = vsel %vm1071, %v1395, 0.0
    %v1502 = vrot.slane %v1501, 4
    %v1503 = vadd.f32 %v1501, %v1502
    %v1504 = vrot.slane %v1503, 2
    %v1505 = vadd.f32 %v1503, %v1504
    %v1506 = vrot.slane %v1505, 1
    %v1507 = vadd.f32 %v1505, %v1506
    %v1524 = vsel %vm267, %v1409, %v1402
    %v1525 = vsel %vm270, %v1416, %v1524
    %v1526 = vsel %vm273, %v1423, %v1525
    %v1527 = vsel %vm276, %v1430, %v1526
    %v1528 = vsel %vm279, %v1437, %v1527
    %v1529 = vsel %vm282, %v1444, %v1528
    %v1530 = vsel %vm285, %v1451, %v1529
    %v1531 = vsel %vm267, %v1465, %v1458
    %v1532 = vsel %vm270, %v1472, %v1531
    %v1533 = vsel %vm273, %v1479, %v1532
    %v1534 = vsel %vm276, %v1486, %v1533
    %v1535 = vsel %vm279, %v1493, %v1534
    %v1536 = vsel %vm282, %v1500, %v1535
    %v1537 = vsel %vm285, %v1507, %v1536
    %v1540 = vadd.f32 %v1281, %v1530
    %v1541 = vadd.f32 %v1283, %v1537
    %v1542 = vrcp.pop %v1540
    %v1543 = vrcp.pop %v1541
    %v1544 = vmul.f32 %v1281, %v1542
    %v1545 = vmul.f32 %v1283, %v1543
    %v1547 = vsel %vm1071, %v1544, 0
    %v1550 = vsel %vm1071, %v1545, 0
    %vm1552 = vcmask 1043456
    %v1554 = vsel %vm1552, %v590, 0
    %1556 = vmatprep.subr.mxu0 0.0
    %1557 = vmatpush1.msra.mxu0 %v1554
    %1558 = vmatprep.subr.mxu0 0.0
    %1559 = vmatpush1.msra.mxu0 0.0
    %1560 = vmatprep.subr.mxu0 0.0
    %1561 = vmatpush1.msra.mxu0 0.0
    %1562 = vmatprep.subr.mxu0 0.0
    %1563 = vmatpush1.msra.mxu0 0.0
    %1564 = vmatprep.subr.mxu0 0.0
    %1565 = vmatpush1.msra.mxu0 0.0
    %1566 = vmatprep.subr.mxu0 0.0
    %1567 = vmatpush1.msra.mxu0 0.0
    %1568 = vmatprep.subr.mxu0 0.0
    %1569 = vmatpush1.msra.mxu0 0.0
    %1570 = vmatprep.subr.mxu0 0.0
    %1571 = vmatpush1.msra.mxu0 0.0
    %1572 = vmatprep.subr.mxu0 0.0
    %1573 = vmatpush1.msra.mxu0 0.0
    %1574 = vmatprep.subr.mxu0 0.0
    %1575 = vmatpush1.msra.mxu0 0.0
    %1576 = vmatprep.subr.mxu0 0.0
    %1577 = vmatpush1.msra.mxu0 0.0
    %1578 = vmatprep.subr.mxu0 0.0
    %1579 = vmatpush1.msra.mxu0 0.0
    %1580 = vmatprep.subr.mxu0 0.0
    %1581 = vmatpush1.msra.mxu0 0.0
    %1582 = vmatprep.subr.mxu0 0.0
    %1583 = vmatpush1.msra.mxu0 0.0
    %1584 = vmatprep.subr.mxu0 0.0
    %1585 = vmatpush1.msra.mxu0 0.0
    %1586 = vmatprep.subr.mxu0 0.0
    %1587 = vmatpush1.msra.mxu0 0.0
    %1588 = vmatprep.subr.mxu0 0.0
    %1589 = vmatpush1.msra.mxu0 0.0
    %1590 = vmatprep.subr.mxu0 0.0
    %1591 = vmatpush1.msra.mxu0 0.0
    %1592 = vmatprep.subr.mxu0 0.0
    %1593 = vmatpush1.msra.mxu0 0.0
    %1594 = vmatprep.subr.mxu0 0.0
    %1595 = vmatpush1.msra.mxu0 0.0
    %1596 = vmatprep.subr.mxu0 0.0
    %1597 = vmatpush1.msra.mxu0 0.0
    %1598 = vmatprep.subr.mxu0 0.0
    %1599 = vmatpush1.msra.mxu0 0.0
    %1600 = vmatprep.subr.mxu0 0.0
    %1601 = vmatpush1.msra.mxu0 0.0
    %1602 = vmatprep.subr.mxu0 0.0
    %1603 = vmatpush1.msra.mxu0 0.0
    %1604 = vmatprep.subr.mxu0 0.0
    %1605 = vmatpush1.msra.mxu0 0.0
    %1606 = vmatprep.subr.mxu0 0.0
    %1607 = vmatpush1.msra.mxu0 0.0
    %1608 = vmatprep.subr.mxu0 0.0
    %1609 = vmatpush1.msra.mxu0 0.0
    %1610 = vmatprep.subr.mxu0 0.0
    %1611 = vmatpush1.msra.mxu0 0.0
    %1612 = vmatprep.subr.mxu0 0.0
    %1613 = vmatpush1.msra.mxu0 0.0
    %1614 = vmatprep.subr.mxu0 0.0
    %1615 = vmatpush1.msra.mxu0 0.0
    %1616 = vmatprep.subr.mxu0 0.0
    %1617 = vmatpush1.msra.mxu0 0.0
    %1618 = vmatprep.subr.mxu0 0.0
    %1619 = vmatpush1.msra.mxu0 0.0
    %1620 = vmatprep.mubr.f32.mxu0 0.0
    %1621 = vmatmul.mubr.f32.gmra.mrb[0].mxu0 %v1547
    %v1622 = vpop.f32.mrb[0].mxu0
    %v1623 = vadd.f32 0.0, %v1622
    %v1624 = vpop.f32.mrb[0].mxu0
    %1625 = vmatprep.mubr.f32.mxu0 0.0
    %1626 = vmatmul.mubr.f32.gmra.mrb[0].mxu0 %v1550
    %v1627 = vpop.f32.mrb[0].mxu0
    %v1628 = vadd.f32 0.0, %v1627
    %v1629 = vpop.f32.mrb[0].mxu0
    %1630 = vdwg.mxu0
    %v1633 = vcombine.high %v1542, %v1542
    %v1635 = vunpack.c.l.s4 1966171168
    %v1636 = vunpack.c.0.s8 %v1635
    %v1637 = vlaneseq
    %v1638 = vshrl.u32 %v1637, 7
    %v1639 = vsub.s32 %v1636, %v1638
    %v1640 = vrot.slane %v1542, %v1639
    %v1642 = vunpack.c.l.s4 1966171168
    %v1643 = vunpack.c.0.s8 %v1642
    %v1644 = vlaneseq
    %v1645 = vshrl.u32 %v1644, 7
    %v1646 = vsub.s32 %v1643, %v1645
    %v1647 = vrot.slane %v1633, %v1646
    %v1648 = vcombine.high %v1640, %v1640
    %v1649 = vcombine.high %v1647, %v1647
    %v1651 = vunpack.c.l.s4 1966171168
    %v1652 = vunpack.c.0.s8 %v1651
    %v1653 = vlaneseq
    %v1654 = vshrl.u32 %v1653, 7
    %v1655 = vsub.s32 %v1652, %v1654
    %v1656 = vrot.slane %v1640, %v1655
    %v1658 = vunpack.c.l.s4 1966171168
    %v1659 = vunpack.c.0.s8 %v1658
    %v1660 = vlaneseq
    %v1661 = vshrl.u32 %v1660, 7
    %v1662 = vsub.s32 %v1659, %v1661
    %v1663 = vrot.slane %v1647, %v1662
    %v1665 = vunpack.c.l.s4 1966171168
    %v1666 = vunpack.c.0.s8 %v1665
    %v1667 = vlaneseq
    %v1668 = vshrl.u32 %v1667, 7
    %v1669 = vsub.s32 %v1666, %v1668
    %v1670 = vrot.slane %v1648, %v1669
    %v1672 = vunpack.c.l.s4 1966171168
    %v1673 = vunpack.c.0.s8 %v1672
    %v1674 = vlaneseq
    %v1675 = vshrl.u32 %v1674, 7
    %v1676 = vsub.s32 %v1673, %v1675
    %v1677 = vrot.slane %v1649, %v1676
    %v1678 = vcombine.high %v1656, %v1656
    %v1679 = vcombine.high %v1663, %v1663
    %v1680 = vcombine.high %v1670, %v1670
    %v1681 = vcombine.high %v1677, %v1677
    %v1682 = vcombine.high %v1543, %v1543
    %v1684 = vunpack.c.l.s4 1966171168
    %v1685 = vunpack.c.0.s8 %v1684
    %v1686 = vlaneseq
    %v1687 = vshrl.u32 %v1686, 7
    %v1688 = vsub.s32 %v1685, %v1687
    %v1689 = vrot.slane %v1543, %v1688
    %v1691 = vunpack.c.l.s4 1966171168
    %v1692 = vunpack.c.0.s8 %v1691
    %v1693 = vlaneseq
    %v1694 = vshrl.u32 %v1693, 7
    %v1695 = vsub.s32 %v1692, %v1694
    %v1696 = vrot.slane %v1682, %v1695
    %v1697 = vcombine.high %v1689, %v1689
    %v1698 = vcombine.high %v1696, %v1696
    %v1700 = vunpack.c.l.s4 1966171168
    %v1701 = vunpack.c.0.s8 %v1700
    %v1702 = vlaneseq
    %v1703 = vshrl.u32 %v1702, 7
    %v1704 = vsub.s32 %v1701, %v1703
    %v1705 = vrot.slane %v1689, %v1704
    %v1707 = vunpack.c.l.s4 1966171168
    %v1708 = vunpack.c.0.s8 %v1707
    %v1709 = vlaneseq
    %v1710 = vshrl.u32 %v1709, 7
    %v1711 = vsub.s32 %v1708, %v1710
    %v1712 = vrot.slane %v1696, %v1711
    %v1714 = vunpack.c.l.s4 1966171168
    %v1715 = vunpack.c.0.s8 %v1714
    %v1716 = vlaneseq
    %v1717 = vshrl.u32 %v1716, 7
    %v1718 = vsub.s32 %v1715, %v1717
    %v1719 = vrot.slane %v1697, %v1718
    %v1721 = vunpack.c.l.s4 1966171168
    %v1722 = vunpack.c.0.s8 %v1721
    %v1723 = vlaneseq
    %v1724 = vshrl.u32 %v1723, 7
    %v1725 = vsub.s32 %v1722, %v1724
    %v1726 = vrot.slane %v1698, %v1725
    %v1727 = vcombine.high %v1705, %v1705
    %v1728 = vcombine.high %v1712, %v1712
    %v1729 = vcombine.high %v1719, %v1719
    %v1730 = vcombine.high %v1726, %v1726
    %v1731 = vlaneseq
    %v1732 = vshrl.u32 %v1731, 7
    %v1733 = vsub.s32 0, %v1732
    %v1734 = vrot.slane %v1656, %v1733
    %v1735 = vlaneseq
    %v1736 = vshrl.u32 %v1735, 7
    %v1737 = vsub.s32 0, %v1736
    %v1738 = vrot.slane %v1670, %v1737
    %v1739 = vlaneseq
    %v1740 = vshrl.u32 %v1739, 7
    %v1741 = vsub.s32 0, %v1740
    %v1742 = vrot.slane %v1678, %v1741
    %v1743 = vlaneseq
    %v1744 = vshrl.u32 %v1743, 7
    %v1745 = vsub.s32 0, %v1744
    %v1746 = vrot.slane %v1680, %v1745
    %v1747 = vlaneseq
    %v1748 = vshrl.u32 %v1747, 7
    %v1749 = vsub.s32 0, %v1748
    %v1750 = vrot.slane %v1663, %v1749
    %v1751 = vlaneseq
    %v1752 = vshrl.u32 %v1751, 7
    %v1753 = vsub.s32 0, %v1752
    %v1754 = vrot.slane %v1677, %v1753
    %v1755 = vlaneseq
    %v1756 = vshrl.u32 %v1755, 7
    %v1757 = vsub.s32 0, %v1756
    %v1758 = vrot.slane %v1679, %v1757
    %v1759 = vlaneseq
    %v1760 = vshrl.u32 %v1759, 7
    %v1761 = vsub.s32 0, %v1760
    %v1762 = vrot.slane %v1681, %v1761
    %v1763 = vlaneseq
    %v1764 = vshrl.u32 %v1763, 7
    %v1765 = vsub.s32 0, %v1764
    %v1766 = vrot.slane %v1705, %v1765
    %v1767 = vlaneseq
    %v1768 = vshrl.u32 %v1767, 7
    %v1769 = vsub.s32 0, %v1768
    %v1770 = vrot.slane %v1719, %v1769
    %v1771 = vlaneseq
    %v1772 = vshrl.u32 %v1771, 7
    %v1773 = vsub.s32 0, %v1772
    %v1774 = vrot.slane %v1727, %v1773
    %v1775 = vlaneseq
    %v1776 = vshrl.u32 %v1775, 7
    %v1777 = vsub.s32 0, %v1776
    %v1778 = vrot.slane %v1729, %v1777
    %v1779 = vlaneseq
    %v1780 = vshrl.u32 %v1779, 7
    %v1781 = vsub.s32 0, %v1780
    %v1782 = vrot.slane %v1712, %v1781
    %v1783 = vlaneseq
    %v1784 = vshrl.u32 %v1783, 7
    %v1785 = vsub.s32 0, %v1784
    %v1786 = vrot.slane %v1726, %v1785
    %v1787 = vlaneseq
    %v1788 = vshrl.u32 %v1787, 7
    %v1789 = vsub.s32 0, %v1788
    %v1790 = vrot.slane %v1728, %v1789
    %v1791 = vlaneseq
    %v1792 = vshrl.u32 %v1791, 7
    %v1793 = vsub.s32 0, %v1792
    %v1794 = vrot.slane %v1730, %v1793
    %v1811 = vmul.f32 %v1365, %v1734
    %v1812 = vmul.f32 %v1367, %v1738
    %v1813 = vmul.f32 %v1369, %v1742
    %v1814 = vmul.f32 %v1371, %v1746
    %v1815 = vmul.f32 %v1373, %v1750
    %v1816 = vmul.f32 %v1375, %v1754
    %v1817 = vmul.f32 %v1377, %v1758
    %v1818 = vmul.f32 %v1379, %v1762
    %v1819 = vmul.f32 %v1381, %v1766
    %v1820 = vmul.f32 %v1383, %v1770
    %v1821 = vmul.f32 %v1385, %v1774
    %v1822 = vmul.f32 %v1387, %v1778
    %v1823 = vmul.f32 %v1389, %v1782
    %v1824 = vmul.f32 %v1391, %v1786
    %v1825 = vmul.f32 %v1393, %v1790
    %v1826 = vmul.f32 %v1395, %v1794
    %v1828 = vsel %vm1071, %v1811, 0
    %v1831 = vsel %vm1071, %v1812, 0
    %v1834 = vsel %vm1071, %v1813, 0
    %v1837 = vsel %vm1071, %v1814, 0
    %v1840 = vsel %vm1071, %v1815, 0
    %v1843 = vsel %vm1071, %v1816, 0
    %v1846 = vsel %vm1071, %v1817, 0
    %v1849 = vsel %vm1071, %v1818, 0
    %v1852 = vsel %vm1071, %v1819, 0
    %v1855 = vsel %vm1071, %v1820, 0
    %v1858 = vsel %vm1071, %v1821, 0
    %v1861 = vsel %vm1071, %v1822, 0
    %v1864 = vsel %vm1071, %v1823, 0
    %v1867 = vsel %vm1071, %v1824, 0
    %v1870 = vsel %vm1071, %v1825, 0
    %v1873 = vsel %vm1071, %v1826, 0
    %1875 = vmatprep.subr.mxu0 0.0
    %1876 = vmatpush1.msra.mxu0 %v1554
    %1877 = vmatprep.subr.mxu0 0.0
    %1878 = vmatpush1.msra.mxu0 0.0
    %1879 = vmatprep.subr.mxu0 0.0
    %1880 = vmatpush1.msra.mxu0 0.0
    %1881 = vmatprep.subr.mxu0 0.0
    %1882 = vmatpush1.msra.mxu0 0.0
    %1883 = vmatprep.subr.mxu0 0.0
    %1884 = vmatpush1.msra.mxu0 0.0
    %1885 = vmatprep.subr.mxu0 0.0
    %1886 = vmatpush1.msra.mxu0 0.0
    %1887 = vmatprep.subr.mxu0 0.0
    %1888 = vmatpush1.msra.mxu0 0.0
    %1889 = vmatprep.subr.mxu0 0.0
    %1890 = vmatpush1.msra.mxu0 0.0
    %1891 = vmatprep.subr.mxu0 0.0
    %1892 = vmatpush1.msra.mxu0 0.0
    %1893 = vmatprep.subr.mxu0 0.0
    %1894 = vmatpush1.msra.mxu0 0.0
    %1895 = vmatprep.subr.mxu0 0.0
    %1896 = vmatpush1.msra.mxu0 0.0
    %1897 = vmatprep.subr.mxu0 0.0
    %1898 = vmatpush1.msra.mxu0 0.0
    %1899 = vmatprep.subr.mxu0 0.0
    %1900 = vmatpush1.msra.mxu0 0.0
    %1901 = vmatprep.subr.mxu0 0.0
    %1902 = vmatpush1.msra.mxu0 0.0
    %1903 = vmatprep.subr.mxu0 0.0
    %1904 = vmatpush1.msra.mxu0 0.0
    %1905 = vmatprep.subr.mxu0 0.0
    %1906 = vmatpush1.msra.mxu0 0.0
    %1907 = vmatprep.subr.mxu0 0.0
    %1908 = vmatpush1.msra.mxu0 0.0
    %1909 = vmatprep.subr.mxu0 0.0
    %1910 = vmatpush1.msra.mxu0 0.0
    %1911 = vmatprep.subr.mxu0 0.0
    %1912 = vmatpush1.msra.mxu0 0.0
    %1913 = vmatprep.subr.mxu0 0.0
    %1914 = vmatpush1.msra.mxu0 0.0
    %1915 = vmatprep.subr.mxu0 0.0
    %1916 = vmatpush1.msra.mxu0 0.0
    %1917 = vmatprep.subr.mxu0 0.0
    %1918 = vmatpush1.msra.mxu0 0.0
    %1919 = vmatprep.subr.mxu0 0.0
    %1920 = vmatpush1.msra.mxu0 0.0
    %1921 = vmatprep.subr.mxu0 0.0
    %1922 = vmatpush1.msra.mxu0 0.0
    %1923 = vmatprep.subr.mxu0 0.0
    %1924 = vmatpush1.msra.mxu0 0.0
    %1925 = vmatprep.subr.mxu0 0.0
    %1926 = vmatpush1.msra.mxu0 0.0
    %1927 = vmatprep.subr.mxu0 0.0
    %1928 = vmatpush1.msra.mxu0 0.0
    %1929 = vmatprep.subr.mxu0 0.0
    %1930 = vmatpush1.msra.mxu0 0.0
    %1931 = vmatprep.subr.mxu0 0.0
    %1932 = vmatpush1.msra.mxu0 0.0
    %1933 = vmatprep.subr.mxu0 0.0
    %1934 = vmatpush1.msra.mxu0 0.0
    %1935 = vmatprep.subr.mxu0 0.0
    %1936 = vmatpush1.msra.mxu0 0.0
    %1937 = vmatprep.subr.mxu0 0.0
    %1938 = vmatpush1.msra.mxu0 0.0
    %1939 = vmatprep.mubr.f32.mxu0 0.0
    %1940 = vmatmul.mubr.f32.gmra.mrb[0].mxu0 %v1828
    %v1941 = vpop.f32.mrb[0].mxu0
    %v1942 = vadd.f32 0.0, %v1941
    %v1943 = vpop.f32.mrb[0].mxu0
    %1944 = vmatprep.mubr.f32.mxu0 0.0
    %1945 = vmatmul.mubr.f32.gmra.mrb[0].mxu0 %v1831
    %v1946 = vpop.f32.mrb[0].mxu0
    %v1947 = vadd.f32 0.0, %v1946
    %v1948 = vpop.f32.mrb[0].mxu0
    %1949 = vmatprep.mubr.f32.mxu0 0.0
    %1950 = vmatmul.mubr.f32.gmra.mrb[0].mxu0 %v1834
    %v1951 = vpop.f32.mrb[0].mxu0
    %v1952 = vadd.f32 0.0, %v1951
    %v1953 = vpop.f32.mrb[0].mxu0
    %1954 = vmatprep.mubr.f32.mxu0 0.0
    %1955 = vmatmul.mubr.f32.gmra.mrb[0].mxu0 %v1837
    %v1956 = vpop.f32.mrb[0].mxu0
    %v1957 = vadd.f32 0.0, %v1956
    %v1958 = vpop.f32.mrb[0].mxu0
    %1959 = vmatprep.mubr.f32.mxu0 0.0
    %1960 = vmatmul.mubr.f32.gmra.mrb[0].mxu0 %v1840
    %v1961 = vpop.f32.mrb[0].mxu0
    %v1962 = vadd.f32 0.0, %v1961
    %v1963 = vpop.f32.mrb[0].mxu0
    %1964 = vmatprep.mubr.f32.mxu0 0.0
    %1965 = vmatmul.mubr.f32.gmra.mrb[0].mxu0 %v1843
    %v1966 = vpop.f32.mrb[0].mxu0
    %v1967 = vadd.f32 0.0, %v1966
    %v1968 = vpop.f32.mrb[0].mxu0
    %1969 = vmatprep.mubr.f32.mxu0 0.0
    %1970 = vmatmul.mubr.f32.gmra.mrb[0].mxu0 %v1846
    %v1971 = vpop.f32.mrb[0].mxu0
    %v1972 = vadd.f32 0.0, %v1971
    %v1973 = vpop.f32.mrb[0].mxu0
    %1974 = vmatprep.mubr.f32.mxu0 0.0
    %1975 = vmatmul.mubr.f32.gmra.mrb[0].mxu0 %v1849
    %v1976 = vpop.f32.mrb[0].mxu0
    %v1977 = vadd.f32 0.0, %v1976
    %v1978 = vpop.f32.mrb[0].mxu0
    %1979 = vmatprep.mubr.f32.mxu0 0.0
    %1980 = vmatmul.mubr.f32.gmra.mrb[0].mxu0 %v1852
    %v1981 = vpop.f32.mrb[0].mxu0
    %v1982 = vadd.f32 0.0, %v1981
    %v1983 = vpop.f32.mrb[0].mxu0
    %1984 = vmatprep.mubr.f32.mxu0 0.0
    %1985 = vmatmul.mubr.f32.gmra.mrb[0].mxu0 %v1855
    %v1986 = vpop.f32.mrb[0].mxu0
    %v1987 = vadd.f32 0.0, %v1986
    %v1988 = vpop.f32.mrb[0].mxu0
    %1989 = vmatprep.mubr.f32.mxu0 0.0
    %1990 = vmatmul.mubr.f32.gmra.mrb[0].mxu0 %v1858
    %v1991 = vpop.f32.mrb[0].mxu0
    %v1992 = vadd.f32 0.0, %v1991
    %v1993 = vpop.f32.mrb[0].mxu0
    %1994 = vmatprep.mubr.f32.mxu0 0.0
    %1995 = vmatmul.mubr.f32.gmra.mrb[0].mxu0 %v1861
    %v1996 = vpop.f32.mrb[0].mxu0
    %v1997 = vadd.f32 0.0, %v1996
    %v1998 = vpop.f32.mrb[0].mxu0
    %1999 = vmatprep.mubr.f32.mxu0 0.0
    %2000 = vmatmul.mubr.f32.gmra.mrb[0].mxu0 %v1864
    %v2001 = vpop.f32.mrb[0].mxu0
    %v2002 = vadd.f32 0.0, %v2001
    %v2003 = vpop.f32.mrb[0].mxu0
    %2004 = vmatprep.mubr.f32.mxu0 0.0
    %2005 = vmatmul.mubr.f32.gmra.mrb[0].mxu0 %v1867
    %v2006 = vpop.f32.mrb[0].mxu0
    %v2007 = vadd.f32 0.0, %v2006
    %v2008 = vpop.f32.mrb[0].mxu0
    %2009 = vmatprep.mubr.f32.mxu0 0.0
    %2010 = vmatmul.mubr.f32.gmra.mrb[0].mxu0 %v1870
    %v2011 = vpop.f32.mrb[0].mxu0
    %v2012 = vadd.f32 0.0, %v2011
    %v2013 = vpop.f32.mrb[0].mxu0
    %2014 = vmatprep.mubr.f32.mxu0 0.0
    %2015 = vmatmul.mubr.f32.gmra.mrb[0].mxu0 %v1873
    %v2016 = vpop.f32.mrb[0].mxu0
    %v2017 = vadd.f32 0.0, %v2016
    %v2018 = vpop.f32.mrb[0].mxu0
    %2019 = vdwg.mxu0
    %2020 = vrot.lane.b32.xlu0 %v372, 64
    %v2021 = vpop.permute.xlu0 %2020
    %2022 = vrot.lane.b32.xlu0 %v377, 64
    %v2023 = vpop.permute.xlu0 %2022
    %v2026 = vmul.f32 %v1623, %v2021
    %v2027 = vmul.f32 %v1628, %v2023
    %2044 = vrot.lane.b32.xlu0 %v508, 96
    %v2045 = vpop.permute.xlu0 %2044
    %2046 = vrot.lane.b32.xlu0 %v513, 96
    %v2047 = vpop.permute.xlu0 %2046
    %2048 = vrot.lane.b32.xlu0 %v518, 96
    %v2049 = vpop.permute.xlu0 %2048
    %2050 = vrot.lane.b32.xlu0 %v523, 96
    %v2051 = vpop.permute.xlu0 %2050
    %2052 = vrot.lane.b32.xlu0 %v528, 96
    %v2053 = vpop.permute.xlu0 %2052
    %2054 = vrot.lane.b32.xlu0 %v533, 96
    %v2055 = vpop.permute.xlu0 %2054
    %2056 = vrot.lane.b32.xlu0 %v538, 96
    %v2057 = vpop.permute.xlu0 %2056
    %2058 = vrot.lane.b32.xlu0 %v543, 96
    %v2059 = vpop.permute.xlu0 %2058
    %2060 = vrot.lane.b32.xlu0 %v548, 96
    %v2061 = vpop.permute.xlu0 %2060
    %2062 = vrot.lane.b32.xlu0 %v553, 96
    %v2063 = vpop.permute.xlu0 %2062
    %2064 = vrot.lane.b32.xlu0 %v558, 96
    %v2065 = vpop.permute.xlu0 %2064
    %2066 = vrot.lane.b32.xlu0 %v563, 96
    %v2067 = vpop.permute.xlu0 %2066
    %2068 = vrot.lane.b32.xlu0 %v568, 96
    %v2069 = vpop.permute.xlu0 %2068
    %2070 = vrot.lane.b32.xlu0 %v573, 96
    %v2071 = vpop.permute.xlu0 %2070
    %2072 = vrot.lane.b32.xlu0 %v578, 96
    %v2073 = vpop.permute.xlu0 %2072
    %2074 = vrot.lane.b32.xlu0 %v583, 96
    %v2075 = vpop.permute.xlu0 %2074
    %v2092 = vmul.f32 %v1942, %v2045
    %v2093 = vmul.f32 %v1947, %v2047
    %v2094 = vmul.f32 %v1952, %v2049
    %v2095 = vmul.f32 %v1957, %v2051
    %v2096 = vmul.f32 %v1962, %v2053
    %v2097 = vmul.f32 %v1967, %v2055
    %v2098 = vmul.f32 %v1972, %v2057
    %v2099 = vmul.f32 %v1977, %v2059
    %v2100 = vmul.f32 %v1982, %v2061
    %v2101 = vmul.f32 %v1987, %v2063
    %v2102 = vmul.f32 %v1992, %v2065
    %v2103 = vmul.f32 %v1997, %v2067
    %v2104 = vmul.f32 %v2002, %v2069
    %v2105 = vmul.f32 %v2007, %v2071
    %v2106 = vmul.f32 %v2012, %v2073
    %v2107 = vmul.f32 %v2017, %v2075
    %v2108 = vsel %vm71, %v2092, 0.0
    %v2109 = vrot.slane %v2108, 4
    %v2110 = vadd.f32 %v2108, %v2109
    %v2111 = vrot.slane %v2110, 2
    %v2112 = vadd.f32 %v2110, %v2111
    %v2113 = vrot.slane %v2112, 1
    %v2114 = vadd.f32 %v2112, %v2113
    %v2115 = vsel %vm71, %v2093, 0.0
    %v2116 = vrot.slane %v2115, 4
    %v2117 = vadd.f32 %v2115, %v2116
    %v2118 = vrot.slane %v2117, 2
    %v2119 = vadd.f32 %v2117, %v2118
    %v2120 = vrot.slane %v2119, 1
    %v2121 = vadd.f32 %v2119, %v2120
    %v2122 = vsel %vm71, %v2094, 0.0
    %v2123 = vrot.slane %v2122, 4
    %v2124 = vadd.f32 %v2122, %v2123
    %v2125 = vrot.slane %v2124, 2
    %v2126 = vadd.f32 %v2124, %v2125
    %v2127 = vrot.slane %v2126, 1
    %v2128 = vadd.f32 %v2126, %v2127
    %v2129 = vsel %vm71, %v2095, 0.0
    %v2130 = vrot.slane %v2129, 4
    %v2131 = vadd.f32 %v2129, %v2130
    %v2132 = vrot.slane %v2131, 2
    %v2133 = vadd.f32 %v2131, %v2132
    %v2134 = vrot.slane %v2133, 1
    %v2135 = vadd.f32 %v2133, %v2134
    %v2136 = vsel %vm71, %v2096, 0.0
    %v2137 = vrot.slane %v2136, 4
    %v2138 = vadd.f32 %v2136, %v2137
    %v2139 = vrot.slane %v2138, 2
    %v2140 = vadd.f32 %v2138, %v2139
    %v2141 = vrot.slane %v2140, 1
    %v2142 = vadd.f32 %v2140, %v2141
    %v2143 = vsel %vm71, %v2097, 0.0
    %v2144 = vrot.slane %v2143, 4
    %v2145 = vadd.f32 %v2143, %v2144
    %v2146 = vrot.slane %v2145, 2
    %v2147 = vadd.f32 %v2145, %v2146
    %v2148 = vrot.slane %v2147, 1
    %v2149 = vadd.f32 %v2147, %v2148
    %v2150 = vsel %vm71, %v2098, 0.0
    %v2151 = vrot.slane %v2150, 4
    %v2152 = vadd.f32 %v2150, %v2151
    %v2153 = vrot.slane %v2152, 2
    %v2154 = vadd.f32 %v2152, %v2153
    %v2155 = vrot.slane %v2154, 1
    %v2156 = vadd.f32 %v2154, %v2155
    %v2157 = vsel %vm71, %v2099, 0.0
    %v2158 = vrot.slane %v2157, 4
    %v2159 = vadd.f32 %v2157, %v2158
    %v2160 = vrot.slane %v2159, 2
    %v2161 = vadd.f32 %v2159, %v2160
    %v2162 = vrot.slane %v2161, 1
    %v2163 = vadd.f32 %v2161, %v2162
    %v2164 = vsel %vm71, %v2100, 0.0
    %v2165 = vrot.slane %v2164, 4
    %v2166 = vadd.f32 %v2164, %v2165
    %v2167 = vrot.slane %v2166, 2
    %v2168 = vadd.f32 %v2166, %v2167
    %v2169 = vrot.slane %v2168, 1
    %v2170 = vadd.f32 %v2168, %v2169
    %v2171 = vsel %vm71, %v2101, 0.0
    %v2172 = vrot.slane %v2171, 4
    %v2173 = vadd.f32 %v2171, %v2172
    %v2174 = vrot.slane %v2173, 2
    %v2175 = vadd.f32 %v2173, %v2174
    %v2176 = vrot.slane %v2175, 1
    %v2177 = vadd.f32 %v2175, %v2176
    %v2178 = vsel %vm71, %v2102, 0.0
    %v2179 = vrot.slane %v2178, 4
    %v2180 = vadd.f32 %v2178, %v2179
    %v2181 = vrot.slane %v2180, 2
    %v2182 = vadd.f32 %v2180, %v2181
    %v2183 = vrot.slane %v2182, 1
    %v2184 = vadd.f32 %v2182, %v2183
    %v2185 = vsel %vm71, %v2103, 0.0
    %v2186 = vrot.slane %v2185, 4
    %v2187 = vadd.f32 %v2185, %v2186
    %v2188 = vrot.slane %v2187, 2
    %v2189 = vadd.f32 %v2187, %v2188
    %v2190 = vrot.slane %v2189, 1
    %v2191 = vadd.f32 %v2189, %v2190
    %v2192 = vsel %vm71, %v2104, 0.0
    %v2193 = vrot.slane %v2192, 4
    %v2194 = vadd.f32 %v2192, %v2193
    %v2195 = vrot.slane %v2194, 2
    %v2196 = vadd.f32 %v2194, %v2195
    %v2197 = vrot.slane %v2196, 1
    %v2198 = vadd.f32 %v2196, %v2197
    %v2199 = vsel %vm71, %v2105, 0.0
    %v2200 = vrot.slane %v2199, 4
    %v2201 = vadd.f32 %v2199, %v2200
    %v2202 = vrot.slane %v2201, 2
    %v2203 = vadd.f32 %v2201, %v2202
    %v2204 = vrot.slane %v2203, 1
    %v2205 = vadd.f32 %v2203, %v2204
    %v2206 = vsel %vm71, %v2106, 0.0
    %v2207 = vrot.slane %v2206, 4
    %v2208 = vadd.f32 %v2206, %v2207
    %v2209 = vrot.slane %v2208, 2
    %v2210 = vadd.f32 %v2208, %v2209
    %v2211 = vrot.slane %v2210, 1
    %v2212 = vadd.f32 %v2210, %v2211
    %v2213 = vsel %vm71, %v2107, 0.0
    %v2214 = vrot.slane %v2213, 4
    %v2215 = vadd.f32 %v2213, %v2214
    %v2216 = vrot.slane %v2215, 2
    %v2217 = vadd.f32 %v2215, %v2216
    %v2218 = vrot.slane %v2217, 1
    %v2219 = vadd.f32 %v2217, %v2218
    %v2236 = vsel %vm267, %v2121, %v2114
    %v2237 = vsel %vm270, %v2128, %v2236
    %v2238 = vsel %vm273, %v2135, %v2237
    %v2239 = vsel %vm276, %v2142, %v2238
    %v2240 = vsel %vm279, %v2149, %v2239
    %v2241 = vsel %vm282, %v2156, %v2240
    %v2242 = vsel %vm285, %v2163, %v2241
    %v2243 = vsel %vm267, %v2177, %v2170
    %v2244 = vsel %vm270, %v2184, %v2243
    %v2245 = vsel %vm273, %v2191, %v2244
    %v2246 = vsel %vm276, %v2198, %v2245
    %v2247 = vsel %vm279, %v2205, %v2246
    %v2248 = vsel %vm282, %v2212, %v2247
    %v2249 = vsel %vm285, %v2219, %v2248
    %v2252 = vadd.f32 %v2026, %v2242
    %v2253 = vadd.f32 %v2027, %v2249
    %v2254 = vld [vmem:[%s7] sm:$0xff]
    %v2255 = vld [vmem:[%s7 + $0x8] sm:$0xff]
    %v2256 = vld [vmem:[%s7 + $0x10] sm:$0xff]
    %v2257 = vld [vmem:[%s7 + $0x18] sm:$0xff]
    %v2258 = vld [vmem:[%s8] sm:$0x1]
    %v2260 = vlaneseq
    %v2261 = vshrl.u32 %v2260, 7
    %v2262 = vsub.s32 0, %v2261
    %v2263 = vrot.slane %v2258, %v2262
    %v2266 = vsel %vm71, %v2252, 0
    %v2269 = vsel %vm71, %v2253, 0
    %2271 = vmatprep.subr.mxu0 0.0
    %2272 = vmatpush1.msra.mxu0 %v2254
    %2273 = vmatprep.subr.mxu0 0.0
    %2274 = vmatpush1.msra.mxu0 %v2255
    %2275 = vmatprep.subr.mxu0 0.0
    %2276 = vmatpush1.msra.mxu0 %v2256
    %2277 = vmatprep.subr.mxu0 0.0
    %2278 = vmatpush1.msra.mxu0 %v2257
    %2279 = vmatprep.subr.mxu0 0.0
    %2280 = vmatpush1.msra.mxu0 0.0
    %2281 = vmatprep.subr.mxu0 0.0
    %2282 = vmatpush1.msra.mxu0 0.0
    %2283 = vmatprep.subr.mxu0 0.0
    %2284 = vmatpush1.msra.mxu0 0.0
    %2285 = vmatprep.subr.mxu0 0.0
    %2286 = vmatpush1.msra.mxu0 0.0
    %2287 = vmatprep.subr.mxu0 0.0
    %2288 = vmatpush1.msra.mxu0 0.0
    %2289 = vmatprep.subr.mxu0 0.0
    %2290 = vmatpush1.msra.mxu0 0.0
    %2291 = vmatprep.subr.mxu0 0.0
    %2292 = vmatpush1.msra.mxu0 0.0
    %2293 = vmatprep.subr.mxu0 0.0
    %2294 = vmatpush1.msra.mxu0 0.0
    %2295 = vmatprep.subr.mxu0 0.0
    %2296 = vmatpush1.msra.mxu0 0.0
    %2297 = vmatprep.subr.mxu0 0.0
    %2298 = vmatpush1.msra.mxu0 0.0
    %2299 = vmatprep.subr.mxu0 0.0
    %2300 = vmatpush1.msra.mxu0 0.0
    %2301 = vmatprep.subr.mxu0 0.0
    %2302 = vmatpush1.msra.mxu0 0.0
    %2303 = vmatprep.subr.mxu0 0.0
    %2304 = vmatpush1.msra.mxu0 0.0
    %2305 = vmatprep.subr.mxu0 0.0
    %2306 = vmatpush1.msra.mxu0 0.0
    %2307 = vmatprep.subr.mxu0 0.0
    %2308 = vmatpush1.msra.mxu0 0.0
    %2309 = vmatprep.subr.mxu0 0.0
    %2310 = vmatpush1.msra.mxu0 0.0
    %2311 = vmatprep.subr.mxu0 0.0
    %2312 = vmatpush1.msra.mxu0 0.0
    %2313 = vmatprep.subr.mxu0 0.0
    %2314 = vmatpush1.msra.mxu0 0.0
    %2315 = vmatprep.subr.mxu0 0.0
    %2316 = vmatpush1.msra.mxu0 0.0
    %2317 = vmatprep.subr.mxu0 0.0
    %2318 = vmatpush1.msra.mxu0 0.0
    %2319 = vmatprep.subr.mxu0 0.0
    %2320 = vmatpush1.msra.mxu0 0.0
    %2321 = vmatprep.subr.mxu0 0.0
    %2322 = vmatpush1.msra.mxu0 0.0
    %2323 = vmatprep.subr.mxu0 0.0
    %2324 = vmatpush1.msra.mxu0 0.0
    %2325 = vmatprep.subr.mxu0 0.0
    %2326 = vmatpush1.msra.mxu0 0.0
    %2327 = vmatprep.subr.mxu0 0.0
    %2328 = vmatpush1.msra.mxu0 0.0
    %2329 = vmatprep.subr.mxu0 0.0
    %2330 = vmatpush1.msra.mxu0 0.0
    %2331 = vmatprep.subr.mxu0 0.0
    %2332 = vmatpush1.msra.mxu0 0.0
    %2333 = vmatprep.subr.mxu0 0.0
    %2334 = vmatpush1.msra.mxu0 0.0
    %2335 = vmatprep.mubr.f32.mxu0 0.0
    %2336 = vmatmul.mubr.f32.gmra.mrb[0].mxu0 %v2266
    %v2337 = vpop.f32.mrb[0].mxu0
    %v2338 = vadd.f32 %v2263, %v2337
    %v2339 = vpop.f32.mrb[0].mxu0
    %2340 = vmatprep.mubr.f32.mxu0 0.0
    %2341 = vmatmul.mubr.f32.gmra.mrb[0].mxu0 %v2269
    %v2342 = vpop.f32.mrb[0].mxu0
    %v2343 = vadd.f32 %v2263, %v2342
    %v2344 = vpop.f32.mrb[0].mxu0
    %2345 = vdwg.mxu0
    %vm2346 = vcmask 130048
    %2347 = vst.msk [vmem:[#allocation5] sm:$0xff] %vm2346, %v2338
    %2348 = vst.msk [vmem:[#allocation5 + $0x8] sm:$0xff] %vm2346, %v2343
    // Predicated region
    $region50: #{tpu_custom_call.1} parent=1 // pred_check
      _
    $region51: #{tpu_custom_call.1} parent=1 // pred_check_branch
      %2350 = sbr.rel (0) target = $region53
    $region52: #{tpu_custom_call.1} parent=1 // pred_region
      %s2352 = ssub.s32 256, 256
      %2353 = vsyncadd [#allocation4], %s2352
      %s2354 = sshll.u32 [#allocation5], 4
      %s2355 = int_to_ptr.vmem [resolvable:$true] %s2354
      %2360 = dma.vmem_to_hbm [thread:$0]  %s2355, 256, %s11, [#allocation4], 128, 128, 8
    $region53: #{tpu_custom_call.1} parent=1 // pred_fallthru
      _
    // Predicated region
    $region54: #{tpu_custom_call.1} parent=1 // pred_check
      _
    $region55: #{tpu_custom_call.1} parent=1 // pred_check_branch
      %2362 = sbr.rel (0) target = $region57
    $region56: #{tpu_custom_call.1} parent=1 // pred_region
      %2363 = dma.done [#allocation4], 256
    $region57: #{tpu_custom_call.1} parent=1 // pred_fallthru
      _
    %2364 = vsyncpa [#allocation3], 1
    %2365 = vsyncpa [#allocation4], 1

// kernel: tpu_custom_call.1
$region0: #{tpu_custom_call.1}
  #allocation0 [shape = 'u32[]', space=smem, size = 0x4, offset = 0x4, fixed_abs, tag = 'smem constant byte address 0x4 - core index']
  #allocation1 [shape = 'u32[144,128]{1,0:T(1,128)}', space=vmem, size = 0x12000, scoped, tag = 'internal scratch']
  %s0 = inlined_call_operand.hbm [shape: f32[16,8,32], index: 0, kind: input, shape index: {}]
  %s1 = inlined_call_operand.vmem [shape: f32[1,32], index: 1, kind: input, shape index: {}]
  %s2 = inlined_call_operand.vmem [shape: f32[8,32], index: 2, kind: input, shape index: {}]
  %s3 = inlined_call_operand.vmem [shape: f32[32,96], index: 3, kind: input, shape index: {}]
  %s4 = inlined_call_operand.vmem [shape: f32[1,96], index: 4, kind: input, shape index: {}]
  %s5 = inlined_call_operand.vmem [shape: f32[32,64], index: 5, kind: input, shape index: {}]
  %s6 = inlined_call_operand.vmem [shape: f32[1,64], index: 6, kind: input, shape index: {}]
  %s7 = inlined_call_operand.vmem [shape: f32[32,16], index: 7, kind: input, shape index: {}]
  %s8 = inlined_call_operand.vmem [shape: f32[1,16], index: 8, kind: input, shape index: {}]
  %s9 = inlined_call_operand.vmem [shape: f32[32,4], index: 9, kind: input, shape index: {}]
  %s10 = inlined_call_operand.vmem [shape: f32[4,32], index: 10, kind: input, shape index: {}]
  %s11 = inlined_call_operand.hbm [shape: f32[16,16], index: 11, kind: output, shape index: {}]
  %s12 = sld [smem:[#allocation0]]
  $region58: #{tpu_custom_call.1} parent=0
    _
  %s14 = ssub.s32 1, %s12
  %s15 = scalar_select 0, %s14, %s12
  $region1: #{tpu_custom_call.1} parent=0
    #allocation2 [shape = 'u8[65536]{0}', space=vmem, size = 0x10000, scoped, tag = 'input window, operand 0, single buffered']
    #allocation3 [shape = 's32[1]{0}', space=sflag, size = 0x4, scoped, tag = 'scoped memory for tpu_custom_call.1']
    #allocation4 [shape = 's32[1]{0}', space=sflag, size = 0x4, scoped, tag = 'scoped memory for tpu_custom_call.1']
    #allocation5 [shape = 'u8[8192]{0}', space=vmem, size = 0x2000, scoped, tag = 'output window, operand 0, single buffered']
    %16 = vsyncpa [#allocation3], 0
    %17 = vsyncpa [#allocation4], 0
    // Predicated region
    $region2: #{tpu_custom_call.1} parent=1 // pred_check
      _
    $region3: #{tpu_custom_call.1} parent=1 // pred_check_branch
      %19 = sbr.rel (0) target = $region5
    $region4: #{tpu_custom_call.1} parent=1 // pred_region
      %s21 = ssub.s32 2048, 2048
      %22 = vsyncadd [#allocation3], %s21
      %s23 = sshll.u32 [#allocation2], 4
      %s24 = int_to_ptr.vmem [resolvable:$true] %s23
      %29 = dma.hbm_to_vmem [thread:$0]  %s0, 2048, %s24, [#allocation3], 128, 128, 8
    $region5: #{tpu_custom_call.1} parent=1 // pred_fallthru
      _
    // Predicated region
    $region6: #{tpu_custom_call.1} parent=1 // pred_check
      _
    $region7: #{tpu_custom_call.1} parent=1 // pred_check_branch
      %31 = sbr.rel (0) target = $region9
    $region8: #{tpu_custom_call.1} parent=1 // pred_region
      _
    $region9: #{tpu_custom_call.1} parent=1 // pred_fallthru
      _
    // Predicated region
    $region10: #{tpu_custom_call.1} parent=1 // pred_check
      _
    $region11: #{tpu_custom_call.1} parent=1 // pred_check_branch
      %33 = sbr.rel (0) target = $region13
    $region12: #{tpu_custom_call.1} parent=1 // pred_region
      _
    $region13: #{tpu_custom_call.1} parent=1 // pred_fallthru
      _
    // Predicated region
    $region14: #{tpu_custom_call.1} parent=1 // pred_check
      _
    $region15: #{tpu_custom_call.1} parent=1 // pred_check_branch
      %35 = sbr.rel (0) target = $region17
    $region16: #{tpu_custom_call.1} parent=1 // pred_region
      _
    $region17: #{tpu_custom_call.1} parent=1 // pred_fallthru
      _
    // Predicated region
    $region18: #{tpu_custom_call.1} parent=1 // pred_check
      _
    $region19: #{tpu_custom_call.1} parent=1 // pred_check_branch
      %37 = sbr.rel (0) target = $region21
    $region20: #{tpu_custom_call.1} parent=1 // pred_region
      _
    $region21: #{tpu_custom_call.1} parent=1 // pred_fallthru
      _
    // Predicated region
    $region22: #{tpu_custom_call.1} parent=1 // pred_check
      _
    $region23: #{tpu_custom_call.1} parent=1 // pred_check_branch
      %39 = sbr.rel (0) target = $region25
    $region24: #{tpu_custom_call.1} parent=1 // pred_region
      _
    $region25: #{tpu_custom_call.1} parent=1 // pred_fallthru
      _
    // Predicated region
    $region26: #{tpu_custom_call.1} parent=1 // pred_check
      _
    $region27: #{tpu_custom_call.1} parent=1 // pred_check_branch
      %41 = sbr.rel (0) target = $region29
    $region28: #{tpu_custom_call.1} parent=1 // pred_region
      _
    $region29: #{tpu_custom_call.1} parent=1 // pred_fallthru
      _
    // Predicated region
    $region30: #{tpu_custom_call.1} parent=1 // pred_check
      _
    $region31: #{tpu_custom_call.1} parent=1 // pred_check_branch
      %43 = sbr.rel (0) target = $region33
    $region32: #{tpu_custom_call.1} parent=1 // pred_region
      _
    $region33: #{tpu_custom_call.1} parent=1 // pred_fallthru
      _
    // Predicated region
    $region34: #{tpu_custom_call.1} parent=1 // pred_check
      _
    $region35: #{tpu_custom_call.1} parent=1 // pred_check_branch
      %45 = sbr.rel (0) target = $region37
    $region36: #{tpu_custom_call.1} parent=1 // pred_region
      _
    $region37: #{tpu_custom_call.1} parent=1 // pred_fallthru
      _
    // Predicated region
    $region38: #{tpu_custom_call.1} parent=1 // pred_check
      _
    $region39: #{tpu_custom_call.1} parent=1 // pred_check_branch
      %47 = sbr.rel (0) target = $region41
    $region40: #{tpu_custom_call.1} parent=1 // pred_region
      _
    $region41: #{tpu_custom_call.1} parent=1 // pred_fallthru
      _
    // Predicated region
    $region42: #{tpu_custom_call.1} parent=1 // pred_check
      _
    $region43: #{tpu_custom_call.1} parent=1 // pred_check_branch
      %49 = sbr.rel (0) target = $region45
    $region44: #{tpu_custom_call.1} parent=1 // pred_region
      _
    $region45: #{tpu_custom_call.1} parent=1 // pred_fallthru
      _
    // Predicated region
    $region46: #{tpu_custom_call.1} parent=1 // pred_check
      _
    $region47: #{tpu_custom_call.1} parent=1 // pred_check_branch
      %51 = sbr.rel (0) target = $region49
    $region48: #{tpu_custom_call.1} parent=1 // pred_region
      %52 = dma.done [#allocation3], 2048
    $region49: #{tpu_custom_call.1} parent=1 // pred_fallthru
      _
    %v53 = vld [vmem:[#allocation2] sm:$0xff]
    %v54 = vld [vmem:[#allocation2 + $0x8] sm:$0xff]
    %v55 = vld [vmem:[#allocation2 + $0x10] sm:$0xff]
    %v56 = vld [vmem:[#allocation2 + $0x18] sm:$0xff]
    %v57 = vld [vmem:[#allocation2 + $0x20] sm:$0xff]
    %v58 = vld [vmem:[#allocation2 + $0x28] sm:$0xff]
    %v59 = vld [vmem:[#allocation2 + $0x30] sm:$0xff]
    %v60 = vld [vmem:[#allocation2 + $0x38] sm:$0xff]
    %v61 = vld [vmem:[#allocation2 + $0x40] sm:$0xff]
    %v62 = vld [vmem:[#allocation2 + $0x48] sm:$0xff]
    %v63 = vld [vmem:[#allocation2 + $0x50] sm:$0xff]
    %v64 = vld [vmem:[#allocation2 + $0x58] sm:$0xff]
    %v65 = vld [vmem:[#allocation2 + $0x60] sm:$0xff]
    %v66 = vld [vmem:[#allocation2 + $0x68] sm:$0xff]
    %v67 = vld [vmem:[#allocation2 + $0x70] sm:$0xff]
    %v68 = vld [vmem:[#allocation2 + $0x78] sm:$0xff]
    %v69 = vld [vmem:[%s1] sm:$0x1]
    %v70 = vld [vmem:[%s2] sm:$0xff]
    %vm71 = vcmask 261120
    %v72 = vsel %vm71, %v53, 0.0
    %v73 = vrot.slane %v72, 4
    %v74 = vadd.f32 %v72, %v73
    %v75 = vrot.slane %v74, 2
    %v76 = vadd.f32 %v74, %v75
    %v77 = vrot.slane %v76, 1
    %v78 = vadd.f32 %v76, %v77
    %v79 = vsel %vm71, %v54, 0.0
    %v80 = vrot.slane %v79, 4
    %v81 = vadd.f32 %v79, %v80
    %v82 = vrot.slane %v81, 2
    %v83 = vadd.f32 %v81, %v82
    %v84 = vrot.slane %v83, 1
    %v85 = vadd.f32 %v83, %v84
    %v86 = vsel %vm71, %v55, 0.0
    %v87 = vrot.slane %v86, 4
    %v88 = vadd.f32 %v86, %v87
    %v89 = vrot.slane %v88, 2
    %v90 = vadd.f32 %v88, %v89
    %v91 = vrot.slane %v90, 1
    %v92 = vadd.f32 %v90, %v91
    %v93 = vsel %vm71, %v56, 0.0
    %v94 = vrot.slane %v93, 4
    %v95 = vadd.f32 %v93, %v94
    %v96 = vrot.slane %v95, 2
    %v97 = vadd.f32 %v95, %v96
    %v98 = vrot.slane %v97, 1
    %v99 = vadd.f32 %v97, %v98
    %v100 = vsel %vm71, %v57, 0.0
    %v101 = vrot.slane %v100, 4
    %v102 = vadd.f32 %v100, %v101
    %v103 = vrot.slane %v102, 2
    %v104 = vadd.f32 %v102, %v103
    %v105 = vrot.slane %v104, 1
    %v106 = vadd.f32 %v104, %v105
    %v107 = vsel %vm71, %v58, 0.0
    %v108 = vrot.slane %v107, 4
    %v109 = vadd.f32 %v107, %v108
    %v110 = vrot.slane %v109, 2
    %v111 = vadd.f32 %v109, %v110
    %v112 = vrot.slane %v111, 1
    %v113 = vadd.f32 %v111, %v112
    %v114 = vsel %vm71, %v59, 0.0
    %v115 = vrot.slane %v114, 4
    %v116 = vadd.f32 %v114, %v115
    %v117 = vrot.slane %v116, 2
    %v118 = vadd.f32 %v116, %v117
    %v119 = vrot.slane %v118, 1
    %v120 = vadd.f32 %v118, %v119
    %v121 = vsel %vm71, %v60, 0.0
    %v122 = vrot.slane %v121, 4
    %v123 = vadd.f32 %v121, %v122
    %v124 = vrot.slane %v123, 2
    %v125 = vadd.f32 %v123, %v124
    %v126 = vrot.slane %v125, 1
    %v127 = vadd.f32 %v125, %v126
    %v128 = vsel %vm71, %v61, 0.0
    %v129 = vrot.slane %v128, 4
    %v130 = vadd.f32 %v128, %v129
    %v131 = vrot.slane %v130, 2
    %v132 = vadd.f32 %v130, %v131
    %v133 = vrot.slane %v132, 1
    %v134 = vadd.f32 %v132, %v133
    %v135 = vsel %vm71, %v62, 0.0
    %v136 = vrot.slane %v135, 4
    %v137 = vadd.f32 %v135, %v136
    %v138 = vrot.slane %v137, 2
    %v139 = vadd.f32 %v137, %v138
    %v140 = vrot.slane %v139, 1
    %v141 = vadd.f32 %v139, %v140
    %v142 = vsel %vm71, %v63, 0.0
    %v143 = vrot.slane %v142, 4
    %v144 = vadd.f32 %v142, %v143
    %v145 = vrot.slane %v144, 2
    %v146 = vadd.f32 %v144, %v145
    %v147 = vrot.slane %v146, 1
    %v148 = vadd.f32 %v146, %v147
    %v149 = vsel %vm71, %v64, 0.0
    %v150 = vrot.slane %v149, 4
    %v151 = vadd.f32 %v149, %v150
    %v152 = vrot.slane %v151, 2
    %v153 = vadd.f32 %v151, %v152
    %v154 = vrot.slane %v153, 1
    %v155 = vadd.f32 %v153, %v154
    %v156 = vsel %vm71, %v65, 0.0
    %v157 = vrot.slane %v156, 4
    %v158 = vadd.f32 %v156, %v157
    %v159 = vrot.slane %v158, 2
    %v160 = vadd.f32 %v158, %v159
    %v161 = vrot.slane %v160, 1
    %v162 = vadd.f32 %v160, %v161
    %v163 = vsel %vm71, %v66, 0.0
    %v164 = vrot.slane %v163, 4
    %v165 = vadd.f32 %v163, %v164
    %v166 = vrot.slane %v165, 2
    %v167 = vadd.f32 %v165, %v166
    %v168 = vrot.slane %v167, 1
    %v169 = vadd.f32 %v167, %v168
    %v170 = vsel %vm71, %v67, 0.0
    %v171 = vrot.slane %v170, 4
    %v172 = vadd.f32 %v170, %v171
    %v173 = vrot.slane %v172, 2
    %v174 = vadd.f32 %v172, %v173
    %v175 = vrot.slane %v174, 1
    %v176 = vadd.f32 %v174, %v175
    %v177 = vsel %vm71, %v68, 0.0
    %v178 = vrot.slane %v177, 4
    %v179 = vadd.f32 %v177, %v178
    %v180 = vrot.slane %v179, 2
    %v181 = vadd.f32 %v179, %v180
    %v182 = vrot.slane %v181, 1
    %v183 = vadd.f32 %v181, %v182
    %v184 = vrcp.pop 8.0
    %v185 = vmul.f32 %v78, %v184
    %v186 = vmul.f32 %v85, %v184
    %v187 = vmul.f32 %v92, %v184
    %v188 = vmul.f32 %v99, %v184
    %v189 = vmul.f32 %v106, %v184
    %v190 = vmul.f32 %v113, %v184
    %v191 = vmul.f32 %v120, %v184
    %v192 = vmul.f32 %v127, %v184
    %v193 = vmul.f32 %v134, %v184
    %v194 = vmul.f32 %v141, %v184
    %v195 = vmul.f32 %v148, %v184
    %v196 = vmul.f32 %v155, %v184
    %v197 = vmul.f32 %v162, %v184
    %v198 = vmul.f32 %v169, %v184
    %v199 = vmul.f32 %v176, %v184
    %v200 = vmul.f32 %v183, %v184
    %v202 = vlaneseq
    %v203 = vshrl.u32 %v202, 7
    %v204 = vsub.s32 0, %v203
    %v205 = vrot.slane %v69, %v204
    %v207 = vadd.f32 %v185, %v205
    %v208 = vadd.f32 %v186, %v205
    %v209 = vadd.f32 %v187, %v205
    %v210 = vadd.f32 %v188, %v205
    %v211 = vadd.f32 %v189, %v205
    %v212 = vadd.f32 %v190, %v205
    %v213 = vadd.f32 %v191, %v205
    %v214 = vadd.f32 %v192, %v205
    %v215 = vadd.f32 %v193, %v205
    %v216 = vadd.f32 %v194, %v205
    %v217 = vadd.f32 %v195, %v205
    %v218 = vadd.f32 %v196, %v205
    %v219 = vadd.f32 %v197, %v205
    %v220 = vadd.f32 %v198, %v205
    %v221 = vadd.f32 %v199, %v205
    %v222 = vadd.f32 %v200, %v205
    %v223 = vadd.f32 %v53, %v70
    %v224 = vadd.f32 %v54, %v70
    %v225 = vadd.f32 %v55, %v70
    %v226 = vadd.f32 %v56, %v70
    %v227 = vadd.f32 %v57, %v70
    %v228 = vadd.f32 %v58, %v70
    %v229 = vadd.f32 %v59, %v70
    %v230 = vadd.f32 %v60, %v70
    %v231 = vadd.f32 %v61, %v70
    %v232 = vadd.f32 %v62, %v70
    %v233 = vadd.f32 %v63, %v70
    %v234 = vadd.f32 %v64, %v70
    %v235 = vadd.f32 %v65, %v70
    %v236 = vadd.f32 %v66, %v70
    %v237 = vadd.f32 %v67, %v70
    %v238 = vadd.f32 %v68, %v70
    %v239 = vld [vmem:[%s3] sm:$0xff]
    %v240 = vld [vmem:[%s3 + $0x8] sm:$0xff]
    %v241 = vld [vmem:[%s3 + $0x10] sm:$0xff]
    %v242 = vld [vmem:[%s3 + $0x18] sm:$0xff]
    %v243 = vld [vmem:[%s4] sm:$0x1]
    %v245 = vlaneseq
    %v246 = vshrl.u32 %v245, 7
    %v247 = vsub.s32 0, %v246
    %v248 = vrot.slane %v243, %v247
    %v266 = vrot.slane %v208, 7
    %vm267 = vcmask 1041409
    %v268 = vsel %vm267, %v266, %v207
    %v269 = vrot.slane %v209, 6
    %vm270 = vcmask 1042434
    %v271 = vsel %vm270, %v269, %v268
    %v272 = vrot.slane %v210, 5
    %vm273 = vcmask 1043459
    %v274 = vsel %vm273, %v272, %v271
    %v275 = vrot.slane %v211, 4
    %vm276 = vcmask 1044484
    %v277 = vsel %vm276, %v275, %v274
    %v278 = vrot.slane %v212, 3
    %vm279 = vcmask 1045509
    %v280 = vsel %vm279, %v278, %v277
    %v281 = vrot.slane %v213, 2
    %vm282 = vcmask 1046534
    %v283 = vsel %vm282, %v281, %v280
    %v284 = vrot.slane %v214, 1
    %vm285 = vcmask 1047559
    %v286 = vsel %vm285, %v284, %v283
    %v287 = vrot.slane %v216, 7
    %v288 = vsel %vm267, %v287, %v215
    %v289 = vrot.slane %v217, 6
    %v290 = vsel %vm270, %v289, %v288
    %v291 = vrot.slane %v218, 5
    %v292 = vsel %vm273, %v291, %v290
    %v293 = vrot.slane %v219, 4
    %v294 = vsel %vm276, %v293, %v292
    %v295 = vrot.slane %v220, 3
    %v296 = vsel %vm279, %v295, %v294
    %v297 = vrot.slane %v221, 2
    %v298 = vsel %vm282, %v297, %v296
    %v299 = vrot.slane %v222, 1
    %v300 = vsel %vm285, %v299, %v298
    %v301 = vsel %vm71, %v286, 0
    %v303 = vsel %vm71, %v300, 0
    %305 = vmatprep.subr.mxu0 0.0
    %306 = vmatpush1.msra.mxu0 %v239
    %307 = vmatprep.subr.mxu0 0.0
    %308 = vmatpush1.msra.mxu0 %v240
    %309 = vmatprep.subr.mxu0 0.0
    %310 = vmatpush1.msra.mxu0 %v241
    %311 = vmatprep.subr.mxu0 0.0
    %312 = vmatpush1.msra.mxu0 %v242
    %313 = vmatprep.subr.mxu0 0.0
    %314 = vmatpush1.msra.mxu0 0.0
    %315 = vmatprep.subr.mxu0 0.0
    %316 = vmatpush1.msra.mxu0 0.0
    %317 = vmatprep.subr.mxu0 0.0
    %318 = vmatpush1.msra.mxu0 0.0
    %319 = vmatprep.subr.mxu0 0.0
    %320 = vmatpush1.msra.mxu0 0.0
    %321 = vmatprep.subr.mxu0 0.0
    %322 = vmatpush1.msra.mxu0 0.0
    %323 = vmatprep.subr.mxu0 0.0
    %324 = vmatpush1.msra.mxu0 0.0
    %325 = vmatprep.subr.mxu0 0.0
    %326 = vmatpush1.msra.mxu0 0.0
    %327 = vmatprep.subr.mxu0 0.0
    %328 = vmatpush1.msra.mxu0 0.0
    %329 = vmatprep.subr.mxu0 0.0
    %330 = vmatpush1.msra.mxu0 0.0
    %331 = vmatprep.subr.mxu0 0.0
    %332 = vmatpush1.msra.mxu0 0.0
    %333 = vmatprep.subr.mxu0 0.0
    %334 = vmatpush1.msra.mxu0 0.0
    %335 = vmatprep.subr.mxu0 0.0
    %336 = vmatpush1.msra.mxu0 0.0
    %337 = vmatprep.subr.mxu0 0.0
    %338 = vmatpush1.msra.mxu0 0.0
    %339 = vmatprep.subr.mxu0 0.0
    %340 = vmatpush1.msra.mxu0 0.0
    %341 = vmatprep.subr.mxu0 0.0
    %342 = vmatpush1.msra.mxu0 0.0
    %343 = vmatprep.subr.mxu0 0.0
    %344 = vmatpush1.msra.mxu0 0.0
    %345 = vmatprep.subr.mxu0 0.0
    %346 = vmatpush1.msra.mxu0 0.0
    %347 = vmatprep.subr.mxu0 0.0
    %348 = vmatpush1.msra.mxu0 0.0
    %349 = vmatprep.subr.mxu0 0.0
    %350 = vmatpush1.msra.mxu0 0.0
    %351 = vmatprep.subr.mxu0 0.0
    %352 = vmatpush1.msra.mxu0 0.0
    %353 = vmatprep.subr.mxu0 0.0
    %354 = vmatpush1.msra.mxu0 0.0
    %355 = vmatprep.subr.mxu0 0.0
    %356 = vmatpush1.msra.mxu0 0.0
    %357 = vmatprep.subr.mxu0 0.0
    %358 = vmatpush1.msra.mxu0 0.0
    %359 = vmatprep.subr.mxu0 0.0
    %360 = vmatpush1.msra.mxu0 0.0
    %361 = vmatprep.subr.mxu0 0.0
    %362 = vmatpush1.msra.mxu0 0.0
    %363 = vmatprep.subr.mxu0 0.0
    %364 = vmatpush1.msra.mxu0 0.0
    %365 = vmatprep.subr.mxu0 0.0
    %366 = vmatpush1.msra.mxu0 0.0
    %367 = vmatprep.subr.mxu0 0.0
    %368 = vmatpush1.msra.mxu0 0.0
    %369 = vmatprep.mubr.f32.mxu0 0.0
    %370 = vmatmul.mubr.f32.gmra.mrb[0].mxu0 %v301
    %v371 = vpop.f32.mrb[0].mxu0
    %v372 = vadd.f32 %v248, %v371
    %v373 = vpop.f32.mrb[0].mxu0
    %374 = vmatprep.mubr.f32.mxu0 0.0
    %375 = vmatmul.mubr.f32.gmra.mrb[0].mxu0 %v303
    %v376 = vpop.f32.mrb[0].mxu0
    %v377 = vadd.f32 %v248, %v376
    %v378 = vpop.f32.mrb[0].mxu0
    %379 = vdwg.mxu0
    %v380 = vmul.f32 %v372, 0.35355338
    %v381 = vmul.f32 %v377, 0.35355338
    %v382 = vld [vmem:[%s5] sm:$0xff]
    %v383 = vld [vmem:[%s5 + $0x8] sm:$0xff]
    %v384 = vld [vmem:[%s5 + $0x10] sm:$0xff]
    %v385 = vld [vmem:[%s5 + $0x18] sm:$0xff]
    %v386 = vld [vmem:[%s6] sm:$0x1]
    %v388 = vlaneseq
    %v389 = vshrl.u32 %v388, 7
    %v390 = vsub.s32 0, %v389
    %v391 = vrot.slane %v386, %v390
    %v394 = vsel %vm71, %v223, 0
    %v397 = vsel %vm71, %v224, 0
    %v400 = vsel %vm71, %v225, 0
    %v403 = vsel %vm71, %v226, 0
    %v406 = vsel %vm71, %v227, 0
    %v409 = vsel %vm71, %v228, 0
    %v412 = vsel %vm71, %v229, 0
    %v415 = vsel %vm71, %v230, 0
    %v418 = vsel %vm71, %v231, 0
    %v421 = vsel %vm71, %v232, 0
    %v424 = vsel %vm71, %v233, 0
    %v427 = vsel %vm71, %v234, 0
    %v430 = vsel %vm71, %v235, 0
    %v433 = vsel %vm71, %v236, 0
    %v436 = vsel %vm71, %v237, 0
    %v439 = vsel %vm71, %v238, 0
    %441 = vmatprep.subr.mxu0 0.0
    %442 = vmatpush1.msra.mxu0 %v382
    %443 = vmatprep.subr.mxu0 0.0
    %444 = vmatpush1.msra.mxu0 %v383
    %445 = vmatprep.subr.mxu0 0.0
    %446 = vmatpush1.msra.mxu0 %v384
    %447 = vmatprep.subr.mxu0 0.0
    %448 = vmatpush1.msra.mxu0 %v385
    %449 = vmatprep.subr.mxu0 0.0
    %450 = vmatpush1.msra.mxu0 0.0
    %451 = vmatprep.subr.mxu0 0.0
    %452 = vmatpush1.msra.mxu0 0.0
    %453 = vmatprep.subr.mxu0 0.0
    %454 = vmatpush1.msra.mxu0 0.0
    %455 = vmatprep.subr.mxu0 0.0
    %456 = vmatpush1.msra.mxu0 0.0
    %457 = vmatprep.subr.mxu0 0.0
    %458 = vmatpush1.msra.mxu0 0.0
    %459 = vmatprep.subr.mxu0 0.0
    %460 = vmatpush1.msra.mxu0 0.0
    %461 = vmatprep.subr.mxu0 0.0
    %462 = vmatpush1.msra.mxu0 0.0
    %463 = vmatprep.subr.mxu0 0.0
    %464 = vmatpush1.msra.mxu0 0.0
    %465 = vmatprep.subr.mxu0 0.0
    %466 = vmatpush1.msra.mxu0 0.0
    %467 = vmatprep.subr.mxu0 0.0
    %468 = vmatpush1.msra.mxu0 0.0
    %469 = vmatprep.subr.mxu0 0.0
    %470 = vmatpush1.msra.mxu0 0.0
    %471 = vmatprep.subr.mxu0 0.0
    %472 = vmatpush1.msra.mxu0 0.0
    %473 = vmatprep.subr.mxu0 0.0
    %474 = vmatpush1.msra.mxu0 0.0
    %475 = vmatprep.subr.mxu0 0.0
    %476 = vmatpush1.msra.mxu0 0.0
    %477 = vmatprep.subr.mxu0 0.0
    %478 = vmatpush1.msra.mxu0 0.0
    %479 = vmatprep.subr.mxu0 0.0
    %480 = vmatpush1.msra.mxu0 0.0
    %481 = vmatprep.subr.mxu0 0.0
    %482 = vmatpush1.msra.mxu0 0.0
    %483 = vmatprep.subr.mxu0 0.0
    %484 = vmatpush1.msra.mxu0 0.0
    %485 = vmatprep.subr.mxu0 0.0
    %486 = vmatpush1.msra.mxu0 0.0
    %487 = vmatprep.subr.mxu0 0.0
    %488 = vmatpush1.msra.mxu0 0.0
    %489 = vmatprep.subr.mxu0 0.0
    %490 = vmatpush1.msra.mxu0 0.0
    %491 = vmatprep.subr.mxu0 0.0
    %492 = vmatpush1.msra.mxu0 0.0
    %493 = vmatprep.subr.mxu0 0.0
    %494 = vmatpush1.msra.mxu0 0.0
    %495 = vmatprep.subr.mxu0 0.0
    %496 = vmatpush1.msra.mxu0 0.0
    %497 = vmatprep.subr.mxu0 0.0
    %498 = vmatpush1.msra.mxu0 0.0
    %499 = vmatprep.subr.mxu0 0.0
    %500 = vmatpush1.msra.mxu0 0.0
    %501 = vmatprep.subr.mxu0 0.0
    %502 = vmatpush1.msra.mxu0 0.0
    %503 = vmatprep.subr.mxu0 0.0
    %504 = vmatpush1.msra.mxu0 0.0
    %505 = vmatprep.mubr.f32.mxu0 0.0
    %506 = vmatmul.mubr.f32.gmra.mrb[0].mxu0 %v394
    %v507 = vpop.f32.mrb[0].mxu0
    %v508 = vadd.f32 %v391, %v507
    %v509 = vpop.f32.mrb[0].mxu0
    %510 = vmatprep.mubr.f32.mxu0 0.0
    %511 = vmatmul.mubr.f32.gmra.mrb[0].mxu0 %v397
    %v512 = vpop.f32.mrb[0].mxu0
    %v513 = vadd.f32 %v391, %v512
    %v514 = vpop.f32.mrb[0].mxu0
    %515 = vmatprep.mubr.f32.mxu0 0.0
    %516 = vmatmul.mubr.f32.gmra.mrb[0].mxu0 %v400
    %v517 = vpop.f32.mrb[0].mxu0
    %v518 = vadd.f32 %v391, %v517
    %v519 = vpop.f32.mrb[0].mxu0
    %520 = vmatprep.mubr.f32.mxu0 0.0
    %521 = vmatmul.mubr.f32.gmra.mrb[0].mxu0 %v403
    %v522 = vpop.f32.mrb[0].mxu0
    %v523 = vadd.f32 %v391, %v522
    %v524 = vpop.f32.mrb[0].mxu0
    %525 = vmatprep.mubr.f32.mxu0 0.0
    %526 = vmatmul.mubr.f32.gmra.mrb[0].mxu0 %v406
    %v527 = vpop.f32.mrb[0].mxu0
    %v528 = vadd.f32 %v391, %v527
    %v529 = vpop.f32.mrb[0].mxu0
    %530 = vmatprep.mubr.f32.mxu0 0.0
    %531 = vmatmul.mubr.f32.gmra.mrb[0].mxu0 %v409
    %v532 = vpop.f32.mrb[0].mxu0
    %v533 = vadd.f32 %v391, %v532
    %v534 = vpop.f32.mrb[0].mxu0
    %535 = vmatprep.mubr.f32.mxu0 0.0
    %536 = vmatmul.mubr.f32.gmra.mrb[0].mxu0 %v412
    %v537 = vpop.f32.mrb[0].mxu0
    %v538 = vadd.f32 %v391, %v537
    %v539 = vpop.f32.mrb[0].mxu0
    %540 = vmatprep.mubr.f32.mxu0 0.0
    %541 = vmatmul.mubr.f32.gmra.mrb[0].mxu0 %v415
    %v542 = vpop.f32.mrb[0].mxu0
    %v543 = vadd.f32 %v391, %v542
    %v544 = vpop.f32.mrb[0].mxu0
    %545 = vmatprep.mubr.f32.mxu0 0.0
    %546 = vmatmul.mubr.f32.gmra.mrb[0].mxu0 %v418
    %v547 = vpop.f32.mrb[0].mxu0
    %v548 = vadd.f32 %v391, %v547
    %v549 = vpop.f32.mrb[0].mxu0
    %550 = vmatprep.mubr.f32.mxu0 0.0
    %551 = vmatmul.mubr.f32.gmra.mrb[0].mxu0 %v421
    %v552 = vpop.f32.mrb[0].mxu0
    %v553 = vadd.f32 %v391, %v552
    %v554 = vpop.f32.mrb[0].mxu0
    %555 = vmatprep.mubr.f32.mxu0 0.0
    %556 = vmatmul.mubr.f32.gmra.mrb[0].mxu0 %v424
    %v557 = vpop.f32.mrb[0].mxu0
    %v558 = vadd.f32 %v391, %v557
    %v559 = vpop.f32.mrb[0].mxu0
    %560 = vmatprep.mubr.f32.mxu0 0.0
    %561 = vmatmul.mubr.f32.gmra.mrb[0].mxu0 %v427
    %v562 = vpop.f32.mrb[0].mxu0
    %v563 = vadd.f32 %v391, %v562
    %v564 = vpop.f32.mrb[0].mxu0
    %565 = vmatprep.mubr.f32.mxu0 0.0
    %566 = vmatmul.mubr.f32.gmra.mrb[0].mxu0 %v430
    %v567 = vpop.f32.mrb[0].mxu0
    %v568 = vadd.f32 %v391, %v567
    %v569 = vpop.f32.mrb[0].mxu0
    %570 = vmatprep.mubr.f32.mxu0 0.0
    %571 = vmatmul.mubr.f32.gmra.mrb[0].mxu0 %v433
    %v572 = vpop.f32.mrb[0].mxu0
    %v573 = vadd.f32 %v391, %v572
    %v574 = vpop.f32.mrb[0].mxu0
    %575 = vmatprep.mubr.f32.mxu0 0.0
    %576 = vmatmul.mubr.f32.gmra.mrb[0].mxu0 %v436
    %v577 = vpop.f32.mrb[0].mxu0
    %v578 = vadd.f32 %v391, %v577
    %v579 = vpop.f32.mrb[0].mxu0
    %580 = vmatprep.mubr.f32.mxu0 0.0
    %581 = vmatmul.mubr.f32.gmra.mrb[0].mxu0 %v439
    %v582 = vpop.f32.mrb[0].mxu0
    %v583 = vadd.f32 %v391, %v582
    %v584 = vpop.f32.mrb[0].mxu0
    %585 = vdwg.mxu0
    %v586 = vld [vmem:[%s9] sm:$0xff]
    %v587 = vld [vmem:[%s9 + $0x8] sm:$0xff]
    %v588 = vld [vmem:[%s9 + $0x10] sm:$0xff]
    %v589 = vld [vmem:[%s9 + $0x18] sm:$0xff]
    %v590 = vld [vmem:[%s10] sm:$0xf]
    %593 = vrot.lane.b32.xlu0 %v372, 96
    %v594 = vpop.permute.xlu0 %593
    %595 = vrot.lane.b32.xlu0 %v377, 96
    %v596 = vpop.permute.xlu0 %595
    %v599 = vmul.f32 %v380, %v594
    %v600 = vmul.f32 %v381, %v596
    %v602 = vsel %vm71, %v599, 0
    %v605 = vsel %vm71, %v600, 0
    %607 = vmatprep.subr.mxu0 0.0
    %608 = vmatpush1.msra.mxu0 %v586
    %609 = vmatprep.subr.mxu0 0.0
    %610 = vmatpush1.msra.mxu0 %v587
    %611 = vmatprep.subr.mxu0 0.0
    %612 = vmatpush1.msra.mxu0 %v588
    %613 = vmatprep.subr.mxu0 0.0
    %614 = vmatpush1.msra.mxu0 %v589
    %615 = vmatprep.subr.mxu0 0.0
    %616 = vmatpush1.msra.mxu0 0.0
    %617 = vmatprep.subr.mxu0 0.0
    %618 = vmatpush1.msra.mxu0 0.0
    %619 = vmatprep.subr.mxu0 0.0
    %620 = vmatpush1.msra.mxu0 0.0
    %621 = vmatprep.subr.mxu0 0.0
    %622 = vmatpush1.msra.mxu0 0.0
    %623 = vmatprep.subr.mxu0 0.0
    %624 = vmatpush1.msra.mxu0 0.0
    %625 = vmatprep.subr.mxu0 0.0
    %626 = vmatpush1.msra.mxu0 0.0
    %627 = vmatprep.subr.mxu0 0.0
    %628 = vmatpush1.msra.mxu0 0.0
    %629 = vmatprep.subr.mxu0 0.0
    %630 = vmatpush1.msra.mxu0 0.0
    %631 = vmatprep.subr.mxu0 0.0
    %632 = vmatpush1.msra.mxu0 0.0
    %633 = vmatprep.subr.mxu0 0.0
    %634 = vmatpush1.msra.mxu0 0.0
    %635 = vmatprep.subr.mxu0 0.0
    %636 = vmatpush1.msra.mxu0 0.0
    %637 = vmatprep.subr.mxu0 0.0
    %638 = vmatpush1.msra.mxu0 0.0
    %639 = vmatprep.subr.mxu0 0.0
    %640 = vmatpush1.msra.mxu0 0.0
    %641 = vmatprep.subr.mxu0 0.0
    %642 = vmatpush1.msra.mxu0 0.0
    %643 = vmatprep.subr.mxu0 0.0
    %644 = vmatpush1.msra.mxu0 0.0
    %645 = vmatprep.subr.mxu0 0.0
    %646 = vmatpush1.msra.mxu0 0.0
    %647 = vmatprep.subr.mxu0 0.0
    %648 = vmatpush1.msra.mxu0 0.0
    %649 = vmatprep.subr.mxu0 0.0
    %650 = vmatpush1.msra.mxu0 0.0
    %651 = vmatprep.subr.mxu0 0.0
    %652 = vmatpush1.msra.mxu0 0.0
    %653 = vmatprep.subr.mxu0 0.0
    %654 = vmatpush1.msra.mxu0 0.0
    %655 = vmatprep.subr.mxu0 0.0
    %656 = vmatpush1.msra.mxu0 0.0
    %657 = vmatprep.subr.mxu0 0.0
    %658 = vmatpush1.msra.mxu0 0.0
    %659 = vmatprep.subr.mxu0 0.0
    %660 = vmatpush1.msra.mxu0 0.0
    %661 = vmatprep.subr.mxu0 0.0
    %662 = vmatpush1.msra.mxu0 0.0
    %663 = vmatprep.subr.mxu0 0.0
    %664 = vmatpush1.msra.mxu0 0.0
    %665 = vmatprep.subr.mxu0 0.0
    %666 = vmatpush1.msra.mxu0 0.0
    %667 = vmatprep.subr.mxu0 0.0
    %668 = vmatpush1.msra.mxu0 0.0
    %669 = vmatprep.subr.mxu0 0.0
    %670 = vmatpush1.msra.mxu0 0.0
    %671 = vmatprep.mubr.f32.mxu0 0.0
    %672 = vmatmul.mubr.f32.gmra.mrb[0].mxu0 %v602
    %v673 = vpop.f32.mrb[0].mxu0
    %v674 = vadd.f32 0.0, %v673
    %v675 = vpop.f32.mrb[0].mxu0
    %676 = vmatprep.mubr.f32.mxu0 0.0
    %677 = vmatmul.mubr.f32.gmra.mrb[0].mxu0 %v605
    %v678 = vpop.f32.mrb[0].mxu0
    %v679 = vadd.f32 0.0, %v678
    %v680 = vpop.f32.mrb[0].mxu0
    %681 = vdwg.mxu0
    %v684 = vcombine.high %v380, %v380
    %v686 = vunpack.c.l.s4 1966171168
    %v687 = vunpack.c.0.s8 %v686
    %v688 = vlaneseq
    %v689 = vshrl.u32 %v688, 7
    %v690 = vsub.s32 %v687, %v689
    %v691 = vrot.slane %v380, %v690
    %v693 = vunpack.c.l.s4 1966171168
    %v694 = vunpack.c.0.s8 %v693
    %v695 = vlaneseq
    %v696 = vshrl.u32 %v695, 7
    %v697 = vsub.s32 %v694, %v696
    %v698 = vrot.slane %v684, %v697
    %v699 = vcombine.high %v691, %v691
    %v700 = vcombine.high %v698, %v698
    %v702 = vunpack.c.l.s4 1966171168
    %v703 = vunpack.c.0.s8 %v702
    %v704 = vlaneseq
    %v705 = vshrl.u32 %v704, 7
    %v706 = vsub.s32 %v703, %v705
    %v707 = vrot.slane %v691, %v706
    %v709 = vunpack.c.l.s4 1966171168
    %v710 = vunpack.c.0.s8 %v709
    %v711 = vlaneseq
    %v712 = vshrl.u32 %v711, 7
    %v713 = vsub.s32 %v710, %v712
    %v714 = vrot.slane %v698, %v713
    %v716 = vunpack.c.l.s4 1966171168
    %v717 = vunpack.c.0.s8 %v716
    %v718 = vlaneseq
    %v719 = vshrl.u32 %v718, 7
    %v720 = vsub.s32 %v717, %v719
    %v721 = vrot.slane %v699, %v720
    %v723 = vunpack.c.l.s4 1966171168
    %v724 = vunpack.c.0.s8 %v723
    %v725 = vlaneseq
    %v726 = vshrl.u32 %v725, 7
    %v727 = vsub.s32 %v724, %v726
    %v728 = vrot.slane %v700, %v727
    %v729 = vcombine.high %v707, %v707
    %v730 = vcombine.high %v714, %v714
    %v731 = vcombine.high %v721, %v721
    %v732 = vcombine.high %v728, %v728
    %v733 = vcombine.high %v381, %v381
    %v735 = vunpack.c.l.s4 1966171168
    %v736 = vunpack.c.0.s8 %v735
    %v737 = vlaneseq
    %v738 = vshrl.u32 %v737, 7
    %v739 = vsub.s32 %v736, %v738
    %v740 = vrot.slane %v381, %v739
    %v742 = vunpack.c.l.s4 1966171168
    %v743 = vunpack.c.0.s8 %v742
    %v744 = vlaneseq
    %v745 = vshrl.u32 %v744, 7
    %v746 = vsub.s32 %v743, %v745
    %v747 = vrot.slane %v733, %v746
    %v748 = vcombine.high %v740, %v740
    %v749 = vcombine.high %v747, %v747
    %v751 = vunpack.c.l.s4 1966171168
    %v752 = vunpack.c.0.s8 %v751
    %v753 = vlaneseq
    %v754 = vshrl.u32 %v753, 7
    %v755 = vsub.s32 %v752, %v754
    %v756 = vrot.slane %v740, %v755
    %v758 = vunpack.c.l.s4 1966171168
    %v759 = vunpack.c.0.s8 %v758
    %v760 = vlaneseq
    %v761 = vshrl.u32 %v760, 7
    %v762 = vsub.s32 %v759, %v761
    %v763 = vrot.slane %v747, %v762
    %v765 = vunpack.c.l.s4 1966171168
    %v766 = vunpack.c.0.s8 %v765
    %v767 = vlaneseq
    %v768 = vshrl.u32 %v767, 7
    %v769 = vsub.s32 %v766, %v768
    %v770 = vrot.slane %v748, %v769
    %v772 = vunpack.c.l.s4 1966171168
    %v773 = vunpack.c.0.s8 %v772
    %v774 = vlaneseq
    %v775 = vshrl.u32 %v774, 7
    %v776 = vsub.s32 %v773, %v775
    %v777 = vrot.slane %v749, %v776
    %v778 = vcombine.high %v756, %v756
    %v779 = vcombine.high %v763, %v763
    %v780 = vcombine.high %v770, %v770
    %v781 = vcombine.high %v777, %v777
    %v782 = vlaneseq
    %v783 = vshrl.u32 %v782, 7
    %v784 = vsub.s32 0, %v783
    %v785 = vrot.slane %v707, %v784
    %v786 = vlaneseq
    %v787 = vshrl.u32 %v786, 7
    %v788 = vsub.s32 0, %v787
    %v789 = vrot.slane %v721, %v788
    %v790 = vlaneseq
    %v791 = vshrl.u32 %v790, 7
    %v792 = vsub.s32 0, %v791
    %v793 = vrot.slane %v729, %v792
    %v794 = vlaneseq
    %v795 = vshrl.u32 %v794, 7
    %v796 = vsub.s32 0, %v795
    %v797 = vrot.slane %v731, %v796
    %v798 = vlaneseq
    %v799 = vshrl.u32 %v798, 7
    %v800 = vsub.s32 0, %v799
    %v801 = vrot.slane %v714, %v800
    %v802 = vlaneseq
    %v803 = vshrl.u32 %v802, 7
    %v804 = vsub.s32 0, %v803
    %v805 = vrot.slane %v728, %v804
    %v806 = vlaneseq
    %v807 = vshrl.u32 %v806, 7
    %v808 = vsub.s32 0, %v807
    %v809 = vrot.slane %v730, %v808
    %v810 = vlaneseq
    %v811 = vshrl.u32 %v810, 7
    %v812 = vsub.s32 0, %v811
    %v813 = vrot.slane %v732, %v812
    %v814 = vlaneseq
    %v815 = vshrl.u32 %v814, 7
    %v816 = vsub.s32 0, %v815
    %v817 = vrot.slane %v756, %v816
    %v818 = vlaneseq
    %v819 = vshrl.u32 %v818, 7
    %v820 = vsub.s32 0, %v819
    %v821 = vrot.slane %v770, %v820
    %v822 = vlaneseq
    %v823 = vshrl.u32 %v822, 7
    %v824 = vsub.s32 0, %v823
    %v825 = vrot.slane %v778, %v824
    %v826 = vlaneseq
    %v827 = vshrl.u32 %v826, 7
    %v828 = vsub.s32 0, %v827
    %v829 = vrot.slane %v780, %v828
    %v830 = vlaneseq
    %v831 = vshrl.u32 %v830, 7
    %v832 = vsub.s32 0, %v831
    %v833 = vrot.slane %v763, %v832
    %v834 = vlaneseq
    %v835 = vshrl.u32 %v834, 7
    %v836 = vsub.s32 0, %v835
    %v837 = vrot.slane %v777, %v836
    %v838 = vlaneseq
    %v839 = vshrl.u32 %v838, 7
    %v840 = vsub.s32 0, %v839
    %v841 = vrot.slane %v779, %v840
    %v842 = vlaneseq
    %v843 = vshrl.u32 %v842, 7
    %v844 = vsub.s32 0, %v843
    %v845 = vrot.slane %v781, %v844
    %v862 = vmul.f32 %v785, %v508
    %v863 = vmul.f32 %v789, %v513
    %v864 = vmul.f32 %v793, %v518
    %v865 = vmul.f32 %v797, %v523
    %v866 = vmul.f32 %v801, %v528
    %v867 = vmul.f32 %v805, %v533
    %v868 = vmul.f32 %v809, %v538
    %v869 = vmul.f32 %v813, %v543
    %v870 = vmul.f32 %v817, %v548
    %v871 = vmul.f32 %v821, %v553
    %v872 = vmul.f32 %v825, %v558
    %v873 = vmul.f32 %v829, %v563
    %v874 = vmul.f32 %v833, %v568
    %v875 = vmul.f32 %v837, %v573
    %v876 = vmul.f32 %v841, %v578
    %v877 = vmul.f32 %v845, %v583
    %v879 = vsel %vm71, %v862, 0
    %v882 = vsel %vm71, %v863, 0
    %v885 = vsel %vm71, %v864, 0
    %v888 = vsel %vm71, %v865, 0
    %v891 = vsel %vm71, %v866, 0
    %v894 = vsel %vm71, %v867, 0
    %v897 = vsel %vm71, %v868, 0
    %v900 = vsel %vm71, %v869, 0
    %v903 = vsel %vm71, %v870, 0
    %v906 = vsel %vm71, %v871, 0
    %v909 = vsel %vm71, %v872, 0
    %v912 = vsel %vm71, %v873, 0
    %v915 = vsel %vm71, %v874, 0
    %v918 = vsel %vm71, %v875, 0
    %v921 = vsel %vm71, %v876, 0
    %v924 = vsel %vm71, %v877, 0
    %926 = vmatprep.subr.mxu0 0.0
    %927 = vmatpush1.msra.mxu0 %v586
    %928 = vmatprep.subr.mxu0 0.0
    %929 = vmatpush1.msra.mxu0 %v587
    %930 = vmatprep.subr.mxu0 0.0
    %931 = vmatpush1.msra.mxu0 %v588
    %932 = vmatprep.subr.mxu0 0.0
    %933 = vmatpush1.msra.mxu0 %v589
    %934 = vmatprep.subr.mxu0 0.0
    %935 = vmatpush1.msra.mxu0 0.0
    %936 = vmatprep.subr.mxu0 0.0
    %937 = vmatpush1.msra.mxu0 0.0
    %938 = vmatprep.subr.mxu0 0.0
    %939 = vmatpush1.msra.mxu0 0.0
    %940 = vmatprep.subr.mxu0 0.0
    %941 = vmatpush1.msra.mxu0 0.0
    %942 = vmatprep.subr.mxu0 0.0
    %943 = vmatpush1.msra.mxu0 0.0
    %944 = vmatprep.subr.mxu0 0.0
    %945 = vmatpush1.msra.mxu0 0.0
    %946 = vmatprep.subr.mxu0 0.0
    %947 = vmatpush1.msra.mxu0 0.0
    %948 = vmatprep.subr.mxu0 0.0
    %949 = vmatpush1.msra.mxu0 0.0
    %950 = vmatprep.subr.mxu0 0.0
    %951 = vmatpush1.msra.mxu0 0.0
    %952 = vmatprep.subr.mxu0 0.0
    %953 = vmatpush1.msra.mxu0 0.0
    %954 = vmatprep.subr.mxu0 0.0
    %955 = vmatpush1.msra.mxu0 0.0
    %956 = vmatprep.subr.mxu0 0.0
    %957 = vmatpush1.msra.mxu0 0.0
    %958 = vmatprep.subr.mxu0 0.0
    %959 = vmatpush1.msra.mxu0 0.0
    %960 = vmatprep.subr.mxu0 0.0
    %961 = vmatpush1.msra.mxu0 0.0
    %962 = vmatprep.subr.mxu0 0.0
    %963 = vmatpush1.msra.mxu0 0.0
    %964 = vmatprep.subr.mxu0 0.0
    %965 = vmatpush1.msra.mxu0 0.0
    %966 = vmatprep.subr.mxu0 0.0
    %967 = vmatpush1.msra.mxu0 0.0
    %968 = vmatprep.subr.mxu0 0.0
    %969 = vmatpush1.msra.mxu0 0.0
    %970 = vmatprep.subr.mxu0 0.0
    %971 = vmatpush1.msra.mxu0 0.0
    %972 = vmatprep.subr.mxu0 0.0
    %973 = vmatpush1.msra.mxu0 0.0
    %974 = vmatprep.subr.mxu0 0.0
    %975 = vmatpush1.msra.mxu0 0.0
    %976 = vmatprep.subr.mxu0 0.0
    %977 = vmatpush1.msra.mxu0 0.0
    %978 = vmatprep.subr.mxu0 0.0
    %979 = vmatpush1.msra.mxu0 0.0
    %980 = vmatprep.subr.mxu0 0.0
    %981 = vmatpush1.msra.mxu0 0.0
    %982 = vmatprep.subr.mxu0 0.0
    %983 = vmatpush1.msra.mxu0 0.0
    %984 = vmatprep.subr.mxu0 0.0
    %985 = vmatpush1.msra.mxu0 0.0
    %986 = vmatprep.subr.mxu0 0.0
    %987 = vmatpush1.msra.mxu0 0.0
    %988 = vmatprep.subr.mxu0 0.0
    %989 = vmatpush1.msra.mxu0 0.0
    %990 = vmatprep.mubr.f32.mxu0 0.0
    %991 = vmatmul.mubr.f32.gmra.mrb[0].mxu0 %v879
    %v992 = vpop.f32.mrb[0].mxu0
    %v993 = vadd.f32 0.0, %v992
    %v994 = vpop.f32.mrb[0].mxu0
    %995 = vmatprep.mubr.f32.mxu0 0.0
    %996 = vmatmul.mubr.f32.gmra.mrb[0].mxu0 %v882
    %v997 = vpop.f32.mrb[0].mxu0
    %v998 = vadd.f32 0.0, %v997
    %v999 = vpop.f32.mrb[0].mxu0
    %1000 = vmatprep.mubr.f32.mxu0 0.0
    %1001 = vmatmul.mubr.f32.gmra.mrb[0].mxu0 %v885
    %v1002 = vpop.f32.mrb[0].mxu0
    %v1003 = vadd.f32 0.0, %v1002
    %v1004 = vpop.f32.mrb[0].mxu0
    %1005 = vmatprep.mubr.f32.mxu0 0.0
    %1006 = vmatmul.mubr.f32.gmra.mrb[0].mxu0 %v888
    %v1007 = vpop.f32.mrb[0].mxu0
    %v1008 = vadd.f32 0.0, %v1007
    %v1009 = vpop.f32.mrb[0].mxu0
    %1010 = vmatprep.mubr.f32.mxu0 0.0
    %1011 = vmatmul.mubr.f32.gmra.mrb[0].mxu0 %v891
    %v1012 = vpop.f32.mrb[0].mxu0
    %v1013 = vadd.f32 0.0, %v1012
    %v1014 = vpop.f32.mrb[0].mxu0
    %1015 = vmatprep.mubr.f32.mxu0 0.0
    %1016 = vmatmul.mubr.f32.gmra.mrb[0].mxu0 %v894
    %v1017 = vpop.f32.mrb[0].mxu0
    %v1018 = vadd.f32 0.0, %v1017
    %v1019 = vpop.f32.mrb[0].mxu0
    %1020 = vmatprep.mubr.f32.mxu0 0.0
    %1021 = vmatmul.mubr.f32.gmra.mrb[0].mxu0 %v897
    %v1022 = vpop.f32.mrb[0].mxu0
    %v1023 = vadd.f32 0.0, %v1022
    %v1024 = vpop.f32.mrb[0].mxu0
    %1025 = vmatprep.mubr.f32.mxu0 0.0
    %1026 = vmatmul.mubr.f32.gmra.mrb[0].mxu0 %v900
    %v1027 = vpop.f32.mrb[0].mxu0
    %v1028 = vadd.f32 0.0, %v1027
    %v1029 = vpop.f32.mrb[0].mxu0
    %1030 = vmatprep.mubr.f32.mxu0 0.0
    %1031 = vmatmul.mubr.f32.gmra.mrb[0].mxu0 %v903
    %v1032 = vpop.f32.mrb[0].mxu0
    %v1033 = vadd.f32 0.0, %v1032
    %v1034 = vpop.f32.mrb[0].mxu0
    %1035 = vmatprep.mubr.f32.mxu0 0.0
    %1036 = vmatmul.mubr.f32.gmra.mrb[0].mxu0 %v906
    %v1037 = vpop.f32.mrb[0].mxu0
    %v1038 = vadd.f32 0.0, %v1037
    %v1039 = vpop.f32.mrb[0].mxu0
    %1040 = vmatprep.mubr.f32.mxu0 0.0
    %1041 = vmatmul.mubr.f32.gmra.mrb[0].mxu0 %v909
    %v1042 = vpop.f32.mrb[0].mxu0
    %v1043 = vadd.f32 0.0, %v1042
    %v1044 = vpop.f32.mrb[0].mxu0
    %1045 = vmatprep.mubr.f32.mxu0 0.0
    %1046 = vmatmul.mubr.f32.gmra.mrb[0].mxu0 %v912
    %v1047 = vpop.f32.mrb[0].mxu0
    %v1048 = vadd.f32 0.0, %v1047
    %v1049 = vpop.f32.mrb[0].mxu0
    %1050 = vmatprep.mubr.f32.mxu0 0.0
    %1051 = vmatmul.mubr.f32.gmra.mrb[0].mxu0 %v915
    %v1052 = vpop.f32.mrb[0].mxu0
    %v1053 = vadd.f32 0.0, %v1052
    %v1054 = vpop.f32.mrb[0].mxu0
    %1055 = vmatprep.mubr.f32.mxu0 0.0
    %1056 = vmatmul.mubr.f32.gmra.mrb[0].mxu0 %v918
    %v1057 = vpop.f32.mrb[0].mxu0
    %v1058 = vadd.f32 0.0, %v1057
    %v1059 = vpop.f32.mrb[0].mxu0
    %1060 = vmatprep.mubr.f32.mxu0 0.0
    %1061 = vmatmul.mubr.f32.gmra.mrb[0].mxu0 %v921
    %v1062 = vpop.f32.mrb[0].mxu0
    %v1063 = vadd.f32 0.0, %v1062
    %v1064 = vpop.f32.mrb[0].mxu0
    %1065 = vmatprep.mubr.f32.mxu0 0.0
    %1066 = vmatmul.mubr.f32.gmra.mrb[0].mxu0 %v924
    %v1067 = vpop.f32.mrb[0].mxu0
    %v1068 = vadd.f32 0.0, %v1067
    %v1069 = vpop.f32.mrb[0].mxu0
    %1070 = vdwg.mxu0
    %vm1071 = vcmask 31744
    %v1072 = vsel %vm1071, %v993, -inf
    %v1073 = vrot.slane %v1072, 4
    %v1074 = vmax.f32 %v1072, %v1073
    %v1075 = vrot.slane %v1074, 2
    %v1076 = vmax.f32 %v1074, %v1075
    %v1077 = vrot.slane %v1076, 1
    %v1078 = vmax.f32 %v1076, %v1077
    %v1079 = vsel %vm1071, %v998, -inf
    %v1080 = vrot.slane %v1079, 4
    %v1081 = vmax.f32 %v1079, %v1080
    %v1082 = vrot.slane %v1081, 2
    %v1083 = vmax.f32 %v1081, %v1082
    %v1084 = vrot.slane %v1083, 1
    %v1085 = vmax.f32 %v1083, %v1084
    %v1086 = vsel %vm1071, %v1003, -inf
    %v1087 = vrot.slane %v1086, 4
    %v1088 = vmax.f32 %v1086, %v1087
    %v1089 = vrot.slane %v1088, 2
    %v1090 = vmax.f32 %v1088, %v1089
    %v1091 = vrot.slane %v1090, 1
    %v1092 = vmax.f32 %v1090, %v1091
    %v1093 = vsel %vm1071, %v1008, -inf
    %v1094 = vrot.slane %v1093, 4
    %v1095 = vmax.f32 %v1093, %v1094
    %v1096 = vrot.slane %v1095, 2
    %v1097 = vmax.f32 %v1095, %v1096
    %v1098 = vrot.slane %v1097, 1
    %v1099 = vmax.f32 %v1097, %v1098
    %v1100 = vsel %vm1071, %v1013, -inf
    %v1101 = vrot.slane %v1100, 4
    %v1102 = vmax.f32 %v1100, %v1101
    %v1103 = vrot.slane %v1102, 2
    %v1104 = vmax.f32 %v1102, %v1103
    %v1105 = vrot.slane %v1104, 1
    %v1106 = vmax.f32 %v1104, %v1105
    %v1107 = vsel %vm1071, %v1018, -inf
    %v1108 = vrot.slane %v1107, 4
    %v1109 = vmax.f32 %v1107, %v1108
    %v1110 = vrot.slane %v1109, 2
    %v1111 = vmax.f32 %v1109, %v1110
    %v1112 = vrot.slane %v1111, 1
    %v1113 = vmax.f32 %v1111, %v1112
    %v1114 = vsel %vm1071, %v1023, -inf
    %v1115 = vrot.slane %v1114, 4
    %v1116 = vmax.f32 %v1114, %v1115
    %v1117 = vrot.slane %v1116, 2
    %v1118 = vmax.f32 %v1116, %v1117
    %v1119 = vrot.slane %v1118, 1
    %v1120 = vmax.f32 %v1118, %v1119
    %v1121 = vsel %vm1071, %v1028, -inf
    %v1122 = vrot.slane %v1121, 4
    %v1123 = vmax.f32 %v1121, %v1122
    %v1124 = vrot.slane %v1123, 2
    %v1125 = vmax.f32 %v1123, %v1124
    %v1126 = vrot.slane %v1125, 1
    %v1127 = vmax.f32 %v1125, %v1126
    %v1128 = vsel %vm1071, %v1033, -inf
    %v1129 = vrot.slane %v1128, 4
    %v1130 = vmax.f32 %v1128, %v1129
    %v1131 = vrot.slane %v1130, 2
    %v1132 = vmax.f32 %v1130, %v1131
    %v1133 = vrot.slane %v1132, 1
    %v1134 = vmax.f32 %v1132, %v1133
    %v1135 = vsel %vm1071, %v1038, -inf
    %v1136 = vrot.slane %v1135, 4
    %v1137 = vmax.f32 %v1135, %v1136
    %v1138 = vrot.slane %v1137, 2
    %v1139 = vmax.f32 %v1137, %v1138
    %v1140 = vrot.slane %v1139, 1
    %v1141 = vmax.f32 %v1139, %v1140
    %v1142 = vsel %vm1071, %v1043, -inf
    %v1143 = vrot.slane %v1142, 4
    %v1144 = vmax.f32 %v1142, %v1143
    %v1145 = vrot.slane %v1144, 2
    %v1146 = vmax.f32 %v1144, %v1145
    %v1147 = vrot.slane %v1146, 1
    %v1148 = vmax.f32 %v1146, %v1147
    %v1149 = vsel %vm1071, %v1048, -inf
    %v1150 = vrot.slane %v1149, 4
    %v1151 = vmax.f32 %v1149, %v1150
    %v1152 = vrot.slane %v1151, 2
    %v1153 = vmax.f32 %v1151, %v1152
    %v1154 = vrot.slane %v1153, 1
    %v1155 = vmax.f32 %v1153, %v1154
    %v1156 = vsel %vm1071, %v1053, -inf
    %v1157 = vrot.slane %v1156, 4
    %v1158 = vmax.f32 %v1156, %v1157
    %v1159 = vrot.slane %v1158, 2
    %v1160 = vmax.f32 %v1158, %v1159
    %v1161 = vrot.slane %v1160, 1
    %v1162 = vmax.f32 %v1160, %v1161
    %v1163 = vsel %vm1071, %v1058, -inf
    %v1164 = vrot.slane %v1163, 4
    %v1165 = vmax.f32 %v1163, %v1164
    %v1166 = vrot.slane %v1165, 2
    %v1167 = vmax.f32 %v1165, %v1166
    %v1168 = vrot.slane %v1167, 1
    %v1169 = vmax.f32 %v1167, %v1168
    %v1170 = vsel %vm1071, %v1063, -inf
    %v1171 = vrot.slane %v1170, 4
    %v1172 = vmax.f32 %v1170, %v1171
    %v1173 = vrot.slane %v1172, 2
    %v1174 = vmax.f32 %v1172, %v1173
    %v1175 = vrot.slane %v1174, 1
    %v1176 = vmax.f32 %v1174, %v1175
    %v1177 = vsel %vm1071, %v1068, -inf
    %v1178 = vrot.slane %v1177, 4
    %v1179 = vmax.f32 %v1177, %v1178
    %v1180 = vrot.slane %v1179, 2
    %v1181 = vmax.f32 %v1179, %v1180
    %v1182 = vrot.slane %v1181, 1
    %v1183 = vmax.f32 %v1181, %v1182
    %v1186 = vrot.slane %v674, 1
    %v1187 = vrot.slane %v674, 2
    %v1188 = vrot.slane %v674, 3
    %v1189 = vrot.slane %v674, 4
    %v1190 = vrot.slane %v674, 5
    %v1191 = vrot.slane %v674, 6
    %v1192 = vrot.slane %v674, 7
    %v1193 = vrot.slane %v679, 1
    %v1194 = vrot.slane %v679, 2
    %v1195 = vrot.slane %v679, 3
    %v1196 = vrot.slane %v679, 4
    %v1197 = vrot.slane %v679, 5
    %v1198 = vrot.slane %v679, 6
    %v1199 = vrot.slane %v679, 7
    %v1216 = vmax.f32 %v1078, %v674
    %v1217 = vmax.f32 %v1085, %v1186
    %v1218 = vmax.f32 %v1092, %v1187
    %v1219 = vmax.f32 %v1099, %v1188
    %v1220 = vmax.f32 %v1106, %v1189
    %v1221 = vmax.f32 %v1113, %v1190
    %v1222 = vmax.f32 %v1120, %v1191
    %v1223 = vmax.f32 %v1127, %v1192
    %v1224 = vmax.f32 %v1134, %v679
    %v1225 = vmax.f32 %v1141, %v1193
    %v1226 = vmax.f32 %v1148, %v1194
    %v1227 = vmax.f32 %v1155, %v1195
    %v1228 = vmax.f32 %v1162, %v1196
    %v1229 = vmax.f32 %v1169, %v1197
    %v1230 = vmax.f32 %v1176, %v1198
    %v1231 = vmax.f32 %v1183, %v1199
    %v1248 = vrot.slane %v1217, 7
    %v1249 = vsel %vm267, %v1248, %v1216
    %v1250 = vrot.slane %v1218, 6
    %v1251 = vsel %vm270, %v1250, %v1249
    %v1252 = vrot.slane %v1219, 5
    %v1253 = vsel %vm273, %v1252, %v1251
    %v1254 = vrot.slane %v1220, 4
    %v1255 = vsel %vm276, %v1254, %v1253
    %v1256 = vrot.slane %v1221, 3
    %v1257 = vsel %vm279, %v1256, %v1255
    %v1258 = vrot.slane %v1222, 2
    %v1259 = vsel %vm282, %v1258, %v1257
    %v1260 = vrot.slane %v1223, 1
    %v1261 = vsel %vm285, %v1260, %v1259
    %v1262 = vrot.slane %v1225, 7
    %v1263 = vsel %vm267, %v1262, %v1224
    %v1264 = vrot.slane %v1226, 6
    %v1265 = vsel %vm270, %v1264, %v1263
    %v1266 = vrot.slane %v1227, 5
    %v1267 = vsel %vm273, %v1266, %v1265
    %v1268 = vrot.slane %v1228, 4
    %v1269 = vsel %vm276, %v1268, %v1267
    %v1270 = vrot.slane %v1229, 3
    %v1271 = vsel %vm279, %v1270, %v1269
    %v1272 = vrot.slane %v1230, 2
    %v1273 = vsel %vm282, %v1272, %v1271
    %v1274 = vrot.slane %v1231, 1
    %v1275 = vsel %vm285, %v1274, %v1273
    %v1278 = vsub.f32 %v674, %v1261
    %v1279 = vsub.f32 %v679, %v1275
    %v1280 = vmul.f32 %v1278, 1.442695
    %v1281 = vpow.pop %v1280
    %v1282 = vmul.f32 %v1279, 1.442695
    %v1283 = vpow.pop %v1282
    %v1284 = vlaneseq
    %v1285 = vshrl.u32 %v1284, 7
    %v1286 = vsub.s32 0, %v1285
    %v1287 = vrot.slane %v1216, %v1286
    %v1288 = vlaneseq
    %v1289 = vshrl.u32 %v1288, 7
    %v1290 = vsub.s32 0, %v1289
    %v1291 = vrot.slane %v1217, %v1290
    %v1292 = vlaneseq
    %v1293 = vshrl.u32 %v1292, 7
    %v1294 = vsub.s32 0, %v1293
    %v1295 = vrot.slane %v1218, %v1294
    %v1296 = vlaneseq
    %v1297 = vshrl.u32 %v1296, 7
    %v1298 = vsub.s32 0, %v1297
    %v1299 = vrot.slane %v1219, %v1298
    %v1300 = vlaneseq
    %v1301 = vshrl.u32 %v1300, 7
    %v1302 = vsub.s32 0, %v1301
    %v1303 = vrot.slane %v1220, %v1302
    %v1304 = vlaneseq
    %v1305 = vshrl.u32 %v1304, 7
    %v1306 = vsub.s32 0, %v1305
    %v1307 = vrot.slane %v1221, %v1306
    %v1308 = vlaneseq
    %v1309 = vshrl.u32 %v1308, 7
    %v1310 = vsub.s32 0, %v1309
    %v1311 = vrot.slane %v1222, %v1310
    %v1312 = vlaneseq
    %v1313 = vshrl.u32 %v1312, 7
    %v1314 = vsub.s32 0, %v1313
    %v1315 = vrot.slane %v1223, %v1314
    %v1316 = vlaneseq
    %v1317 = vshrl.u32 %v1316, 7
    %v1318 = vsub.s32 0, %v1317
    %v1319 = vrot.slane %v1224, %v1318
    %v1320 = vlaneseq
    %v1321 = vshrl.u32 %v1320, 7
    %v1322 = vsub.s32 0, %v1321
    %v1323 = vrot.slane %v1225, %v1322
    %v1324 = vlaneseq
    %v1325 = vshrl.u32 %v1324, 7
    %v1326 = vsub.s32 0, %v1325
    %v1327 = vrot.slane %v1226, %v1326
    %v1328 = vlaneseq
    %v1329 = vshrl.u32 %v1328, 7
    %v1330 = vsub.s32 0, %v1329
    %v1331 = vrot.slane %v1227, %v1330
    %v1332 = vlaneseq
    %v1333 = vshrl.u32 %v1332, 7
    %v1334 = vsub.s32 0, %v1333
    %v1335 = vrot.slane %v1228, %v1334
    %v1336 = vlaneseq
    %v1337 = vshrl.u32 %v1336, 7
    %v1338 = vsub.s32 0, %v1337
    %v1339 = vrot.slane %v1229, %v1338
    %v1340 = vlaneseq
    %v1341 = vshrl.u32 %v1340, 7
    %v1342 = vsub.s32 0, %v1341
    %v1343 = vrot.slane %v1230, %v1342
    %v1344 = vlaneseq
    %v1345 = vshrl.u32 %v1344, 7
    %v1346 = vsub.s32 0, %v1345
    %v1347 = vrot.slane %v1231, %v1346
    %v1348 = vsub.f32 %v993, %v1287
    %v1349 = vsub.f32 %v998, %v1291
    %v1350 = vsub.f32 %v1003, %v1295
    %v1351 = vsub.f32 %v1008, %v1299
    %v1352 = vsub.f32 %v1013, %v1303
    %v1353 = vsub.f32 %v1018, %v1307
    %v1354 = vsub.f32 %v1023, %v1311
    %v1355 = vsub.f32 %v1028, %v1315
    %v1356 = vsub.f32 %v1033, %v1319
    %v1357 = vsub.f32 %v1038, %v1323
    %v1358 = vsub.f32 %v1043, %v1327
    %v1359 = vsub.f32 %v1048, %v1331
    %v1360 = vsub.f32 %v1053, %v1335
    %v1361 = vsub.f32 %v1058, %v1339
    %v1362 = vsub.f32 %v1063, %v1343
    %v1363 = vsub.f32 %v1068, %v1347
    %v1364 = vmul.f32 %v1348, 1.442695
    %v1365 = vpow.pop %v1364
    %v1366 = vmul.f32 %v1349, 1.442695
    %v1367 = vpow.pop %v1366
    %v1368 = vmul.f32 %v1350, 1.442695
    %v1369 = vpow.pop %v1368
    %v1370 = vmul.f32 %v1351, 1.442695
    %v1371 = vpow.pop %v1370
    %v1372 = vmul.f32 %v1352, 1.442695
    %v1373 = vpow.pop %v1372
    %v1374 = vmul.f32 %v1353, 1.442695
    %v1375 = vpow.pop %v1374
    %v1376 = vmul.f32 %v1354, 1.442695
    %v1377 = vpow.pop %v1376
    %v1378 = vmul.f32 %v1355, 1.442695
    %v1379 = vpow.pop %v1378
    %v1380 = vmul.f32 %v1356, 1.442695
    %v1381 = vpow.pop %v1380
    %v1382 = vmul.f32 %v1357, 1.442695
    %v1383 = vpow.pop %v1382
    %v1384 = vmul.f32 %v1358, 1.442695
    %v1385 = vpow.pop %v1384
    %v1386 = vmul.f32 %v1359, 1.442695
    %v1387 = vpow.pop %v1386
    %v1388 = vmul.f32 %v1360, 1.442695
    %v1389 = vpow.pop %v1388
    %v1390 = vmul.f32 %v1361, 1.442695
    %v1391 = vpow.pop %v1390
    %v1392 = vmul.f32 %v1362, 1.442695
    %v1393 = vpow.pop %v1392
    %v1394 = vmul.f32 %v1363, 1.442695
    %v1395 = vpow.pop %v1394
    %v1396 = vsel %vm1071, %v1365, 0.0
    %v1397 = vrot.slane %v1396, 4
    %v1398 = vadd.f32 %v1396, %v1397
    %v1399 = vrot.slane %v1398, 2
    %v1400 = vadd.f32 %v1398, %v1399
    %v1401 = vrot.slane %v1400, 1
    %v1402 = vadd.f32 %v1400, %v1401
    %v1403 = vsel %vm1071, %v1367, 0.0
    %v1404 = vrot.slane %v1403, 4
    %v1405 = vadd.f32 %v1403, %v1404
    %v1406 = vrot.slane %v1405, 2
    %v1407 = vadd.f32 %v1405, %v1406
    %v1408 = vrot.slane %v1407, 1
    %v1409 = vadd.f32 %v1407, %v1408
    %v1410 = vsel %vm1071, %v1369, 0.0
    %v1411 = vrot.slane %v1410, 4
    %v1412 = vadd.f32 %v1410, %v1411
    %v1413 = vrot.slane %v1412, 2
    %v1414 = vadd.f32 %v1412, %v1413
    %v1415 = vrot.slane %v1414, 1
    %v1416 = vadd.f32 %v1414, %v1415
    %v1417 = vsel %vm1071, %v1371, 0.0
    %v1418 = vrot.slane %v1417, 4
    %v1419 = vadd.f32 %v1417, %v1418
    %v1420 = vrot.slane %v1419, 2
    %v1421 = vadd.f32 %v1419, %v1420
    %v1422 = vrot.slane %v1421, 1
    %v1423 = vadd.f32 %v1421, %v1422
    %v1424 = vsel %vm1071, %v1373, 0.0
    %v1425 = vrot.slane %v1424, 4
    %v1426 = vadd.f32 %v1424, %v1425
    %v1427 = vrot.slane %v1426, 2
    %v1428 = vadd.f32 %v1426, %v1427
    %v1429 = vrot.slane %v1428, 1
    %v1430 = vadd.f32 %v1428, %v1429
    %v1431 = vsel %vm1071, %v1375, 0.0
    %v1432 = vrot.slane %v1431, 4
    %v1433 = vadd.f32 %v1431, %v1432
    %v1434 = vrot.slane %v1433, 2
    %v1435 = vadd.f32 %v1433, %v1434
    %v1436 = vrot.slane %v1435, 1
    %v1437 = vadd.f32 %v1435, %v1436
    %v1438 = vsel %vm1071, %v1377, 0.0
    %v1439 = vrot.slane %v1438, 4
    %v1440 = vadd.f32 %v1438, %v1439
    %v1441 = vrot.slane %v1440, 2
    %v1442 = vadd.f32 %v1440, %v1441
    %v1443 = vrot.slane %v1442, 1
    %v1444 = vadd.f32 %v1442, %v1443
    %v1445 = vsel %vm1071, %v1379, 0.0
    %v1446 = vrot.slane %v1445, 4
    %v1447 = vadd.f32 %v1445, %v1446
    %v1448 = vrot.slane %v1447, 2
    %v1449 = vadd.f32 %v1447, %v1448
    %v1450 = vrot.slane %v1449, 1
    %v1451 = vadd.f32 %v1449, %v1450
    %v1452 = vsel %vm1071, %v1381, 0.0
    %v1453 = vrot.slane %v1452, 4
    %v1454 = vadd.f32 %v1452, %v1453
    %v1455 = vrot.slane %v1454, 2
    %v1456 = vadd.f32 %v1454, %v1455
    %v1457 = vrot.slane %v1456, 1
    %v1458 = vadd.f32 %v1456, %v1457
    %v1459 = vsel %vm1071, %v1383, 0.0
    %v1460 = vrot.slane %v1459, 4
    %v1461 = vadd.f32 %v1459, %v1460
    %v1462 = vrot.slane %v1461, 2
    %v1463 = vadd.f32 %v1461, %v1462
    %v1464 = vrot.slane %v1463, 1
    %v1465 = vadd.f32 %v1463, %v1464
    %v1466 = vsel %vm1071, %v1385, 0.0
    %v1467 = vrot.slane %v1466, 4
    %v1468 = vadd.f32 %v1466, %v1467
    %v1469 = vrot.slane %v1468, 2
    %v1470 = vadd.f32 %v1468, %v1469
    %v1471 = vrot.slane %v1470, 1
    %v1472 = vadd.f32 %v1470, %v1471
    %v1473 = vsel %vm1071, %v1387, 0.0
    %v1474 = vrot.slane %v1473, 4
    %v1475 = vadd.f32 %v1473, %v1474
    %v1476 = vrot.slane %v1475, 2
    %v1477 = vadd.f32 %v1475, %v1476
    %v1478 = vrot.slane %v1477, 1
    %v1479 = vadd.f32 %v1477, %v1478
    %v1480 = vsel %vm1071, %v1389, 0.0
    %v1481 = vrot.slane %v1480, 4
    %v1482 = vadd.f32 %v1480, %v1481
    %v1483 = vrot.slane %v1482, 2
    %v1484 = vadd.f32 %v1482, %v1483
    %v1485 = vrot.slane %v1484, 1
    %v1486 = vadd.f32 %v1484, %v1485
    %v1487 = vsel %vm1071, %v1391, 0.0
    %v1488 = vrot.slane %v1487, 4
    %v1489 = vadd.f32 %v1487, %v1488
    %v1490 = vrot.slane %v1489, 2
    %v1491 = vadd.f32 %v1489, %v1490
    %v1492 = vrot.slane %v1491, 1
    %v1493 = vadd.f32 %v1491, %v1492
    %v1494 = vsel %vm1071, %v1393, 0.0
    %v1495 = vrot.slane %v1494, 4
    %v1496 = vadd.f32 %v1494, %v1495
    %v1497 = vrot.slane %v1496, 2
    %v1498 = vadd.f32 %v1496, %v1497
    %v1499 = vrot.slane %v1498, 1
    %v1500 = vadd.f32 %v1498, %v1499
    %v1501 = vsel %vm1071, %v1395, 0.0
    %v1502 = vrot.slane %v1501, 4
    %v1503 = vadd.f32 %v1501, %v1502
    %v1504 = vrot.slane %v1503, 2
    %v1505 = vadd.f32 %v1503, %v1504
    %v1506 = vrot.slane %v1505, 1
    %v1507 = vadd.f32 %v1505, %v1506
    %v1524 = vsel %vm267, %v1409, %v1402
    %v1525 = vsel %vm270, %v1416, %v1524
    %v1526 = vsel %vm273, %v1423, %v1525
    %v1527 = vsel %vm276, %v1430, %v1526
    %v1528 = vsel %vm279, %v1437, %v1527
    %v1529 = vsel %vm282, %v1444, %v1528
    %v1530 = vsel %vm285, %v1451, %v1529
    %v1531 = vsel %vm267, %v1465, %v1458
    %v1532 = vsel %vm270, %v1472, %v1531
    %v1533 = vsel %vm273, %v1479, %v1532
    %v1534 = vsel %vm276, %v1486, %v1533
    %v1535 = vsel %vm279, %v1493, %v1534
    %v1536 = vsel %vm282, %v1500, %v1535
    %v1537 = vsel %vm285, %v1507, %v1536
    %v1540 = vadd.f32 %v1281, %v1530
    %v1541 = vadd.f32 %v1283, %v1537
    %v1542 = vrcp.pop %v1540
    %v1543 = vrcp.pop %v1541
    %v1544 = vmul.f32 %v1281, %v1542
    %v1545 = vmul.f32 %v1283, %v1543
    %v1547 = vsel %vm1071, %v1544, 0
    %v1550 = vsel %vm1071, %v1545, 0
    %vm1552 = vcmask 1043456
    %v1554 = vsel %vm1552, %v590, 0
    %1556 = vmatprep.subr.mxu0 0.0
    %1557 = vmatpush1.msra.mxu0 %v1554
    %1558 = vmatprep.subr.mxu0 0.0
    %1559 = vmatpush1.msra.mxu0 0.0
    %1560 = vmatprep.subr.mxu0 0.0
    %1561 = vmatpush1.msra.mxu0 0.0
    %1562 = vmatprep.subr.mxu0 0.0
    %1563 = vmatpush1.msra.mxu0 0.0
    %1564 = vmatprep.subr.mxu0 0.0
    %1565 = vmatpush1.msra.mxu0 0.0
    %1566 = vmatprep.subr.mxu0 0.0
    %1567 = vmatpush1.msra.mxu0 0.0
    %1568 = vmatprep.subr.mxu0 0.0
    %1569 = vmatpush1.msra.mxu0 0.0
    %1570 = vmatprep.subr.mxu0 0.0
    %1571 = vmatpush1.msra.mxu0 0.0
    %1572 = vmatprep.subr.mxu0 0.0
    %1573 = vmatpush1.msra.mxu0 0.0
    %1574 = vmatprep.subr.mxu0 0.0
    %1575 = vmatpush1.msra.mxu0 0.0
    %1576 = vmatprep.subr.mxu0 0.0
    %1577 = vmatpush1.msra.mxu0 0.0
    %1578 = vmatprep.subr.mxu0 0.0
    %1579 = vmatpush1.msra.mxu0 0.0
    %1580 = vmatprep.subr.mxu0 0.0
    %1581 = vmatpush1.msra.mxu0 0.0
    %1582 = vmatprep.subr.mxu0 0.0
    %1583 = vmatpush1.msra.mxu0 0.0
    %1584 = vmatprep.subr.mxu0 0.0
    %1585 = vmatpush1.msra.mxu0 0.0
    %1586 = vmatprep.subr.mxu0 0.0
    %1587 = vmatpush1.msra.mxu0 0.0
    %1588 = vmatprep.subr.mxu0 0.0
    %1589 = vmatpush1.msra.mxu0 0.0
    %1590 = vmatprep.subr.mxu0 0.0
    %1591 = vmatpush1.msra.mxu0 0.0
    %1592 = vmatprep.subr.mxu0 0.0
    %1593 = vmatpush1.msra.mxu0 0.0
    %1594 = vmatprep.subr.mxu0 0.0
    %1595 = vmatpush1.msra.mxu0 0.0
    %1596 = vmatprep.subr.mxu0 0.0
    %1597 = vmatpush1.msra.mxu0 0.0
    %1598 = vmatprep.subr.mxu0 0.0
    %1599 = vmatpush1.msra.mxu0 0.0
    %1600 = vmatprep.subr.mxu0 0.0
    %1601 = vmatpush1.msra.mxu0 0.0
    %1602 = vmatprep.subr.mxu0 0.0
    %1603 = vmatpush1.msra.mxu0 0.0
    %1604 = vmatprep.subr.mxu0 0.0
    %1605 = vmatpush1.msra.mxu0 0.0
    %1606 = vmatprep.subr.mxu0 0.0
    %1607 = vmatpush1.msra.mxu0 0.0
    %1608 = vmatprep.subr.mxu0 0.0
    %1609 = vmatpush1.msra.mxu0 0.0
    %1610 = vmatprep.subr.mxu0 0.0
    %1611 = vmatpush1.msra.mxu0 0.0
    %1612 = vmatprep.subr.mxu0 0.0
    %1613 = vmatpush1.msra.mxu0 0.0
    %1614 = vmatprep.subr.mxu0 0.0
    %1615 = vmatpush1.msra.mxu0 0.0
    %1616 = vmatprep.subr.mxu0 0.0
    %1617 = vmatpush1.msra.mxu0 0.0
    %1618 = vmatprep.subr.mxu0 0.0
    %1619 = vmatpush1.msra.mxu0 0.0
    %1620 = vmatprep.mubr.f32.mxu0 0.0
    %1621 = vmatmul.mubr.f32.gmra.mrb[0].mxu0 %v1547
    %v1622 = vpop.f32.mrb[0].mxu0
    %v1623 = vadd.f32 0.0, %v1622
    %v1624 = vpop.f32.mrb[0].mxu0
    %1625 = vmatprep.mubr.f32.mxu0 0.0
    %1626 = vmatmul.mubr.f32.gmra.mrb[0].mxu0 %v1550
    %v1627 = vpop.f32.mrb[0].mxu0
    %v1628 = vadd.f32 0.0, %v1627
    %v1629 = vpop.f32.mrb[0].mxu0
    %1630 = vdwg.mxu0
    %v1633 = vcombine.high %v1542, %v1542
    %v1635 = vunpack.c.l.s4 1966171168
    %v1636 = vunpack.c.0.s8 %v1635
    %v1637 = vlaneseq
    %v1638 = vshrl.u32 %v1637, 7
    %v1639 = vsub.s32 %v1636, %v1638
    %v1640 = vrot.slane %v1542, %v1639
    %v1642 = vunpack.c.l.s4 1966171168
    %v1643 = vunpack.c.0.s8 %v1642
    %v1644 = vlaneseq
    %v1645 = vshrl.u32 %v1644, 7
    %v1646 = vsub.s32 %v1643, %v1645
    %v1647 = vrot.slane %v1633, %v1646
    %v1648 = vcombine.high %v1640, %v1640
    %v1649 = vcombine.high %v1647, %v1647
    %v1651 = vunpack.c.l.s4 1966171168
    %v1652 = vunpack.c.0.s8 %v1651
    %v1653 = vlaneseq
    %v1654 = vshrl.u32 %v1653, 7
    %v1655 = vsub.s32 %v1652, %v1654
    %v1656 = vrot.slane %v1640, %v1655
    %v1658 = vunpack.c.l.s4 1966171168
    %v1659 = vunpack.c.0.s8 %v1658
    %v1660 = vlaneseq
    %v1661 = vshrl.u32 %v1660, 7
    %v1662 = vsub.s32 %v1659, %v1661
    %v1663 = vrot.slane %v1647, %v1662
    %v1665 = vunpack.c.l.s4 1966171168
    %v1666 = vunpack.c.0.s8 %v1665
    %v1667 = vlaneseq
    %v1668 = vshrl.u32 %v1667, 7
    %v1669 = vsub.s32 %v1666, %v1668
    %v1670 = vrot.slane %v1648, %v1669
    %v1672 = vunpack.c.l.s4 1966171168
    %v1673 = vunpack.c.0.s8 %v1672
    %v1674 = vlaneseq
    %v1675 = vshrl.u32 %v1674, 7
    %v1676 = vsub.s32 %v1673, %v1675
    %v1677 = vrot.slane %v1649, %v1676
    %v1678 = vcombine.high %v1656, %v1656
    %v1679 = vcombine.high %v1663, %v1663
    %v1680 = vcombine.high %v1670, %v1670
    %v1681 = vcombine.high %v1677, %v1677
    %v1682 = vcombine.high %v1543, %v1543
    %v1684 = vunpack.c.l.s4 1966171168
    %v1685 = vunpack.c.0.s8 %v1684
    %v1686 = vlaneseq
    %v1687 = vshrl.u32 %v1686, 7
    %v1688 = vsub.s32 %v1685, %v1687
    %v1689 = vrot.slane %v1543, %v1688
    %v1691 = vunpack.c.l.s4 1966171168
    %v1692 = vunpack.c.0.s8 %v1691
    %v1693 = vlaneseq
    %v1694 = vshrl.u32 %v1693, 7
    %v1695 = vsub.s32 %v1692, %v1694
    %v1696 = vrot.slane %v1682, %v1695
    %v1697 = vcombine.high %v1689, %v1689
    %v1698 = vcombine.high %v1696, %v1696
    %v1700 = vunpack.c.l.s4 1966171168
    %v1701 = vunpack.c.0.s8 %v1700
    %v1702 = vlaneseq
    %v1703 = vshrl.u32 %v1702, 7
    %v1704 = vsub.s32 %v1701, %v1703
    %v1705 = vrot.slane %v1689, %v1704
    %v1707 = vunpack.c.l.s4 1966171168
    %v1708 = vunpack.c.0.s8 %v1707
    %v1709 = vlaneseq
    %v1710 = vshrl.u32 %v1709, 7
    %v1711 = vsub.s32 %v1708, %v1710
    %v1712 = vrot.slane %v1696, %v1711
    %v1714 = vunpack.c.l.s4 1966171168
    %v1715 = vunpack.c.0.s8 %v1714
    %v1716 = vlaneseq
    %v1717 = vshrl.u32 %v1716, 7
    %v1718 = vsub.s32 %v1715, %v1717
    %v1719 = vrot.slane %v1697, %v1718
    %v1721 = vunpack.c.l.s4 1966171168
    %v1722 = vunpack.c.0.s8 %v1721
    %v1723 = vlaneseq
    %v1724 = vshrl.u32 %v1723, 7
    %v1725 = vsub.s32 %v1722, %v1724
    %v1726 = vrot.slane %v1698, %v1725
    %v1727 = vcombine.high %v1705, %v1705
    %v1728 = vcombine.high %v1712, %v1712
    %v1729 = vcombine.high %v1719, %v1719
    %v1730 = vcombine.high %v1726, %v1726
    %v1731 = vlaneseq
    %v1732 = vshrl.u32 %v1731, 7
    %v1733 = vsub.s32 0, %v1732
    %v1734 = vrot.slane %v1656, %v1733
    %v1735 = vlaneseq
    %v1736 = vshrl.u32 %v1735, 7
    %v1737 = vsub.s32 0, %v1736
    %v1738 = vrot.slane %v1670, %v1737
    %v1739 = vlaneseq
    %v1740 = vshrl.u32 %v1739, 7
    %v1741 = vsub.s32 0, %v1740
    %v1742 = vrot.slane %v1678, %v1741
    %v1743 = vlaneseq
    %v1744 = vshrl.u32 %v1743, 7
    %v1745 = vsub.s32 0, %v1744
    %v1746 = vrot.slane %v1680, %v1745
    %v1747 = vlaneseq
    %v1748 = vshrl.u32 %v1747, 7
    %v1749 = vsub.s32 0, %v1748
    %v1750 = vrot.slane %v1663, %v1749
    %v1751 = vlaneseq
    %v1752 = vshrl.u32 %v1751, 7
    %v1753 = vsub.s32 0, %v1752
    %v1754 = vrot.slane %v1677, %v1753
    %v1755 = vlaneseq
    %v1756 = vshrl.u32 %v1755, 7
    %v1757 = vsub.s32 0, %v1756
    %v1758 = vrot.slane %v1679, %v1757
    %v1759 = vlaneseq
    %v1760 = vshrl.u32 %v1759, 7
    %v1761 = vsub.s32 0, %v1760
    %v1762 = vrot.slane %v1681, %v1761
    %v1763 = vlaneseq
    %v1764 = vshrl.u32 %v1763, 7
    %v1765 = vsub.s32 0, %v1764
    %v1766 = vrot.slane %v1705, %v1765
    %v1767 = vlaneseq
    %v1768 = vshrl.u32 %v1767, 7
    %v1769 = vsub.s32 0, %v1768
    %v1770 = vrot.slane %v1719, %v1769
    %v1771 = vlaneseq
    %v1772 = vshrl.u32 %v1771, 7
    %v1773 = vsub.s32 0, %v1772
    %v1774 = vrot.slane %v1727, %v1773
    %v1775 = vlaneseq
    %v1776 = vshrl.u32 %v1775, 7
    %v1777 = vsub.s32 0, %v1776
    %v1778 = vrot.slane %v1729, %v1777
    %v1779 = vlaneseq
    %v1780 = vshrl.u32 %v1779, 7
    %v1781 = vsub.s32 0, %v1780
    %v1782 = vrot.slane %v1712, %v1781
    %v1783 = vlaneseq
    %v1784 = vshrl.u32 %v1783, 7
    %v1785 = vsub.s32 0, %v1784
    %v1786 = vrot.slane %v1726, %v1785
    %v1787 = vlaneseq
    %v1788 = vshrl.u32 %v1787, 7
    %v1789 = vsub.s32 0, %v1788
    %v1790 = vrot.slane %v1728, %v1789
    %v1791 = vlaneseq
    %v1792 = vshrl.u32 %v1791, 7
    %v1793 = vsub.s32 0, %v1792
    %v1794 = vrot.slane %v1730, %v1793
    %v1811 = vmul.f32 %v1365, %v1734
    %v1812 = vmul.f32 %v1367, %v1738
    %v1813 = vmul.f32 %v1369, %v1742
    %v1814 = vmul.f32 %v1371, %v1746
    %v1815 = vmul.f32 %v1373, %v1750
    %v1816 = vmul.f32 %v1375, %v1754
    %v1817 = vmul.f32 %v1377, %v1758
    %v1818 = vmul.f32 %v1379, %v1762
    %v1819 = vmul.f32 %v1381, %v1766
    %v1820 = vmul.f32 %v1383, %v1770
    %v1821 = vmul.f32 %v1385, %v1774
    %v1822 = vmul.f32 %v1387, %v1778
    %v1823 = vmul.f32 %v1389, %v1782
    %v1824 = vmul.f32 %v1391, %v1786
    %v1825 = vmul.f32 %v1393, %v1790
    %v1826 = vmul.f32 %v1395, %v1794
    %v1828 = vsel %vm1071, %v1811, 0
    %v1831 = vsel %vm1071, %v1812, 0
    %v1834 = vsel %vm1071, %v1813, 0
    %v1837 = vsel %vm1071, %v1814, 0
    %v1840 = vsel %vm1071, %v1815, 0
    %v1843 = vsel %vm1071, %v1816, 0
    %v1846 = vsel %vm1071, %v1817, 0
    %v1849 = vsel %vm1071, %v1818, 0
    %v1852 = vsel %vm1071, %v1819, 0
    %v1855 = vsel %vm1071, %v1820, 0
    %v1858 = vsel %vm1071, %v1821, 0
    %v1861 = vsel %vm1071, %v1822, 0
    %v1864 = vsel %vm1071, %v1823, 0
    %v1867 = vsel %vm1071, %v1824, 0
    %v1870 = vsel %vm1071, %v1825, 0
    %v1873 = vsel %vm1071, %v1826, 0
    %1875 = vmatprep.subr.mxu0 0.0
    %1876 = vmatpush1.msra.mxu0 %v1554
    %1877 = vmatprep.subr.mxu0 0.0
    %1878 = vmatpush1.msra.mxu0 0.0
    %1879 = vmatprep.subr.mxu0 0.0
    %1880 = vmatpush1.msra.mxu0 0.0
    %1881 = vmatprep.subr.mxu0 0.0
    %1882 = vmatpush1.msra.mxu0 0.0
    %1883 = vmatprep.subr.mxu0 0.0
    %1884 = vmatpush1.msra.mxu0 0.0
    %1885 = vmatprep.subr.mxu0 0.0
    %1886 = vmatpush1.msra.mxu0 0.0
    %1887 = vmatprep.subr.mxu0 0.0
    %1888 = vmatpush1.msra.mxu0 0.0
    %1889 = vmatprep.subr.mxu0 0.0
    %1890 = vmatpush1.msra.mxu0 0.0
    %1891 = vmatprep.subr.mxu0 0.0
    %1892 = vmatpush1.msra.mxu0 0.0
    %1893 = vmatprep.subr.mxu0 0.0
    %1894 = vmatpush1.msra.mxu0 0.0
    %1895 = vmatprep.subr.mxu0 0.0
    %1896 = vmatpush1.msra.mxu0 0.0
    %1897 = vmatprep.subr.mxu0 0.0
    %1898 = vmatpush1.msra.mxu0 0.0
    %1899 = vmatprep.subr.mxu0 0.0
    %1900 = vmatpush1.msra.mxu0 0.0
    %1901 = vmatprep.subr.mxu0 0.0
    %1902 = vmatpush1.msra.mxu0 0.0
    %1903 = vmatprep.subr.mxu0 0.0
    %1904 = vmatpush1.msra.mxu0 0.0
    %1905 = vmatprep.subr.mxu0 0.0
    %1906 = vmatpush1.msra.mxu0 0.0
    %1907 = vmatprep.subr.mxu0 0.0
    %1908 = vmatpush1.msra.mxu0 0.0
    %1909 = vmatprep.subr.mxu0 0.0
    %1910 = vmatpush1.msra.mxu0 0.0
    %1911 = vmatprep.subr.mxu0 0.0
    %1912 = vmatpush1.msra.mxu0 0.0
    %1913 = vmatprep.subr.mxu0 0.0
    %1914 = vmatpush1.msra.mxu0 0.0
    %1915 = vmatprep.subr.mxu0 0.0
    %1916 = vmatpush1.msra.mxu0 0.0
    %1917 = vmatprep.subr.mxu0 0.0
    %1918 = vmatpush1.msra.mxu0 0.0
    %1919 = vmatprep.subr.mxu0 0.0
    %1920 = vmatpush1.msra.mxu0 0.0
    %1921 = vmatprep.subr.mxu0 0.0
    %1922 = vmatpush1.msra.mxu0 0.0
    %1923 = vmatprep.subr.mxu0 0.0
    %1924 = vmatpush1.msra.mxu0 0.0
    %1925 = vmatprep.subr.mxu0 0.0
    %1926 = vmatpush1.msra.mxu0 0.0
    %1927 = vmatprep.subr.mxu0 0.0
    %1928 = vmatpush1.msra.mxu0 0.0
    %1929 = vmatprep.subr.mxu0 0.0
    %1930 = vmatpush1.msra.mxu0 0.0
    %1931 = vmatprep.subr.mxu0 0.0
    %1932 = vmatpush1.msra.mxu0 0.0
    %1933 = vmatprep.subr.mxu0 0.0
    %1934 = vmatpush1.msra.mxu0 0.0
    %1935 = vmatprep.subr.mxu0 0.0
    %1936 = vmatpush1.msra.mxu0 0.0
    %1937 = vmatprep.subr.mxu0 0.0
    %1938 = vmatpush1.msra.mxu0 0.0
    %1939 = vmatprep.mubr.f32.mxu0 0.0
    %1940 = vmatmul.mubr.f32.gmra.mrb[0].mxu0 %v1828
    %v1941 = vpop.f32.mrb[0].mxu0
    %v1942 = vadd.f32 0.0, %v1941
    %v1943 = vpop.f32.mrb[0].mxu0
    %1944 = vmatprep.mubr.f32.mxu0 0.0
    %1945 = vmatmul.mubr.f32.gmra.mrb[0].mxu0 %v1831
    %v1946 = vpop.f32.mrb[0].mxu0
    %v1947 = vadd.f32 0.0, %v1946
    %v1948 = vpop.f32.mrb[0].mxu0
    %1949 = vmatprep.mubr.f32.mxu0 0.0
    %1950 = vmatmul.mubr.f32.gmra.mrb[0].mxu0 %v1834
    %v1951 = vpop.f32.mrb[0].mxu0
    %v1952 = vadd.f32 0.0, %v1951
    %v1953 = vpop.f32.mrb[0].mxu0
    %1954 = vmatprep.mubr.f32.mxu0 0.0
    %1955 = vmatmul.mubr.f32.gmra.mrb[0].mxu0 %v1837
    %v1956 = vpop.f32.mrb[0].mxu0
    %v1957 = vadd.f32 0.0, %v1956
    %v1958 = vpop.f32.mrb[0].mxu0
    %1959 = vmatprep.mubr.f32.mxu0 0.0
    %1960 = vmatmul.mubr.f32.gmra.mrb[0].mxu0 %v1840
    %v1961 = vpop.f32.mrb[0].mxu0
    %v1962 = vadd.f32 0.0, %v1961
    %v1963 = vpop.f32.mrb[0].mxu0
    %1964 = vmatprep.mubr.f32.mxu0 0.0
    %1965 = vmatmul.mubr.f32.gmra.mrb[0].mxu0 %v1843
    %v1966 = vpop.f32.mrb[0].mxu0
    %v1967 = vadd.f32 0.0, %v1966
    %v1968 = vpop.f32.mrb[0].mxu0
    %1969 = vmatprep.mubr.f32.mxu0 0.0
    %1970 = vmatmul.mubr.f32.gmra.mrb[0].mxu0 %v1846
    %v1971 = vpop.f32.mrb[0].mxu0
    %v1972 = vadd.f32 0.0, %v1971
    %v1973 = vpop.f32.mrb[0].mxu0
    %1974 = vmatprep.mubr.f32.mxu0 0.0
    %1975 = vmatmul.mubr.f32.gmra.mrb[0].mxu0 %v1849
    %v1976 = vpop.f32.mrb[0].mxu0
    %v1977 = vadd.f32 0.0, %v1976
    %v1978 = vpop.f32.mrb[0].mxu0
    %1979 = vmatprep.mubr.f32.mxu0 0.0
    %1980 = vmatmul.mubr.f32.gmra.mrb[0].mxu0 %v1852
    %v1981 = vpop.f32.mrb[0].mxu0
    %v1982 = vadd.f32 0.0, %v1981
    %v1983 = vpop.f32.mrb[0].mxu0
    %1984 = vmatprep.mubr.f32.mxu0 0.0
    %1985 = vmatmul.mubr.f32.gmra.mrb[0].mxu0 %v1855
    %v1986 = vpop.f32.mrb[0].mxu0
    %v1987 = vadd.f32 0.0, %v1986
    %v1988 = vpop.f32.mrb[0].mxu0
    %1989 = vmatprep.mubr.f32.mxu0 0.0
    %1990 = vmatmul.mubr.f32.gmra.mrb[0].mxu0 %v1858
    %v1991 = vpop.f32.mrb[0].mxu0
    %v1992 = vadd.f32 0.0, %v1991
    %v1993 = vpop.f32.mrb[0].mxu0
    %1994 = vmatprep.mubr.f32.mxu0 0.0
    %1995 = vmatmul.mubr.f32.gmra.mrb[0].mxu0 %v1861
    %v1996 = vpop.f32.mrb[0].mxu0
    %v1997 = vadd.f32 0.0, %v1996
    %v1998 = vpop.f32.mrb[0].mxu0
    %1999 = vmatprep.mubr.f32.mxu0 0.0
    %2000 = vmatmul.mubr.f32.gmra.mrb[0].mxu0 %v1864
    %v2001 = vpop.f32.mrb[0].mxu0
    %v2002 = vadd.f32 0.0, %v2001
    %v2003 = vpop.f32.mrb[0].mxu0
    %2004 = vmatprep.mubr.f32.mxu0 0.0
    %2005 = vmatmul.mubr.f32.gmra.mrb[0].mxu0 %v1867
    %v2006 = vpop.f32.mrb[0].mxu0
    %v2007 = vadd.f32 0.0, %v2006
    %v2008 = vpop.f32.mrb[0].mxu0
    %2009 = vmatprep.mubr.f32.mxu0 0.0
    %2010 = vmatmul.mubr.f32.gmra.mrb[0].mxu0 %v1870
    %v2011 = vpop.f32.mrb[0].mxu0
    %v2012 = vadd.f32 0.0, %v2011
    %v2013 = vpop.f32.mrb[0].mxu0
    %2014 = vmatprep.mubr.f32.mxu0 0.0
    %2015 = vmatmul.mubr.f32.gmra.mrb[0].mxu0 %v1873
    %v2016 = vpop.f32.mrb[0].mxu0
    %v2017 = vadd.f32 0.0, %v2016
    %v2018 = vpop.f32.mrb[0].mxu0
    %2019 = vdwg.mxu0
    %2020 = vrot.lane.b32.xlu0 %v372, 64
    %v2021 = vpop.permute.xlu0 %2020
    %2022 = vrot.lane.b32.xlu0 %v377, 64
    %v2023 = vpop.permute.xlu0 %2022
    %v2026 = vmul.f32 %v1623, %v2021
    %v2027 = vmul.f32 %v1628, %v2023
    %2044 = vrot.lane.b32.xlu0 %v508, 96
    %v2045 = vpop.permute.xlu0 %2044
    %2046 = vrot.lane.b32.xlu0 %v513, 96
    %v2047 = vpop.permute.xlu0 %2046
    %2048 = vrot.lane.b32.xlu0 %v518, 96
    %v2049 = vpop.permute.xlu0 %2048
    %2050 = vrot.lane.b32.xlu0 %v523, 96
    %v2051 = vpop.permute.xlu0 %2050
    %2052 = vrot.lane.b32.xlu0 %v528, 96
    %v2053 = vpop.permute.xlu0 %2052
    %2054 = vrot.lane.b32.xlu0 %v533, 96
    %v2055 = vpop.permute.xlu0 %2054
    %2056 = vrot.lane.b32.xlu0 %v538, 96
    %v2057 = vpop.permute.xlu0 %2056
    %2058 = vrot.lane.b32.xlu0 %v543, 96
    %v2059 = vpop.permute.xlu0 %2058
    %2060 = vrot.lane.b32.xlu0 %v548, 96
    %v2061 = vpop.permute.xlu0 %2060
    %2062 = vrot.lane.b32.xlu0 %v553, 96
    %v2063 = vpop.permute.xlu0 %2062
    %2064 = vrot.lane.b32.xlu0 %v558, 96
    %v2065 = vpop.permute.xlu0 %2064
    %2066 = vrot.lane.b32.xlu0 %v563, 96
    %v2067 = vpop.permute.xlu0 %2066
    %2068 = vrot.lane.b32.xlu0 %v568, 96
    %v2069 = vpop.permute.xlu0 %2068
    %2070 = vrot.lane.b32.xlu0 %v573, 96
    %v2071 = vpop.permute.xlu0 %2070
    %2072 = vrot.lane.b32.xlu0 %v578, 96
    %v2073 = vpop.permute.xlu0 %2072
    %2074 = vrot.lane.b32.xlu0 %v583, 96
    %v2075 = vpop.permute.xlu0 %2074
    %v2092 = vmul.f32 %v1942, %v2045
    %v2093 = vmul.f32 %v1947, %v2047
    %v2094 = vmul.f32 %v1952, %v2049
    %v2095 = vmul.f32 %v1957, %v2051
    %v2096 = vmul.f32 %v1962, %v2053
    %v2097 = vmul.f32 %v1967, %v2055
    %v2098 = vmul.f32 %v1972, %v2057
    %v2099 = vmul.f32 %v1977, %v2059
    %v2100 = vmul.f32 %v1982, %v2061
    %v2101 = vmul.f32 %v1987, %v2063
    %v2102 = vmul.f32 %v1992, %v2065
    %v2103 = vmul.f32 %v1997, %v2067
    %v2104 = vmul.f32 %v2002, %v2069
    %v2105 = vmul.f32 %v2007, %v2071
    %v2106 = vmul.f32 %v2012, %v2073
    %v2107 = vmul.f32 %v2017, %v2075
    %v2108 = vsel %vm71, %v2092, 0.0
    %v2109 = vrot.slane %v2108, 4
    %v2110 = vadd.f32 %v2108, %v2109
    %v2111 = vrot.slane %v2110, 2
    %v2112 = vadd.f32 %v2110, %v2111
    %v2113 = vrot.slane %v2112, 1
    %v2114 = vadd.f32 %v2112, %v2113
    %v2115 = vsel %vm71, %v2093, 0.0
    %v2116 = vrot.slane %v2115, 4
    %v2117 = vadd.f32 %v2115, %v2116
    %v2118 = vrot.slane %v2117, 2
    %v2119 = vadd.f32 %v2117, %v2118
    %v2120 = vrot.slane %v2119, 1
    %v2121 = vadd.f32 %v2119, %v2120
    %v2122 = vsel %vm71, %v2094, 0.0
    %v2123 = vrot.slane %v2122, 4
    %v2124 = vadd.f32 %v2122, %v2123
    %v2125 = vrot.slane %v2124, 2
    %v2126 = vadd.f32 %v2124, %v2125
    %v2127 = vrot.slane %v2126, 1
    %v2128 = vadd.f32 %v2126, %v2127
    %v2129 = vsel %vm71, %v2095, 0.0
    %v2130 = vrot.slane %v2129, 4
    %v2131 = vadd.f32 %v2129, %v2130
    %v2132 = vrot.slane %v2131, 2
    %v2133 = vadd.f32 %v2131, %v2132
    %v2134 = vrot.slane %v2133, 1
    %v2135 = vadd.f32 %v2133, %v2134
    %v2136 = vsel %vm71, %v2096, 0.0
    %v2137 = vrot.slane %v2136, 4
    %v2138 = vadd.f32 %v2136, %v2137
    %v2139 = vrot.slane %v2138, 2
    %v2140 = vadd.f32 %v2138, %v2139
    %v2141 = vrot.slane %v2140, 1
    %v2142 = vadd.f32 %v2140, %v2141
    %v2143 = vsel %vm71, %v2097, 0.0
    %v2144 = vrot.slane %v2143, 4
    %v2145 = vadd.f32 %v2143, %v2144
    %v2146 = vrot.slane %v2145, 2
    %v2147 = vadd.f32 %v2145, %v2146
    %v2148 = vrot.slane %v2147, 1
    %v2149 = vadd.f32 %v2147, %v2148
    %v2150 = vsel %vm71, %v2098, 0.0
    %v2151 = vrot.slane %v2150, 4
    %v2152 = vadd.f32 %v2150, %v2151
    %v2153 = vrot.slane %v2152, 2
    %v2154 = vadd.f32 %v2152, %v2153
    %v2155 = vrot.slane %v2154, 1
    %v2156 = vadd.f32 %v2154, %v2155
    %v2157 = vsel %vm71, %v2099, 0.0
    %v2158 = vrot.slane %v2157, 4
    %v2159 = vadd.f32 %v2157, %v2158
    %v2160 = vrot.slane %v2159, 2
    %v2161 = vadd.f32 %v2159, %v2160
    %v2162 = vrot.slane %v2161, 1
    %v2163 = vadd.f32 %v2161, %v2162
    %v2164 = vsel %vm71, %v2100, 0.0
    %v2165 = vrot.slane %v2164, 4
    %v2166 = vadd.f32 %v2164, %v2165
    %v2167 = vrot.slane %v2166, 2
    %v2168 = vadd.f32 %v2166, %v2167
    %v2169 = vrot.slane %v2168, 1
    %v2170 = vadd.f32 %v2168, %v2169
    %v2171 = vsel %vm71, %v2101, 0.0
    %v2172 = vrot.slane %v2171, 4
    %v2173 = vadd.f32 %v2171, %v2172
    %v2174 = vrot.slane %v2173, 2
    %v2175 = vadd.f32 %v2173, %v2174
    %v2176 = vrot.slane %v2175, 1
    %v2177 = vadd.f32 %v2175, %v2176
    %v2178 = vsel %vm71, %v2102, 0.0
    %v2179 = vrot.slane %v2178, 4
    %v2180 = vadd.f32 %v2178, %v2179
    %v2181 = vrot.slane %v2180, 2
    %v2182 = vadd.f32 %v2180, %v2181
    %v2183 = vrot.slane %v2182, 1
    %v2184 = vadd.f32 %v2182, %v2183
    %v2185 = vsel %vm71, %v2103, 0.0
    %v2186 = vrot.slane %v2185, 4
    %v2187 = vadd.f32 %v2185, %v2186
    %v2188 = vrot.slane %v2187, 2
    %v2189 = vadd.f32 %v2187, %v2188
    %v2190 = vrot.slane %v2189, 1
    %v2191 = vadd.f32 %v2189, %v2190
    %v2192 = vsel %vm71, %v2104, 0.0
    %v2193 = vrot.slane %v2192, 4
    %v2194 = vadd.f32 %v2192, %v2193
    %v2195 = vrot.slane %v2194, 2
    %v2196 = vadd.f32 %v2194, %v2195
    %v2197 = vrot.slane %v2196, 1
    %v2198 = vadd.f32 %v2196, %v2197
    %v2199 = vsel %vm71, %v2105, 0.0
    %v2200 = vrot.slane %v2199, 4
    %v2201 = vadd.f32 %v2199, %v2200
    %v2202 = vrot.slane %v2201, 2
    %v2203 = vadd.f32 %v2201, %v2202
    %v2204 = vrot.slane %v2203, 1
    %v2205 = vadd.f32 %v2203, %v2204
    %v2206 = vsel %vm71, %v2106, 0.0
    %v2207 = vrot.slane %v2206, 4
    %v2208 = vadd.f32 %v2206, %v2207
    %v2209 = vrot.slane %v2208, 2
    %v2210 = vadd.f32 %v2208, %v2209
    %v2211 = vrot.slane %v2210, 1
    %v2212 = vadd.f32 %v2210, %v2211
    %v2213 = vsel %vm71, %v2107, 0.0
    %v2214 = vrot.slane %v2213, 4
    %v2215 = vadd.f32 %v2213, %v2214
    %v2216 = vrot.slane %v2215, 2
    %v2217 = vadd.f32 %v2215, %v2216
    %v2218 = vrot.slane %v2217, 1
    %v2219 = vadd.f32 %v2217, %v2218
    %v2236 = vsel %vm267, %v2121, %v2114
    %v2237 = vsel %vm270, %v2128, %v2236
    %v2238 = vsel %vm273, %v2135, %v2237
    %v2239 = vsel %vm276, %v2142, %v2238
    %v2240 = vsel %vm279, %v2149, %v2239
    %v2241 = vsel %vm282, %v2156, %v2240
    %v2242 = vsel %vm285, %v2163, %v2241
    %v2243 = vsel %vm267, %v2177, %v2170
    %v2244 = vsel %vm270, %v2184, %v2243
    %v2245 = vsel %vm273, %v2191, %v2244
    %v2246 = vsel %vm276, %v2198, %v2245
    %v2247 = vsel %vm279, %v2205, %v2246
    %v2248 = vsel %vm282, %v2212, %v2247
    %v2249 = vsel %vm285, %v2219, %v2248
    %v2252 = vadd.f32 %v2026, %v2242
    %v2253 = vadd.f32 %v2027, %v2249
    %v2254 = vld [vmem:[%s7] sm:$0xff]
    %v2255 = vld [vmem:[%s7 + $0x8] sm:$0xff]
    %v2256 = vld [vmem:[%s7 + $0x10] sm:$0xff]
    %v2257 = vld [vmem:[%s7 + $0x18] sm:$0xff]
    %v2258 = vld [vmem:[%s8] sm:$0x1]
    %v2260 = vlaneseq
    %v2261 = vshrl.u32 %v2260, 7
    %v2262 = vsub.s32 0, %v2261
    %v2263 = vrot.slane %v2258, %v2262
    %v2266 = vsel %vm71, %v2252, 0
    %v2269 = vsel %vm71, %v2253, 0
    %2271 = vmatprep.subr.mxu0 0.0
    %2272 = vmatpush1.msra.mxu0 %v2254
    %2273 = vmatprep.subr.mxu0 0.0
    %2274 = vmatpush1.msra.mxu0 %v2255
    %2275 = vmatprep.subr.mxu0 0.0
    %2276 = vmatpush1.msra.mxu0 %v2256
    %2277 = vmatprep.subr.mxu0 0.0
    %2278 = vmatpush1.msra.mxu0 %v2257
    %2279 = vmatprep.subr.mxu0 0.0
    %2280 = vmatpush1.msra.mxu0 0.0
    %2281 = vmatprep.subr.mxu0 0.0
    %2282 = vmatpush1.msra.mxu0 0.0
    %2283 = vmatprep.subr.mxu0 0.0
    %2284 = vmatpush1.msra.mxu0 0.0
    %2285 = vmatprep.subr.mxu0 0.0
    %2286 = vmatpush1.msra.mxu0 0.0
    %2287 = vmatprep.subr.mxu0 0.0
    %2288 = vmatpush1.msra.mxu0 0.0
    %2289 = vmatprep.subr.mxu0 0.0
    %2290 = vmatpush1.msra.mxu0 0.0
    %2291 = vmatprep.subr.mxu0 0.0
    %2292 = vmatpush1.msra.mxu0 0.0
    %2293 = vmatprep.subr.mxu0 0.0
    %2294 = vmatpush1.msra.mxu0 0.0
    %2295 = vmatprep.subr.mxu0 0.0
    %2296 = vmatpush1.msra.mxu0 0.0
    %2297 = vmatprep.subr.mxu0 0.0
    %2298 = vmatpush1.msra.mxu0 0.0
    %2299 = vmatprep.subr.mxu0 0.0
    %2300 = vmatpush1.msra.mxu0 0.0
    %2301 = vmatprep.subr.mxu0 0.0
    %2302 = vmatpush1.msra.mxu0 0.0
    %2303 = vmatprep.subr.mxu0 0.0
    %2304 = vmatpush1.msra.mxu0 0.0
    %2305 = vmatprep.subr.mxu0 0.0
    %2306 = vmatpush1.msra.mxu0 0.0
    %2307 = vmatprep.subr.mxu0 0.0
    %2308 = vmatpush1.msra.mxu0 0.0
    %2309 = vmatprep.subr.mxu0 0.0
    %2310 = vmatpush1.msra.mxu0 0.0
    %2311 = vmatprep.subr.mxu0 0.0
    %2312 = vmatpush1.msra.mxu0 0.0
    %2313 = vmatprep.subr.mxu0 0.0
    %2314 = vmatpush1.msra.mxu0 0.0
    %2315 = vmatprep.subr.mxu0 0.0
    %2316 = vmatpush1.msra.mxu0 0.0
    %2317 = vmatprep.subr.mxu0 0.0
    %2318 = vmatpush1.msra.mxu0 0.0
    %2319 = vmatprep.subr.mxu0 0.0
    %2320 = vmatpush1.msra.mxu0 0.0
    %2321 = vmatprep.subr.mxu0 0.0
    %2322 = vmatpush1.msra.mxu0 0.0
    %2323 = vmatprep.subr.mxu0 0.0
    %2324 = vmatpush1.msra.mxu0 0.0
    %2325 = vmatprep.subr.mxu0 0.0
    %2326 = vmatpush1.msra.mxu0 0.0
    %2327 = vmatprep.subr.mxu0 0.0
    %2328 = vmatpush1.msra.mxu0 0.0
    %2329 = vmatprep.subr.mxu0 0.0
    %2330 = vmatpush1.msra.mxu0 0.0
    %2331 = vmatprep.subr.mxu0 0.0
    %2332 = vmatpush1.msra.mxu0 0.0
    %2333 = vmatprep.subr.mxu0 0.0
    %2334 = vmatpush1.msra.mxu0 0.0
    %2335 = vmatprep.mubr.f32.mxu0 0.0
    %2336 = vmatmul.mubr.f32.gmra.mrb[0].mxu0 %v2266
    %v2337 = vpop.f32.mrb[0].mxu0
    %v2338 = vadd.f32 %v2263, %v2337
    %v2339 = vpop.f32.mrb[0].mxu0
    %2340 = vmatprep.mubr.f32.mxu0 0.0
    %2341 = vmatmul.mubr.f32.gmra.mrb[0].mxu0 %v2269
    %v2342 = vpop.f32.mrb[0].mxu0
    %v2343 = vadd.f32 %v2263, %v2342
    %v2344 = vpop.f32.mrb[0].mxu0
    %2345 = vdwg.mxu0
    %vm2346 = vcmask 130048
    %2347 = vst.msk [vmem:[#allocation5] sm:$0xff] %vm2346, %v2338
    %2348 = vst.msk [vmem:[#allocation5 + $0x8] sm:$0xff] %vm2346, %v2343
    // Predicated region
    $region50: #{tpu_custom_call.1} parent=1 // pred_check
      _
    $region51: #{tpu_custom_call.1} parent=1 // pred_check_branch
      %2350 = sbr.rel (0) target = $region53
    $region52: #{tpu_custom_call.1} parent=1 // pred_region
      %s2352 = ssub.s32 256, 256
      %2353 = vsyncadd [#allocation4], %s2352
      %s2354 = sshll.u32 [#allocation5], 4
      %s2355 = int_to_ptr.vmem [resolvable:$true] %s2354
      %2360 = dma.vmem_to_hbm [thread:$0]  %s2355, 256, %s11, [#allocation4], 128, 128, 8
    $region53: #{tpu_custom_call.1} parent=1 // pred_fallthru
      _
    // Predicated region
    $region54: #{tpu_custom_call.1} parent=1 // pred_check
      _
    $region55: #{tpu_custom_call.1} parent=1 // pred_check_branch
      %2362 = sbr.rel (0) target = $region57
    $region56: #{tpu_custom_call.1} parent=1 // pred_region
      %2363 = dma.done [#allocation4], 256
    $region57: #{tpu_custom_call.1} parent=1 // pred_fallthru
      _
    %2364 = vsyncpa [#allocation3], 1
    %2365 = vsyncpa [#allocation4], 1

</llo_original>
